<compile_context>
chip_gen: v7x
topology: tpu7x:2x2x1
jax: 0.10.0
libtpu: 0.0.40
codegen_flags: <defaults>
</compile_context>

<pallas_src>
import functools
import math

import jax
import jax.numpy as jnp
from jax import lax
from jax.experimental import pallas as pl
from jax.experimental.pallas import tpu as pltpu


def _decoder_block_kernel(x_ref, enc_ref,
                          self_wqkv_ref, self_wo_ref,
                          cross_wq_ref, cross_wkv_ref, cross_wo_ref,
                          w1_ref, b1_ref, w2_ref, b2_ref,
                          ln_a_ref, ln_b_ref,
                          o_ref,
                          work_ref,
                          *, bt, num_heads, d_k, eps, compute_dtype, ff_chunk,
                          approx_recip):
    f32 = jnp.float32
    cd = compute_dtype
    R, D = x_ref.shape                    # R = bt * S (batch rows folded into M)
    S = R // bt
    Se = enc_ref.shape[0] // bt
    d_ff = w1_ref.shape[1]

    x = x_ref[...].astype(f32)            # (R, D)  running residual stream (f32)
    enc = enc_ref[...].astype(cd)         # (bt*Se, D) only ever a matmul (K/V) input

    # Hoisted LayerNorm parameters (loaded once per grid step, 3 rows each).
    ln_a = ln_a_ref[...]                  # (3, D) f32
    ln_b = ln_b_ref[...]                  # (3, D) f32
    inv_dm1 = 1.0 / (D - 1)

    def layernorm(v, idx):
        # torch: alpha * (v - mean) / (std + eps) + bias, std unbiased (N-1).
        mean = jnp.mean(v, axis=-1, keepdims=True)
        var = jnp.sum((v - mean) ** 2, axis=-1, keepdims=True) * inv_dm1
        inv = pl.reciprocal(jnp.sqrt(var) + eps, approx=approx_recip)
        return ln_a[idx:idx + 1, :] * ((v - mean) * inv) + ln_b[idx:idx + 1, :]

    q_scale = 1.0 / math.sqrt(d_k)

    def attend(q, k_all, v_all, wo_ref, Sk):
        # q: (R, D) f32; k_all / v_all: (bt*Sk, D) f32 (already projected).
        # Per-head PV results land in work_ref (VMEM scratch) instead of a
        # jnp.concatenate, then one full-D Wo matmul reads the scratch.
        qc = (q * q_scale).astype(cd)     # fold 1/sqrt(d_k) into q once
        kc = k_all.astype(cd)
        vc = v_all.astype(cd)
        for b in range(bt):               # static: one attention per batch row
            q0 = b * S
            k0 = b * Sk
            for h in range(num_heads):    # static unrolled head loop
                lo = h * d_k
                s = lax.dot_general(qc[q0:q0 + S, lo:lo + d_k],
                                    kc[k0:k0 + Sk, lo:lo + d_k],
                                    (((1,), (1,)), ((), ())),
                                    preferred_element_type=f32)     # (S, Sk)
                # NOTE: mask intentionally ignored (reference masked_fill is
                # not in-place, so it has no effect on the output).
                s = s - jnp.max(s, axis=-1, keepdims=True)
                p = jnp.exp(s)
                p = p * pl.reciprocal(jnp.sum(p, axis=-1, keepdims=True),
                                      approx=approx_recip)
                work_ref[q0:q0 + S, lo:lo + d_k] = jnp.dot(
                    p.astype(cd), vc[k0:k0 + Sk, lo:lo + d_k],
                    preferred_element_type=f32)
        return jnp.dot(work_ref[...].astype(cd), wo_ref[...],
                       preferred_element_type=f32)

    # ---- Residual 0: self-attention; fused QKV projection (one wide matmul).
    xn = layernorm(x, 0).astype(cd)
    qkv = jnp.dot(xn, self_wqkv_ref[...], preferred_element_type=f32)    # (R, 3D)
    x = x + attend(qkv[:, 0:D], qkv[:, D:2 * D], qkv[:, 2 * D:3 * D],
                   self_wo_ref, S)

    # ---- Residual 1: cross-attention; q from x, fused [K|V] projection of enc.
    xn = layernorm(x, 1).astype(cd)
    q = jnp.dot(xn, cross_wq_ref[...], preferred_element_type=f32)        # (R, D)
    kv = jnp.dot(enc, cross_wkv_ref[...], preferred_element_type=f32)     # (bt*Se, 2D)
    x = x + attend(q, kv[:, 0:D], kv[:, D:2 * D], cross_wo_ref, Se)

    # ---- Residual 2: feed-forward, streamed over d_ff chunks.  The (R, d_ff)
    #      hidden never fully materializes; partial products accumulate into
    #      the f32 VMEM scratch inside a fori_loop (bounded live ranges).
    xn = layernorm(x, 2).astype(cd)
    work_ref[...] = jnp.zeros_like(work_ref)
    n_chunks = d_ff // ff_chunk

    def ff_step(i, carry):
        c0 = i * ff_chunk
        if not isinstance(c0, int):
            c0 = pl.multiple_of(c0, ff_chunk)
        hid = jnp.dot(xn, w1_ref[:, pl.ds(c0, ff_chunk)],
                      preferred_element_type=f32) + b1_ref[:, pl.ds(c0, ff_chunk)]
        hid = jnp.maximum(hid, 0.0)
        work_ref[...] += jnp.dot(hid.astype(cd), w2_ref[pl.ds(c0, ff_chunk), :],
                                 preferred_element_type=f32)
        return carry

    if n_chunks == 1:
        ff_step(0, 0)                         # static path (no dynamic lane slice)
    else:
        lax.fori_loop(0, n_chunks, ff_step, 0)

    x = x + work_ref[...] + b2_ref[...]

    o_ref[...] = x.astype(o_ref.dtype)


def decoder_block(x, enc, params, *, num_heads, src_mask=None, tgt_mask=None,
                  compute_dtype=jnp.float32, ff_chunk=1024,
                  batch_rows_target=512):
    """Fused decoder block. Masks accepted for signature parity; unused (see note)."""
    del src_mask, tgt_mask   # reference bug: masked_fill result is discarded
    B, S, D = x.shape
    _, Se, _ = enc.shape
    d_ff = params["w1"].shape[1]
    d_k = D // num_heads
    cd = jnp.dtype(compute_dtype)
    approx_recip = bool(cd != jnp.dtype(jnp.float32))

    # ---- Batch tiling: fold as many batch rows as possible into the matmul M
    #      dimension (must divide B; blocks must respect the (8,128) rule).
    candidates = [c for c in range(1, B + 1)
                  if B % c == 0 and
                  (c == B or ((c * S) % 8 == 0 and (c * Se) % 8 == 0))]
    within = [c for c in candidates if c * S <= max(batch_rows_target, S)]
    bt = max(within) if within else min(candidates)
    grid = (B // bt,)
    # TODO(synk): when B//bt == 1 on v7x, a second "parallel" (query-tile) grid
    # axis is needed to occupy both TensorCores.

    # ---- FFN chunking: chunk must divide d_ff and be lane-aligned (128) when
    #      the dynamic-offset loop is used; otherwise run a single static chunk.
    if ff_chunk >= d_ff or d_ff % ff_chunk != 0 or ff_chunk % 128 != 0:
        ff_chunk = d_ff

    # ---- Wrapper-side weight prep: fuse projections, cast matmul weights to
    #      the compute dtype; biases / LN params stay f32 (post-accum adds).
    sw, cw = params["self_w"], params["cross_w"]
    self_wqkv = jnp.concatenate([sw[0], sw[1], sw[2]], axis=1).astype(cd)   # (D, 3D)
    self_wo = sw[3].astype(cd)                                              # (D, D)
    cross_wq = cw[0].astype(cd)                                             # (D, D)
    cross_wkv = jnp.concatenate([cw[1], cw[2]], axis=1).astype(cd)          # (D, 2D)
    cross_wo = cw[3].astype(cd)                                             # (D, D)
    w1 = params["w1"].astype(cd)
    w2 = params["w2"].astype(cd)
    b1 = params["b1"].astype(jnp.float32)
    b2 = params["b2"].astype(jnp.float32)
    ln_a = params["ln_alpha"].astype(jnp.float32)
    ln_b = params["ln_bias"].astype(jnp.float32)

    # ---- VMEM budget: weights single-buffered (Buffered(1)), activation blocks
    #      double-buffered, plus scratch + intermediates + headroom, capped
    #      below physical VMEM (v7x has 64 MiB / TC).
    w_bytes = (8 * D * D + 2 * D * d_ff) * cd.itemsize + (d_ff + 7 * D) * 4
    act_bytes = (2 * bt * S * D + bt * Se * D) * x.dtype.itemsize
    scratch_bytes = bt * S * D * 4
    inter_bytes = 4 * (bt * S * (8 * D) + bt * Se * 2 * D
                       + S * max(S, Se) + bt * S * min(d_ff, ff_chunk))
    limit = int(1.5 * (w_bytes + 2 * act_bytes + scratch_bytes + inter_bytes))
    limit = max(limit, 32 * 1024 * 1024)
    try:
        cap = int(pltpu.get_tpu_info().vmem_capacity_bytes)
    except Exception:
        cap = 64 * 1024 * 1024
    vmem_limit = int(min(limit, int(0.85 * cap)))

    # ---- Advisory cost estimate for XLA scheduling around the fused kernel.
    flops = (2 * B * S * (4 * D * D + 2 * D * D + 2 * D * d_ff)
             + 2 * B * Se * (2 * D * D)
             + 4 * B * num_heads * d_k * (S * S + S * Se))
    transcendentals = B * num_heads * (S * S + S * Se)
    bytes_accessed = int(w_bytes + (2 * B * S * D + B * Se * D) * x.dtype.itemsize)
    cost = pl.CostEstimate(flops=int(flops), transcendentals=int(transcendentals),
                           bytes_accessed=bytes_accessed)

    kernel = functools.partial(_decoder_block_kernel,
                               bt=bt, num_heads=num_heads, d_k=d_k, eps=1e-6,
                               compute_dtype=cd, ff_chunk=ff_chunk,
                               approx_recip=approx_recip)

    def _const_spec(shape):
        # Constant-index weight: single-buffer (no benefit from double-buffering).
        idx = lambda *_: (0,) * len(shape)
        try:
            return pl.BlockSpec(shape, idx, pipeline_mode=pl.Buffered(1))
        except (TypeError, AttributeError):
            return pl.BlockSpec(shape, idx)

    out2d = pl.pallas_call(
        kernel,
        out_shape=jax.ShapeDtypeStruct((B * S, D), x.dtype),
        grid_spec=pltpu.PrefetchScalarGridSpec(
            num_scalar_prefetch=0,
            grid=grid,
            in_specs=[
                pl.BlockSpec((bt * S, D), lambda i: (i, 0)),    # x rows (bt batches)
                pl.BlockSpec((bt * Se, D), lambda i: (i, 0)),   # encoder rows
                _const_spec((D, 3 * D)),      # self  [Wq|Wk|Wv] fused
                _const_spec((D, D)),          # self  Wo
                _const_spec((D, D)),          # cross Wq
                _const_spec((D, 2 * D)),      # cross [Wk|Wv] fused
                _const_spec((D, D)),          # cross Wo
                _const_spec((D, d_ff)),       # ffn W1 (in,out)
                _const_spec((1, d_ff)),       # ffn b1
                _const_spec((d_ff, D)),       # ffn W2 (in,out)
                _const_spec((1, D)),          # ffn b2
                _const_spec((3, D)),          # layernorm alphas (3 residuals)
                _const_spec((3, D)),          # layernorm biases  (3 residuals)
            ],
            out_specs=pl.BlockSpec((bt * S, D), lambda i: (i, 0)),
            scratch_shapes=[pltpu.VMEM((bt * S, D), jnp.float32)],
        ),
        compiler_params=pltpu.CompilerParams(
            dimension_semantics=("parallel",),
            vmem_limit_bytes=vmem_limit),
        cost_estimate=cost,
    )(x.reshape(B * S, D), enc.reshape(B * Se, D),
      self_wqkv, self_wo, cross_wq, cross_wkv, cross_wo,
      w1, b1, w2, b2, ln_a, ln_b)
    return out2d.reshape(B, S, D)


def _reference(x, enc, params, num_heads):
    """Pure-JAX reference mirroring the PyTorch forward (incl. unbiased std, no mask)."""
    D = x.shape[-1]
    d_k = D // num_heads

    def layernorm(v, idx):
        mean = jnp.mean(v, -1, keepdims=True)
        std = jnp.sqrt(jnp.sum((v - mean) ** 2, -1, keepdims=True) / (D - 1))
        return params["ln_alpha"][idx] * (v - mean) / (std + 1e-6) + params["ln_bias"][idx]

    def mha(qin, kvin, w):
        q, k, v = qin @ w[0], kvin @ w[1], kvin @ w[2]
        B, Sq, _ = q.shape
        Sk = k.shape[1]
        q = q.reshape(B, Sq, num_heads, d_k).transpose(0, 2, 1, 3)
        k = k.reshape(B, Sk, num_heads, d_k).transpose(0, 2, 1, 3)
        v = v.reshape(B, Sk, num_heads, d_k).transpose(0, 2, 1, 3)
        s = jnp.einsum("bhqd,bhkd->bhqk", q, k) / math.sqrt(d_k)
        p = jax.nn.softmax(s, axis=-1)
        o = jnp.einsum("bhqk,bhkd->bhqd", p, v).transpose(0, 2, 1, 3).reshape(B, Sq, D)
        return o @ w[3]

    xn = layernorm(x, 0); x = x + mha(xn, xn, params["self_w"])
    xn = layernorm(x, 1); x = x + mha(xn, enc, params["cross_w"])
    xn = layernorm(x, 2)
    ff = jnp.maximum(xn @ params["w1"] + params["b1"][0], 0.0) @ params["w2"] + params["b2"][0]
    return x + ff


if __name__ == "__main__":
    B, S, Se, D, H, d_ff = 2, 8, 8, 32, 4, 64
    key = jax.random.PRNGKey(0)
    ks = jax.random.split(key, 8)
    scale = 0.1
    params = {
        "self_w": jax.random.normal(ks[0], (4, D, D), jnp.float32) * scale,
        "cross_w": jax.random.normal(ks[1], (4, D, D), jnp.float32) * scale,
        "w1": jax.random.normal(ks[2], (D, d_ff), jnp.float32) * scale,
        "b1": jax.random.normal(ks[3], (1, d_ff), jnp.float32) * scale,
        "b2": jax.random.normal(ks[5], (1, D), jnp.float32) * scale,
        "w2": jax.random.normal(ks[4], (d_ff, D), jnp.float32) * scale,
        "ln_alpha": jnp.ones((3, D), jnp.float32),   # LayerNormalization.alpha = ones
        "ln_bias": jnp.ones((3, D), jnp.float32),    # LayerNormalization.bias = ones
    }
    x = jax.random.normal(ks[6], (B, S, D), jnp.float32)
    enc = jax.random.normal(ks[7], (B, Se, D), jnp.float32)

    # Exact-parity path (f32 compute) -- strict check against torch-equivalent ref.
    out = decoder_block(x, enc, params, num_heads=H)
    jax.block_until_ready(out)
    ref = _reference(x, enc, params, H)
    assert out.shape == (B, S, D) and out.dtype == jnp.float32
    err = float(jnp.max(jnp.abs(out - ref)))
    assert err < 1e-3, err

    # Performance path (bf16 MXU operands, f32 accumulation) -- relative check
    # against the f32 kernel output.
    out_bf16 = decoder_block(x, enc, params, num_heads=H, compute_dtype=jnp.bfloat16)
    jax.block_until_ready(out_bf16)
    assert out_bf16.shape == (B, S, D)
    assert bool(jnp.all(jnp.isfinite(out_bf16)))
    rel = float(jnp.max(jnp.abs(out_bf16 - out)) / (jnp.max(jnp.abs(out)) + 1e-6))
    assert rel < 0.1, rel

    print("KERNEL_OK")
</pallas_src>

<mosaic_0001>
module attributes {stable_mosaic.version = 11 : i64} {
  func.func @_decoder_block_kernel(%arg0: i32, %arg1: memref<16x32xf32, #tpu.memory_space<vmem>>, %arg2: memref<16x32xf32, #tpu.memory_space<vmem>>, %arg3: memref<32x96xf32, #tpu.memory_space<vmem>>, %arg4: memref<32x32xf32, #tpu.memory_space<vmem>>, %arg5: memref<32x32xf32, #tpu.memory_space<vmem>>, %arg6: memref<32x64xf32, #tpu.memory_space<vmem>>, %arg7: memref<32x32xf32, #tpu.memory_space<vmem>>, %arg8: memref<32x64xf32, #tpu.memory_space<vmem>>, %arg9: memref<1x64xf32, #tpu.memory_space<vmem>>, %arg10: memref<64x32xf32, #tpu.memory_space<vmem>>, %arg11: memref<1x32xf32, #tpu.memory_space<vmem>>, %arg12: memref<3x32xf32, #tpu.memory_space<vmem>>, %arg13: memref<3x32xf32, #tpu.memory_space<vmem>>, %arg14: memref<16x32xf32, #tpu.memory_space<vmem>>, %arg15: memref<16x32xf32, #tpu.memory_space<vmem>>) attributes {dimension_semantics = [#tpu.dimension_semantics<parallel>], iteration_bounds = array<i64: 1>, scalar_prefetch = 0 : i64, scratch_operands = 1 : i64, tpu.core_type = #tpu.core_type<tc>, window_params = [{transform_indices = @transform_0, window_bounds = array<i64: 16, 32>}, {transform_indices = @transform_1, window_bounds = array<i64: 16, 32>}, {pipeline_mode = #tpu.pipeline_mode<synchronous>, transform_indices = @transform_2, window_bounds = array<i64: 32, 96>}, {pipeline_mode = #tpu.pipeline_mode<synchronous>, transform_indices = @transform_3, window_bounds = array<i64: 32, 32>}, {pipeline_mode = #tpu.pipeline_mode<synchronous>, transform_indices = @transform_4, window_bounds = array<i64: 32, 32>}, {pipeline_mode = #tpu.pipeline_mode<synchronous>, transform_indices = @transform_5, window_bounds = array<i64: 32, 64>}, {pipeline_mode = #tpu.pipeline_mode<synchronous>, transform_indices = @transform_6, window_bounds = array<i64: 32, 32>}, {pipeline_mode = #tpu.pipeline_mode<synchronous>, transform_indices = @transform_7, window_bounds = array<i64: 32, 64>}, {pipeline_mode = #tpu.pipeline_mode<synchronous>, transform_indices = @transform_8, window_bounds = array<i64: 1, 64>}, {pipeline_mode = #tpu.pipeline_mode<synchronous>, transform_indices = @transform_9, window_bounds = array<i64: 64, 32>}, {pipeline_mode = #tpu.pipeline_mode<synchronous>, transform_indices = @transform_10, window_bounds = array<i64: 1, 32>}, {pipeline_mode = #tpu.pipeline_mode<synchronous>, transform_indices = @transform_11, window_bounds = array<i64: 3, 32>}, {pipeline_mode = #tpu.pipeline_mode<synchronous>, transform_indices = @transform_12, window_bounds = array<i64: 3, 32>}, {transform_indices = @transform_13, window_bounds = array<i64: 16, 32>}]} {
    %c0 = arith.constant 0 : index
    %c0_0 = arith.constant 0 : index
    %0 = vector.load %arg1[%c0, %c0_0] : memref<16x32xf32, #tpu.memory_space<vmem>>, vector<16x32xf32>
    %c0_1 = arith.constant 0 : index
    %c0_2 = arith.constant 0 : index
    %1 = vector.load %arg2[%c0_1, %c0_2] : memref<16x32xf32, #tpu.memory_space<vmem>>, vector<16x32xf32>
    %c0_3 = arith.constant 0 : index
    %c0_4 = arith.constant 0 : index
    %2 = vector.load %arg12[%c0_3, %c0_4] : memref<3x32xf32, #tpu.memory_space<vmem>>, vector<3x32xf32>
    %c0_5 = arith.constant 0 : index
    %c0_6 = arith.constant 0 : index
    %3 = vector.load %arg13[%c0_5, %c0_6] : memref<3x32xf32, #tpu.memory_space<vmem>>, vector<3x32xf32>
    %cst = arith.constant dense<0.000000e+00> : vector<16xf32>
    %4 = vector.multi_reduction <add>, %0, %cst [1] : vector<16x32xf32> to vector<16xf32>
    %5 = vector.shape_cast %4 : vector<16xf32> to vector<16x1xf32>
    %cst_7 = arith.constant 3.200000e+01 : f32
    %6 = vector.broadcast %cst_7 : f32 to vector<16x1xf32>
    %7 = arith.divf %5, %6 : vector<16x1xf32>
    %8 = vector.broadcast %7 : vector<16x1xf32> to vector<16x32xf32>
    %9 = arith.subf %0, %8 : vector<16x32xf32>
    %10 = arith.mulf %9, %9 : vector<16x32xf32>
    %cst_8 = arith.constant dense<0.000000e+00> : vector<16xf32>
    %11 = vector.multi_reduction <add>, %10, %cst_8 [1] : vector<16x32xf32> to vector<16xf32>
    %12 = vector.shape_cast %11 : vector<16xf32> to vector<16x1xf32>
    %cst_9 = arith.constant 0.0322580636 : f32
    %13 = vector.broadcast %cst_9 : f32 to vector<16x1xf32>
    %14 = arith.mulf %12, %13 : vector<16x1xf32>
    %15 = math.sqrt %14 : vector<16x1xf32>
    %cst_10 = arith.constant 9.99999997E-7 : f32
    %16 = vector.broadcast %cst_10 : f32 to vector<16x1xf32>
    %17 = arith.addf %15, %16 : vector<16x1xf32>
    %18 = tpu.reciprocal %17 : vector<16x1xf32> -> vector<16x1xf32>
    %19 = vector.extract_strided_slice %2 {offsets = [0, 0], sizes = [1, 32], strides = [1, 1]} : vector<3x32xf32> to vector<1x32xf32>
    %20 = vector.broadcast %7 : vector<16x1xf32> to vector<16x32xf32>
    %21 = arith.subf %0, %20 : vector<16x32xf32>
    %22 = vector.broadcast %18 : vector<16x1xf32> to vector<16x32xf32>
    %23 = arith.mulf %21, %22 : vector<16x32xf32>
    %24 = vector.broadcast %19 : vector<1x32xf32> to vector<16x32xf32>
    %25 = arith.mulf %24, %23 : vector<16x32xf32>
    %26 = vector.extract_strided_slice %3 {offsets = [0, 0], sizes = [1, 32], strides = [1, 1]} : vector<3x32xf32> to vector<1x32xf32>
    %27 = vector.broadcast %26 : vector<1x32xf32> to vector<16x32xf32>
    %28 = arith.addf %25, %27 : vector<16x32xf32>
    %c0_11 = arith.constant 0 : index
    %c0_12 = arith.constant 0 : index
    %29 = vector.load %arg3[%c0_11, %c0_12] : memref<32x96xf32, #tpu.memory_space<vmem>>, vector<32x96xf32>
    %cst_13 = arith.constant dense<0.000000e+00> : vector<16x96xf32>
    %30 = tpu.matmul %28, %29, %cst_13 {dimension_numbers = #tpu.dot_dimension_numbers<[1], [0], [0], [1], [0, 0, 1, 1], [], []>} : vector<16x32xf32>, vector<32x96xf32>, vector<16x96xf32> -> vector<16x96xf32>
    %31 = vector.extract_strided_slice %30 {offsets = [0, 0], sizes = [16, 32], strides = [1, 1]} : vector<16x96xf32> to vector<16x32xf32>
    %32 = vector.extract_strided_slice %30 {offsets = [0, 32], sizes = [16, 32], strides = [1, 1]} : vector<16x96xf32> to vector<16x32xf32>
    %33 = vector.extract_strided_slice %30 {offsets = [0, 64], sizes = [16, 32], strides = [1, 1]} : vector<16x96xf32> to vector<16x32xf32>
    %cst_14 = arith.constant 0.353553385 : f32
    %34 = vector.broadcast %cst_14 : f32 to vector<16x32xf32>
    %35 = arith.mulf %31, %34 : vector<16x32xf32>
    %36 = vector.extract_strided_slice %35 {offsets = [0, 0], sizes = [8, 8], strides = [1, 1]} : vector<16x32xf32> to vector<8x8xf32>
    %37 = vector.extract_strided_slice %32 {offsets = [0, 0], sizes = [8, 8], strides = [1, 1]} : vector<16x32xf32> to vector<8x8xf32>
    %cst_15 = arith.constant dense<0.000000e+00> : vector<8x8xf32>
    %38 = tpu.matmul %36, %37, %cst_15 {dimension_numbers = #tpu.dot_dimension_numbers<[1], [1], [0], [0], [0, 0, 1, 0], [], []>} : vector<8x8xf32>, vector<8x8xf32>, vector<8x8xf32> -> vector<8x8xf32>
    %cst_16 = arith.constant dense<0xFF800000> : vector<8xf32>
    %39 = vector.multi_reduction <maximumf>, %38, %cst_16 [1] : vector<8x8xf32> to vector<8xf32>
    %40 = vector.shape_cast %39 : vector<8xf32> to vector<8x1xf32>
    %41 = vector.broadcast %40 : vector<8x1xf32> to vector<8x8xf32>
    %42 = arith.subf %38, %41 : vector<8x8xf32>
    %43 = math.exp %42 : vector<8x8xf32>
    %cst_17 = arith.constant dense<0.000000e+00> : vector<8xf32>
    %44 = vector.multi_reduction <add>, %43, %cst_17 [1] : vector<8x8xf32> to vector<8xf32>
    %45 = vector.shape_cast %44 : vector<8xf32> to vector<8x1xf32>
    %46 = tpu.reciprocal %45 : vector<8x1xf32> -> vector<8x1xf32>
    %47 = vector.broadcast %46 : vector<8x1xf32> to vector<8x8xf32>
    %48 = arith.mulf %43, %47 : vector<8x8xf32>
    %49 = vector.extract_strided_slice %33 {offsets = [0, 0], sizes = [8, 8], strides = [1, 1]} : vector<16x32xf32> to vector<8x8xf32>
    %cst_18 = arith.constant dense<0.000000e+00> : vector<8x8xf32>
    %50 = tpu.matmul %48, %49, %cst_18 {dimension_numbers = #tpu.dot_dimension_numbers<[1], [0], [0], [1], [0, 0, 1, 1], [], []>} : vector<8x8xf32>, vector<8x8xf32>, vector<8x8xf32> -> vector<8x8xf32>
    %c0_19 = arith.constant 0 : index
    %c0_20 = arith.constant 0 : index
    %51 = vector.load %arg15[%c0_19, %c0_20] : memref<16x32xf32, #tpu.memory_space<vmem>>, vector<8x8xf32>
    tpu.vector_store %arg15[%c0_19, %c0_20], %50 {strides = array<i32>} : memref<16x32xf32, #tpu.memory_space<vmem>>, vector<8x8xf32>,
    %52 = vector.extract_strided_slice %35 {offsets = [0, 8], sizes = [8, 8], strides = [1, 1]} : vector<16x32xf32> to vector<8x8xf32>
    %53 = vector.extract_strided_slice %32 {offsets = [0, 8], sizes = [8, 8], strides = [1, 1]} : vector<16x32xf32> to vector<8x8xf32>
    %cst_21 = arith.constant dense<0.000000e+00> : vector<8x8xf32>
    %54 = tpu.matmul %52, %53, %cst_21 {dimension_numbers = #tpu.dot_dimension_numbers<[1], [1], [0], [0], [0, 0, 1, 0], [], []>} : vector<8x8xf32>, vector<8x8xf32>, vector<8x8xf32> -> vector<8x8xf32>
    %cst_22 = arith.constant dense<0xFF800000> : vector<8xf32>
    %55 = vector.multi_reduction <maximumf>, %54, %cst_22 [1] : vector<8x8xf32> to vector<8xf32>
    %56 = vector.shape_cast %55 : vector<8xf32> to vector<8x1xf32>
    %57 = vector.broadcast %56 : vector<8x1xf32> to vector<8x8xf32>
    %58 = arith.subf %54, %57 : vector<8x8xf32>
    %59 = math.exp %58 : vector<8x8xf32>
    %cst_23 = arith.constant dense<0.000000e+00> : vector<8xf32>
    %60 = vector.multi_reduction <add>, %59, %cst_23 [1] : vector<8x8xf32> to vector<8xf32>
    %61 = vector.shape_cast %60 : vector<8xf32> to vector<8x1xf32>
    %62 = tpu.reciprocal %61 : vector<8x1xf32> -> vector<8x1xf32>
    %63 = vector.broadcast %62 : vector<8x1xf32> to vector<8x8xf32>
    %64 = arith.mulf %59, %63 : vector<8x8xf32>
    %65 = vector.extract_strided_slice %33 {offsets = [0, 8], sizes = [8, 8], strides = [1, 1]} : vector<16x32xf32> to vector<8x8xf32>
    %cst_24 = arith.constant dense<0.000000e+00> : vector<8x8xf32>
    %66 = tpu.matmul %64, %65, %cst_24 {dimension_numbers = #tpu.dot_dimension_numbers<[1], [0], [0], [1], [0, 0, 1, 1], [], []>} : vector<8x8xf32>, vector<8x8xf32>, vector<8x8xf32> -> vector<8x8xf32>
    %c0_25 = arith.constant 0 : index
    %c8 = arith.constant 8 : index
    %67 = vector.load %arg15[%c0_25, %c8] : memref<16x32xf32, #tpu.memory_space<vmem>>, vector<8x8xf32>
    tpu.vector_store %arg15[%c0_25, %c8], %66 {strides = array<i32>} : memref<16x32xf32, #tpu.memory_space<vmem>>, vector<8x8xf32>,
    %68 = vector.extract_strided_slice %35 {offsets = [0, 16], sizes = [8, 8], strides = [1, 1]} : vector<16x32xf32> to vector<8x8xf32>
    %69 = vector.extract_strided_slice %32 {offsets = [0, 16], sizes = [8, 8], strides = [1, 1]} : vector<16x32xf32> to vector<8x8xf32>
    %cst_26 = arith.constant dense<0.000000e+00> : vector<8x8xf32>
    %70 = tpu.matmul %68, %69, %cst_26 {dimension_numbers = #tpu.dot_dimension_numbers<[1], [1], [0], [0], [0, 0, 1, 0], [], []>} : vector<8x8xf32>, vector<8x8xf32>, vector<8x8xf32> -> vector<8x8xf32>
    %cst_27 = arith.constant dense<0xFF800000> : vector<8xf32>
    %71 = vector.multi_reduction <maximumf>, %70, %cst_27 [1] : vector<8x8xf32> to vector<8xf32>
    %72 = vector.shape_cast %71 : vector<8xf32> to vector<8x1xf32>
    %73 = vector.broadcast %72 : vector<8x1xf32> to vector<8x8xf32>
    %74 = arith.subf %70, %73 : vector<8x8xf32>
    %75 = math.exp %74 : vector<8x8xf32>
    %cst_28 = arith.constant dense<0.000000e+00> : vector<8xf32>
    %76 = vector.multi_reduction <add>, %75, %cst_28 [1] : vector<8x8xf32> to vector<8xf32>
    %77 = vector.shape_cast %76 : vector<8xf32> to vector<8x1xf32>
    %78 = tpu.reciprocal %77 : vector<8x1xf32> -> vector<8x1xf32>
    %79 = vector.broadcast %78 : vector<8x1xf32> to vector<8x8xf32>
    %80 = arith.mulf %75, %79 : vector<8x8xf32>
    %81 = vector.extract_strided_slice %33 {offsets = [0, 16], sizes = [8, 8], strides = [1, 1]} : vector<16x32xf32> to vector<8x8xf32>
    %cst_29 = arith.constant dense<0.000000e+00> : vector<8x8xf32>
    %82 = tpu.matmul %80, %81, %cst_29 {dimension_numbers = #tpu.dot_dimension_numbers<[1], [0], [0], [1], [0, 0, 1, 1], [], []>} : vector<8x8xf32>, vector<8x8xf32>, vector<8x8xf32> -> vector<8x8xf32>
    %c0_30 = arith.constant 0 : index
    %c16 = arith.constant 16 : index
    %83 = vector.load %arg15[%c0_30, %c16] : memref<16x32xf32, #tpu.memory_space<vmem>>, vector<8x8xf32>
    tpu.vector_store %arg15[%c0_30, %c16], %82 {strides = array<i32>} : memref<16x32xf32, #tpu.memory_space<vmem>>, vector<8x8xf32>,
    %84 = vector.extract_strided_slice %35 {offsets = [0, 24], sizes = [8, 8], strides = [1, 1]} : vector<16x32xf32> to vector<8x8xf32>
    %85 = vector.extract_strided_slice %32 {offsets = [0, 24], sizes = [8, 8], strides = [1, 1]} : vector<16x32xf32> to vector<8x8xf32>
    %cst_31 = arith.constant dense<0.000000e+00> : vector<8x8xf32>
    %86 = tpu.matmul %84, %85, %cst_31 {dimension_numbers = #tpu.dot_dimension_numbers<[1], [1], [0], [0], [0, 0, 1, 0], [], []>} : vector<8x8xf32>, vector<8x8xf32>, vector<8x8xf32> -> vector<8x8xf32>
    %cst_32 = arith.constant dense<0xFF800000> : vector<8xf32>
    %87 = vector.multi_reduction <maximumf>, %86, %cst_32 [1] : vector<8x8xf32> to vector<8xf32>
    %88 = vector.shape_cast %87 : vector<8xf32> to vector<8x1xf32>
    %89 = vector.broadcast %88 : vector<8x1xf32> to vector<8x8xf32>
    %90 = arith.subf %86, %89 : vector<8x8xf32>
    %91 = math.exp %90 : vector<8x8xf32>
    %cst_33 = arith.constant dense<0.000000e+00> : vector<8xf32>
    %92 = vector.multi_reduction <add>, %91, %cst_33 [1] : vector<8x8xf32> to vector<8xf32>
    %93 = vector.shape_cast %92 : vector<8xf32> to vector<8x1xf32>
    %94 = tpu.reciprocal %93 : vector<8x1xf32> -> vector<8x1xf32>
    %95 = vector.broadcast %94 : vector<8x1xf32> to vector<8x8xf32>
    %96 = arith.mulf %91, %95 : vector<8x8xf32>
    %97 = vector.extract_strided_slice %33 {offsets = [0, 24], sizes = [8, 8], strides = [1, 1]} : vector<16x32xf32> to vector<8x8xf32>
    %cst_34 = arith.constant dense<0.000000e+00> : vector<8x8xf32>
    %98 = tpu.matmul %96, %97, %cst_34 {dimension_numbers = #tpu.dot_dimension_numbers<[1], [0], [0], [1], [0, 0, 1, 1], [], []>} : vector<8x8xf32>, vector<8x8xf32>, vector<8x8xf32> -> vector<8x8xf32>
    %c0_35 = arith.constant 0 : index
    %c24 = arith.constant 24 : index
    %99 = vector.load %arg15[%c0_35, %c24] : memref<16x32xf32, #tpu.memory_space<vmem>>, vector<8x8xf32>
    tpu.vector_store %arg15[%c0_35, %c24], %98 {strides = array<i32>} : memref<16x32xf32, #tpu.memory_space<vmem>>, vector<8x8xf32>,
    %100 = vector.extract_strided_slice %35 {offsets = [8, 0], sizes = [8, 8], strides = [1, 1]} : vector<16x32xf32> to vector<8x8xf32>
    %101 = vector.extract_strided_slice %32 {offsets = [8, 0], sizes = [8, 8], strides = [1, 1]} : vector<16x32xf32> to vector<8x8xf32>
    %cst_36 = arith.constant dense<0.000000e+00> : vector<8x8xf32>
    %102 = tpu.matmul %100, %101, %cst_36 {dimension_numbers = #tpu.dot_dimension_numbers<[1], [1], [0], [0], [0, 0, 1, 0], [], []>} : vector<8x8xf32>, vector<8x8xf32>, vector<8x8xf32> -> vector<8x8xf32>
    %cst_37 = arith.constant dense<0xFF800000> : vector<8xf32>
    %103 = vector.multi_reduction <maximumf>, %102, %cst_37 [1] : vector<8x8xf32> to vector<8xf32>
    %104 = vector.shape_cast %103 : vector<8xf32> to vector<8x1xf32>
    %105 = vector.broadcast %104 : vector<8x1xf32> to vector<8x8xf32>
    %106 = arith.subf %102, %105 : vector<8x8xf32>
    %107 = math.exp %106 : vector<8x8xf32>
    %cst_38 = arith.constant dense<0.000000e+00> : vector<8xf32>
    %108 = vector.multi_reduction <add>, %107, %cst_38 [1] : vector<8x8xf32> to vector<8xf32>
    %109 = vector.shape_cast %108 : vector<8xf32> to vector<8x1xf32>
    %110 = tpu.reciprocal %109 : vector<8x1xf32> -> vector<8x1xf32>
    %111 = vector.broadcast %110 : vector<8x1xf32> to vector<8x8xf32>
    %112 = arith.mulf %107, %111 : vector<8x8xf32>
    %113 = vector.extract_strided_slice %33 {offsets = [8, 0], sizes = [8, 8], strides = [1, 1]} : vector<16x32xf32> to vector<8x8xf32>
    %cst_39 = arith.constant dense<0.000000e+00> : vector<8x8xf32>
    %114 = tpu.matmul %112, %113, %cst_39 {dimension_numbers = #tpu.dot_dimension_numbers<[1], [0], [0], [1], [0, 0, 1, 1], [], []>} : vector<8x8xf32>, vector<8x8xf32>, vector<8x8xf32> -> vector<8x8xf32>
    %c8_40 = arith.constant 8 : index
    %c0_41 = arith.constant 0 : index
    %115 = vector.load %arg15[%c8_40, %c0_41] : memref<16x32xf32, #tpu.memory_space<vmem>>, vector<8x8xf32>
    tpu.vector_store %arg15[%c8_40, %c0_41], %114 {strides = array<i32>} : memref<16x32xf32, #tpu.memory_space<vmem>>, vector<8x8xf32>,
    %116 = vector.extract_strided_slice %35 {offsets = [8, 8], sizes = [8, 8], strides = [1, 1]} : vector<16x32xf32> to vector<8x8xf32>
    %117 = vector.extract_strided_slice %32 {offsets = [8, 8], sizes = [8, 8], strides = [1, 1]} : vector<16x32xf32> to vector<8x8xf32>
    %cst_42 = arith.constant dense<0.000000e+00> : vector<8x8xf32>
    %118 = tpu.matmul %116, %117, %cst_42 {dimension_numbers = #tpu.dot_dimension_numbers<[1], [1], [0], [0], [0, 0, 1, 0], [], []>} : vector<8x8xf32>, vector<8x8xf32>, vector<8x8xf32> -> vector<8x8xf32>
    %cst_43 = arith.constant dense<0xFF800000> : vector<8xf32>
    %119 = vector.multi_reduction <maximumf>, %118, %cst_43 [1] : vector<8x8xf32> to vector<8xf32>
    %120 = vector.shape_cast %119 : vector<8xf32> to vector<8x1xf32>
    %121 = vector.broadcast %120 : vector<8x1xf32> to vector<8x8xf32>
    %122 = arith.subf %118, %121 : vector<8x8xf32>
    %123 = math.exp %122 : vector<8x8xf32>
    %cst_44 = arith.constant dense<0.000000e+00> : vector<8xf32>
    %124 = vector.multi_reduction <add>, %123, %cst_44 [1] : vector<8x8xf32> to vector<8xf32>
    %125 = vector.shape_cast %124 : vector<8xf32> to vector<8x1xf32>
    %126 = tpu.reciprocal %125 : vector<8x1xf32> -> vector<8x1xf32>
    %127 = vector.broadcast %126 : vector<8x1xf32> to vector<8x8xf32>
    %128 = arith.mulf %123, %127 : vector<8x8xf32>
    %129 = vector.extract_strided_slice %33 {offsets = [8, 8], sizes = [8, 8], strides = [1, 1]} : vector<16x32xf32> to vector<8x8xf32>
    %cst_45 = arith.constant dense<0.000000e+00> : vector<8x8xf32>
    %130 = tpu.matmul %128, %129, %cst_45 {dimension_numbers = #tpu.dot_dimension_numbers<[1], [0], [0], [1], [0, 0, 1, 1], [], []>} : vector<8x8xf32>, vector<8x8xf32>, vector<8x8xf32> -> vector<8x8xf32>
    %c8_46 = arith.constant 8 : index
    %c8_47 = arith.constant 8 : index
    %131 = vector.load %arg15[%c8_46, %c8_47] : memref<16x32xf32, #tpu.memory_space<vmem>>, vector<8x8xf32>
    tpu.vector_store %arg15[%c8_46, %c8_47], %130 {strides = array<i32>} : memref<16x32xf32, #tpu.memory_space<vmem>>, vector<8x8xf32>,
    %132 = vector.extract_strided_slice %35 {offsets = [8, 16], sizes = [8, 8], strides = [1, 1]} : vector<16x32xf32> to vector<8x8xf32>
    %133 = vector.extract_strided_slice %32 {offsets = [8, 16], sizes = [8, 8], strides = [1, 1]} : vector<16x32xf32> to vector<8x8xf32>
    %cst_48 = arith.constant dense<0.000000e+00> : vector<8x8xf32>
    %134 = tpu.matmul %132, %133, %cst_48 {dimension_numbers = #tpu.dot_dimension_numbers<[1], [1], [0], [0], [0, 0, 1, 0], [], []>} : vector<8x8xf32>, vector<8x8xf32>, vector<8x8xf32> -> vector<8x8xf32>
    %cst_49 = arith.constant dense<0xFF800000> : vector<8xf32>
    %135 = vector.multi_reduction <maximumf>, %134, %cst_49 [1] : vector<8x8xf32> to vector<8xf32>
    %136 = vector.shape_cast %135 : vector<8xf32> to vector<8x1xf32>
    %137 = vector.broadcast %136 : vector<8x1xf32> to vector<8x8xf32>
    %138 = arith.subf %134, %137 : vector<8x8xf32>
    %139 = math.exp %138 : vector<8x8xf32>
    %cst_50 = arith.constant dense<0.000000e+00> : vector<8xf32>
    %140 = vector.multi_reduction <add>, %139, %cst_50 [1] : vector<8x8xf32> to vector<8xf32>
    %141 = vector.shape_cast %140 : vector<8xf32> to vector<8x1xf32>
    %142 = tpu.reciprocal %141 : vector<8x1xf32> -> vector<8x1xf32>
    %143 = vector.broadcast %142 : vector<8x1xf32> to vector<8x8xf32>
    %144 = arith.mulf %139, %143 : vector<8x8xf32>
    %145 = vector.extract_strided_slice %33 {offsets = [8, 16], sizes = [8, 8], strides = [1, 1]} : vector<16x32xf32> to vector<8x8xf32>
    %cst_51 = arith.constant dense<0.000000e+00> : vector<8x8xf32>
    %146 = tpu.matmul %144, %145, %cst_51 {dimension_numbers = #tpu.dot_dimension_numbers<[1], [0], [0], [1], [0, 0, 1, 1], [], []>} : vector<8x8xf32>, vector<8x8xf32>, vector<8x8xf32> -> vector<8x8xf32>
    %c8_52 = arith.constant 8 : index
    %c16_53 = arith.constant 16 : index
    %147 = vector.load %arg15[%c8_52, %c16_53] : memref<16x32xf32, #tpu.memory_space<vmem>>, vector<8x8xf32>
    tpu.vector_store %arg15[%c8_52, %c16_53], %146 {strides = array<i32>} : memref<16x32xf32, #tpu.memory_space<vmem>>, vector<8x8xf32>,
    %148 = vector.extract_strided_slice %35 {offsets = [8, 24], sizes = [8, 8], strides = [1, 1]} : vector<16x32xf32> to vector<8x8xf32>
    %149 = vector.extract_strided_slice %32 {offsets = [8, 24], sizes = [8, 8], strides = [1, 1]} : vector<16x32xf32> to vector<8x8xf32>
    %cst_54 = arith.constant dense<0.000000e+00> : vector<8x8xf32>
    %150 = tpu.matmul %148, %149, %cst_54 {dimension_numbers = #tpu.dot_dimension_numbers<[1], [1], [0], [0], [0, 0, 1, 0], [], []>} : vector<8x8xf32>, vector<8x8xf32>, vector<8x8xf32> -> vector<8x8xf32>
    %cst_55 = arith.constant dense<0xFF800000> : vector<8xf32>
    %151 = vector.multi_reduction <maximumf>, %150, %cst_55 [1] : vector<8x8xf32> to vector<8xf32>
    %152 = vector.shape_cast %151 : vector<8xf32> to vector<8x1xf32>
    %153 = vector.broadcast %152 : vector<8x1xf32> to vector<8x8xf32>
    %154 = arith.subf %150, %153 : vector<8x8xf32>
    %155 = math.exp %154 : vector<8x8xf32>
    %cst_56 = arith.constant dense<0.000000e+00> : vector<8xf32>
    %156 = vector.multi_reduction <add>, %155, %cst_56 [1] : vector<8x8xf32> to vector<8xf32>
    %157 = vector.shape_cast %156 : vector<8xf32> to vector<8x1xf32>
    %158 = tpu.reciprocal %157 : vector<8x1xf32> -> vector<8x1xf32>
    %159 = vector.broadcast %158 : vector<8x1xf32> to vector<8x8xf32>
    %160 = arith.mulf %155, %159 : vector<8x8xf32>
    %161 = vector.extract_strided_slice %33 {offsets = [8, 24], sizes = [8, 8], strides = [1, 1]} : vector<16x32xf32> to vector<8x8xf32>
    %cst_57 = arith.constant dense<0.000000e+00> : vector<8x8xf32>
    %162 = tpu.matmul %160, %161, %cst_57 {dimension_numbers = #tpu.dot_dimension_numbers<[1], [0], [0], [1], [0, 0, 1, 1], [], []>} : vector<8x8xf32>, vector<8x8xf32>, vector<8x8xf32> -> vector<8x8xf32>
    %c8_58 = arith.constant 8 : index
    %c24_59 = arith.constant 24 : index
    %163 = vector.load %arg15[%c8_58, %c24_59] : memref<16x32xf32, #tpu.memory_space<vmem>>, vector<8x8xf32>
    tpu.vector_store %arg15[%c8_58, %c24_59], %162 {strides = array<i32>} : memref<16x32xf32, #tpu.memory_space<vmem>>, vector<8x8xf32>,
    %c0_60 = arith.constant 0 : index
    %c0_61 = arith.constant 0 : index
    %164 = vector.load %arg15[%c0_60, %c0_61] : memref<16x32xf32, #tpu.memory_space<vmem>>, vector<16x32xf32>
    %c0_62 = arith.constant 0 : index
    %c0_63 = arith.constant 0 : index
    %165 = vector.load %arg4[%c0_62, %c0_63] : memref<32x32xf32, #tpu.memory_space<vmem>>, vector<32x32xf32>
    %cst_64 = arith.constant dense<0.000000e+00> : vector<16x32xf32>
    %166 = tpu.matmul %164, %165, %cst_64 {dimension_numbers = #tpu.dot_dimension_numbers<[1], [0], [0], [1], [0, 0, 1, 1], [], []>} : vector<16x32xf32>, vector<32x32xf32>, vector<16x32xf32> -> vector<16x32xf32>
    %167 = arith.addf %0, %166 : vector<16x32xf32>
    %cst_65 = arith.constant dense<0.000000e+00> : vector<16xf32>
    %168 = vector.multi_reduction <add>, %167, %cst_65 [1] : vector<16x32xf32> to vector<16xf32>
    %169 = vector.shape_cast %168 : vector<16xf32> to vector<16x1xf32>
    %cst_66 = arith.constant 3.200000e+01 : f32
    %170 = vector.broadcast %cst_66 : f32 to vector<16x1xf32>
    %171 = arith.divf %169, %170 : vector<16x1xf32>
    %172 = vector.broadcast %171 : vector<16x1xf32> to vector<16x32xf32>
    %173 = arith.subf %167, %172 : vector<16x32xf32>
    %174 = arith.mulf %173, %173 : vector<16x32xf32>
    %cst_67 = arith.constant dense<0.000000e+00> : vector<16xf32>
    %175 = vector.multi_reduction <add>, %174, %cst_67 [1] : vector<16x32xf32> to vector<16xf32>
    %176 = vector.shape_cast %175 : vector<16xf32> to vector<16x1xf32>
    %cst_68 = arith.constant 0.0322580636 : f32
    %177 = vector.broadcast %cst_68 : f32 to vector<16x1xf32>
    %178 = arith.mulf %176, %177 : vector<16x1xf32>
    %179 = math.sqrt %178 : vector<16x1xf32>
    %cst_69 = arith.constant 9.99999997E-7 : f32
    %180 = vector.broadcast %cst_69 : f32 to vector<16x1xf32>
    %181 = arith.addf %179, %180 : vector<16x1xf32>
    %182 = tpu.reciprocal %181 : vector<16x1xf32> -> vector<16x1xf32>
    %183 = vector.extract_strided_slice %2 {offsets = [1, 0], sizes = [1, 32], strides = [1, 1]} : vector<3x32xf32> to vector<1x32xf32>
    %184 = vector.broadcast %171 : vector<16x1xf32> to vector<16x32xf32>
    %185 = arith.subf %167, %184 : vector<16x32xf32>
    %186 = vector.broadcast %182 : vector<16x1xf32> to vector<16x32xf32>
    %187 = arith.mulf %185, %186 : vector<16x32xf32>
    %188 = vector.broadcast %183 : vector<1x32xf32> to vector<16x32xf32>
    %189 = arith.mulf %188, %187 : vector<16x32xf32>
    %190 = vector.extract_strided_slice %3 {offsets = [1, 0], sizes = [1, 32], strides = [1, 1]} : vector<3x32xf32> to vector<1x32xf32>
    %191 = vector.broadcast %190 : vector<1x32xf32> to vector<16x32xf32>
    %192 = arith.addf %189, %191 : vector<16x32xf32>
    %c0_70 = arith.constant 0 : index
    %c0_71 = arith.constant 0 : index
    %193 = vector.load %arg5[%c0_70, %c0_71] : memref<32x32xf32, #tpu.memory_space<vmem>>, vector<32x32xf32>
    %cst_72 = arith.constant dense<0.000000e+00> : vector<16x32xf32>
    %194 = tpu.matmul %192, %193, %cst_72 {dimension_numbers = #tpu.dot_dimension_numbers<[1], [0], [0], [1], [0, 0, 1, 1], [], []>} : vector<16x32xf32>, vector<32x32xf32>, vector<16x32xf32> -> vector<16x32xf32>
    %c0_73 = arith.constant 0 : index
    %c0_74 = arith.constant 0 : index
    %195 = vector.load %arg6[%c0_73, %c0_74] : memref<32x64xf32, #tpu.memory_space<vmem>>, vector<32x64xf32>
    %cst_75 = arith.constant dense<0.000000e+00> : vector<16x64xf32>
    %196 = tpu.matmul %1, %195, %cst_75 {dimension_numbers = #tpu.dot_dimension_numbers<[1], [0], [0], [1], [0, 0, 1, 1], [], []>} : vector<16x32xf32>, vector<32x64xf32>, vector<16x64xf32> -> vector<16x64xf32>
    %197 = vector.extract_strided_slice %196 {offsets = [0, 0], sizes = [16, 32], strides = [1, 1]} : vector<16x64xf32> to vector<16x32xf32>
    %198 = vector.extract_strided_slice %196 {offsets = [0, 32], sizes = [16, 32], strides = [1, 1]} : vector<16x64xf32> to vector<16x32xf32>
    %cst_76 = arith.constant 0.353553385 : f32
    %199 = vector.broadcast %cst_76 : f32 to vector<16x32xf32>
    %200 = arith.mulf %194, %199 : vector<16x32xf32>
    %201 = vector.extract_strided_slice %200 {offsets = [0, 0], sizes = [8, 8], strides = [1, 1]} : vector<16x32xf32> to vector<8x8xf32>
    %202 = vector.extract_strided_slice %197 {offsets = [0, 0], sizes = [8, 8], strides = [1, 1]} : vector<16x32xf32> to vector<8x8xf32>
    %cst_77 = arith.constant dense<0.000000e+00> : vector<8x8xf32>
    %203 = tpu.matmul %201, %202, %cst_77 {dimension_numbers = #tpu.dot_dimension_numbers<[1], [1], [0], [0], [0, 0, 1, 0], [], []>} : vector<8x8xf32>, vector<8x8xf32>, vector<8x8xf32> -> vector<8x8xf32>
    %cst_78 = arith.constant dense<0xFF800000> : vector<8xf32>
    %204 = vector.multi_reduction <maximumf>, %203, %cst_78 [1] : vector<8x8xf32> to vector<8xf32>
    %205 = vector.shape_cast %204 : vector<8xf32> to vector<8x1xf32>
    %206 = vector.broadcast %205 : vector<8x1xf32> to vector<8x8xf32>
    %207 = arith.subf %203, %206 : vector<8x8xf32>
    %208 = math.exp %207 : vector<8x8xf32>
    %cst_79 = arith.constant dense<0.000000e+00> : vector<8xf32>
    %209 = vector.multi_reduction <add>, %208, %cst_79 [1] : vector<8x8xf32> to vector<8xf32>
    %210 = vector.shape_cast %209 : vector<8xf32> to vector<8x1xf32>
    %211 = tpu.reciprocal %210 : vector<8x1xf32> -> vector<8x1xf32>
    %212 = vector.broadcast %211 : vector<8x1xf32> to vector<8x8xf32>
    %213 = arith.mulf %208, %212 : vector<8x8xf32>
    %214 = vector.extract_strided_slice %198 {offsets = [0, 0], sizes = [8, 8], strides = [1, 1]} : vector<16x32xf32> to vector<8x8xf32>
    %cst_80 = arith.constant dense<0.000000e+00> : vector<8x8xf32>
    %215 = tpu.matmul %213, %214, %cst_80 {dimension_numbers = #tpu.dot_dimension_numbers<[1], [0], [0], [1], [0, 0, 1, 1], [], []>} : vector<8x8xf32>, vector<8x8xf32>, vector<8x8xf32> -> vector<8x8xf32>
    %c0_81 = arith.constant 0 : index
    %c0_82 = arith.constant 0 : index
    %216 = vector.load %arg15[%c0_81, %c0_82] : memref<16x32xf32, #tpu.memory_space<vmem>>, vector<8x8xf32>
    tpu.vector_store %arg15[%c0_81, %c0_82], %215 {strides = array<i32>} : memref<16x32xf32, #tpu.memory_space<vmem>>, vector<8x8xf32>,
    %217 = vector.extract_strided_slice %200 {offsets = [0, 8], sizes = [8, 8], strides = [1, 1]} : vector<16x32xf32> to vector<8x8xf32>
    %218 = vector.extract_strided_slice %197 {offsets = [0, 8], sizes = [8, 8], strides = [1, 1]} : vector<16x32xf32> to vector<8x8xf32>
    %cst_83 = arith.constant dense<0.000000e+00> : vector<8x8xf32>
    %219 = tpu.matmul %217, %218, %cst_83 {dimension_numbers = #tpu.dot_dimension_numbers<[1], [1], [0], [0], [0, 0, 1, 0], [], []>} : vector<8x8xf32>, vector<8x8xf32>, vector<8x8xf32> -> vector<8x8xf32>
    %cst_84 = arith.constant dense<0xFF800000> : vector<8xf32>
    %220 = vector.multi_reduction <maximumf>, %219, %cst_84 [1] : vector<8x8xf32> to vector<8xf32>
    %221 = vector.shape_cast %220 : vector<8xf32> to vector<8x1xf32>
    %222 = vector.broadcast %221 : vector<8x1xf32> to vector<8x8xf32>
    %223 = arith.subf %219, %222 : vector<8x8xf32>
    %224 = math.exp %223 : vector<8x8xf32>
    %cst_85 = arith.constant dense<0.000000e+00> : vector<8xf32>
    %225 = vector.multi_reduction <add>, %224, %cst_85 [1] : vector<8x8xf32> to vector<8xf32>
    %226 = vector.shape_cast %225 : vector<8xf32> to vector<8x1xf32>
    %227 = tpu.reciprocal %226 : vector<8x1xf32> -> vector<8x1xf32>
    %228 = vector.broadcast %227 : vector<8x1xf32> to vector<8x8xf32>
    %229 = arith.mulf %224, %228 : vector<8x8xf32>
    %230 = vector.extract_strided_slice %198 {offsets = [0, 8], sizes = [8, 8], strides = [1, 1]} : vector<16x32xf32> to vector<8x8xf32>
    %cst_86 = arith.constant dense<0.000000e+00> : vector<8x8xf32>
    %231 = tpu.matmul %229, %230, %cst_86 {dimension_numbers = #tpu.dot_dimension_numbers<[1], [0], [0], [1], [0, 0, 1, 1], [], []>} : vector<8x8xf32>, vector<8x8xf32>, vector<8x8xf32> -> vector<8x8xf32>
    %c0_87 = arith.constant 0 : index
    %c8_88 = arith.constant 8 : index
    %232 = vector.load %arg15[%c0_87, %c8_88] : memref<16x32xf32, #tpu.memory_space<vmem>>, vector<8x8xf32>
    tpu.vector_store %arg15[%c0_87, %c8_88], %231 {strides = array<i32>} : memref<16x32xf32, #tpu.memory_space<vmem>>, vector<8x8xf32>,
    %233 = vector.extract_strided_slice %200 {offsets = [0, 16], sizes = [8, 8], strides = [1, 1]} : vector<16x32xf32> to vector<8x8xf32>
    %234 = vector.extract_strided_slice %197 {offsets = [0, 16], sizes = [8, 8], strides = [1, 1]} : vector<16x32xf32> to vector<8x8xf32>
    %cst_89 = arith.constant dense<0.000000e+00> : vector<8x8xf32>
    %235 = tpu.matmul %233, %234, %cst_89 {dimension_numbers = #tpu.dot_dimension_numbers<[1], [1], [0], [0], [0, 0, 1, 0], [], []>} : vector<8x8xf32>, vector<8x8xf32>, vector<8x8xf32> -> vector<8x8xf32>
    %cst_90 = arith.constant dense<0xFF800000> : vector<8xf32>
    %236 = vector.multi_reduction <maximumf>, %235, %cst_90 [1] : vector<8x8xf32> to vector<8xf32>
    %237 = vector.shape_cast %236 : vector<8xf32> to vector<8x1xf32>
    %238 = vector.broadcast %237 : vector<8x1xf32> to vector<8x8xf32>
    %239 = arith.subf %235, %238 : vector<8x8xf32>
    %240 = math.exp %239 : vector<8x8xf32>
    %cst_91 = arith.constant dense<0.000000e+00> : vector<8xf32>
    %241 = vector.multi_reduction <add>, %240, %cst_91 [1] : vector<8x8xf32> to vector<8xf32>
    %242 = vector.shape_cast %241 : vector<8xf32> to vector<8x1xf32>
    %243 = tpu.reciprocal %242 : vector<8x1xf32> -> vector<8x1xf32>
    %244 = vector.broadcast %243 : vector<8x1xf32> to vector<8x8xf32>
    %245 = arith.mulf %240, %244 : vector<8x8xf32>
    %246 = vector.extract_strided_slice %198 {offsets = [0, 16], sizes = [8, 8], strides = [1, 1]} : vector<16x32xf32> to vector<8x8xf32>
    %cst_92 = arith.constant dense<0.000000e+00> : vector<8x8xf32>
    %247 = tpu.matmul %245, %246, %cst_92 {dimension_numbers = #tpu.dot_dimension_numbers<[1], [0], [0], [1], [0, 0, 1, 1], [], []>} : vector<8x8xf32>, vector<8x8xf32>, vector<8x8xf32> -> vector<8x8xf32>
    %c0_93 = arith.constant 0 : index
    %c16_94 = arith.constant 16 : index
    %248 = vector.load %arg15[%c0_93, %c16_94] : memref<16x32xf32, #tpu.memory_space<vmem>>, vector<8x8xf32>
    tpu.vector_store %arg15[%c0_93, %c16_94], %247 {strides = array<i32>} : memref<16x32xf32, #tpu.memory_space<vmem>>, vector<8x8xf32>,
    %249 = vector.extract_strided_slice %200 {offsets = [0, 24], sizes = [8, 8], strides = [1, 1]} : vector<16x32xf32> to vector<8x8xf32>
    %250 = vector.extract_strided_slice %197 {offsets = [0, 24], sizes = [8, 8], strides = [1, 1]} : vector<16x32xf32> to vector<8x8xf32>
    %cst_95 = arith.constant dense<0.000000e+00> : vector<8x8xf32>
    %251 = tpu.matmul %249, %250, %cst_95 {dimension_numbers = #tpu.dot_dimension_numbers<[1], [1], [0], [0], [0, 0, 1, 0], [], []>} : vector<8x8xf32>, vector<8x8xf32>, vector<8x8xf32> -> vector<8x8xf32>
    %cst_96 = arith.constant dense<0xFF800000> : vector<8xf32>
    %252 = vector.multi_reduction <maximumf>, %251, %cst_96 [1] : vector<8x8xf32> to vector<8xf32>
    %253 = vector.shape_cast %252 : vector<8xf32> to vector<8x1xf32>
    %254 = vector.broadcast %253 : vector<8x1xf32> to vector<8x8xf32>
    %255 = arith.subf %251, %254 : vector<8x8xf32>
    %256 = math.exp %255 : vector<8x8xf32>
    %cst_97 = arith.constant dense<0.000000e+00> : vector<8xf32>
    %257 = vector.multi_reduction <add>, %256, %cst_97 [1] : vector<8x8xf32> to vector<8xf32>
    %258 = vector.shape_cast %257 : vector<8xf32> to vector<8x1xf32>
    %259 = tpu.reciprocal %258 : vector<8x1xf32> -> vector<8x1xf32>
    %260 = vector.broadcast %259 : vector<8x1xf32> to vector<8x8xf32>
    %261 = arith.mulf %256, %260 : vector<8x8xf32>
    %262 = vector.extract_strided_slice %198 {offsets = [0, 24], sizes = [8, 8], strides = [1, 1]} : vector<16x32xf32> to vector<8x8xf32>
    %cst_98 = arith.constant dense<0.000000e+00> : vector<8x8xf32>
    %263 = tpu.matmul %261, %262, %cst_98 {dimension_numbers = #tpu.dot_dimension_numbers<[1], [0], [0], [1], [0, 0, 1, 1], [], []>} : vector<8x8xf32>, vector<8x8xf32>, vector<8x8xf32> -> vector<8x8xf32>
    %c0_99 = arith.constant 0 : index
    %c24_100 = arith.constant 24 : index
    %264 = vector.load %arg15[%c0_99, %c24_100] : memref<16x32xf32, #tpu.memory_space<vmem>>, vector<8x8xf32>
    tpu.vector_store %arg15[%c0_99, %c24_100], %263 {strides = array<i32>} : memref<16x32xf32, #tpu.memory_space<vmem>>, vector<8x8xf32>,
    %265 = vector.extract_strided_slice %200 {offsets = [8, 0], sizes = [8, 8], strides = [1, 1]} : vector<16x32xf32> to vector<8x8xf32>
    %266 = vector.extract_strided_slice %197 {offsets = [8, 0], sizes = [8, 8], strides = [1, 1]} : vector<16x32xf32> to vector<8x8xf32>
    %cst_101 = arith.constant dense<0.000000e+00> : vector<8x8xf32>
    %267 = tpu.matmul %265, %266, %cst_101 {dimension_numbers = #tpu.dot_dimension_numbers<[1], [1], [0], [0], [0, 0, 1, 0], [], []>} : vector<8x8xf32>, vector<8x8xf32>, vector<8x8xf32> -> vector<8x8xf32>
    %cst_102 = arith.constant dense<0xFF800000> : vector<8xf32>
    %268 = vector.multi_reduction <maximumf>, %267, %cst_102 [1] : vector<8x8xf32> to vector<8xf32>
    %269 = vector.shape_cast %268 : vector<8xf32> to vector<8x1xf32>
    %270 = vector.broadcast %269 : vector<8x1xf32> to vector<8x8xf32>
    %271 = arith.subf %267, %270 : vector<8x8xf32>
    %272 = math.exp %271 : vector<8x8xf32>
    %cst_103 = arith.constant dense<0.000000e+00> : vector<8xf32>
    %273 = vector.multi_reduction <add>, %272, %cst_103 [1] : vector<8x8xf32> to vector<8xf32>
    %274 = vector.shape_cast %273 : vector<8xf32> to vector<8x1xf32>
    %275 = tpu.reciprocal %274 : vector<8x1xf32> -> vector<8x1xf32>
    %276 = vector.broadcast %275 : vector<8x1xf32> to vector<8x8xf32>
    %277 = arith.mulf %272, %276 : vector<8x8xf32>
    %278 = vector.extract_strided_slice %198 {offsets = [8, 0], sizes = [8, 8], strides = [1, 1]} : vector<16x32xf32> to vector<8x8xf32>
    %cst_104 = arith.constant dense<0.000000e+00> : vector<8x8xf32>
    %279 = tpu.matmul %277, %278, %cst_104 {dimension_numbers = #tpu.dot_dimension_numbers<[1], [0], [0], [1], [0, 0, 1, 1], [], []>} : vector<8x8xf32>, vector<8x8xf32>, vector<8x8xf32> -> vector<8x8xf32>
    %c8_105 = arith.constant 8 : index
    %c0_106 = arith.constant 0 : index
    %280 = vector.load %arg15[%c8_105, %c0_106] : memref<16x32xf32, #tpu.memory_space<vmem>>, vector<8x8xf32>
    tpu.vector_store %arg15[%c8_105, %c0_106], %279 {strides = array<i32>} : memref<16x32xf32, #tpu.memory_space<vmem>>, vector<8x8xf32>,
    %281 = vector.extract_strided_slice %200 {offsets = [8, 8], sizes = [8, 8], strides = [1, 1]} : vector<16x32xf32> to vector<8x8xf32>
    %282 = vector.extract_strided_slice %197 {offsets = [8, 8], sizes = [8, 8], strides = [1, 1]} : vector<16x32xf32> to vector<8x8xf32>
    %cst_107 = arith.constant dense<0.000000e+00> : vector<8x8xf32>
    %283 = tpu.matmul %281, %282, %cst_107 {dimension_numbers = #tpu.dot_dimension_numbers<[1], [1], [0], [0], [0, 0, 1, 0], [], []>} : vector<8x8xf32>, vector<8x8xf32>, vector<8x8xf32> -> vector<8x8xf32>
    %cst_108 = arith.constant dense<0xFF800000> : vector<8xf32>
    %284 = vector.multi_reduction <maximumf>, %283, %cst_108 [1] : vector<8x8xf32> to vector<8xf32>
    %285 = vector.shape_cast %284 : vector<8xf32> to vector<8x1xf32>
    %286 = vector.broadcast %285 : vector<8x1xf32> to vector<8x8xf32>
    %287 = arith.subf %283, %286 : vector<8x8xf32>
    %288 = math.exp %287 : vector<8x8xf32>
    %cst_109 = arith.constant dense<0.000000e+00> : vector<8xf32>
    %289 = vector.multi_reduction <add>, %288, %cst_109 [1] : vector<8x8xf32> to vector<8xf32>
    %290 = vector.shape_cast %289 : vector<8xf32> to vector<8x1xf32>
    %291 = tpu.reciprocal %290 : vector<8x1xf32> -> vector<8x1xf32>
    %292 = vector.broadcast %291 : vector<8x1xf32> to vector<8x8xf32>
    %293 = arith.mulf %288, %292 : vector<8x8xf32>
    %294 = vector.extract_strided_slice %198 {offsets = [8, 8], sizes = [8, 8], strides = [1, 1]} : vector<16x32xf32> to vector<8x8xf32>
    %cst_110 = arith.constant dense<0.000000e+00> : vector<8x8xf32>
    %295 = tpu.matmul %293, %294, %cst_110 {dimension_numbers = #tpu.dot_dimension_numbers<[1], [0], [0], [1], [0, 0, 1, 1], [], []>} : vector<8x8xf32>, vector<8x8xf32>, vector<8x8xf32> -> vector<8x8xf32>
    %c8_111 = arith.constant 8 : index
    %c8_112 = arith.constant 8 : index
    %296 = vector.load %arg15[%c8_111, %c8_112] : memref<16x32xf32, #tpu.memory_space<vmem>>, vector<8x8xf32>
    tpu.vector_store %arg15[%c8_111, %c8_112], %295 {strides = array<i32>} : memref<16x32xf32, #tpu.memory_space<vmem>>, vector<8x8xf32>,
    %297 = vector.extract_strided_slice %200 {offsets = [8, 16], sizes = [8, 8], strides = [1, 1]} : vector<16x32xf32> to vector<8x8xf32>
    %298 = vector.extract_strided_slice %197 {offsets = [8, 16], sizes = [8, 8], strides = [1, 1]} : vector<16x32xf32> to vector<8x8xf32>
    %cst_113 = arith.constant dense<0.000000e+00> : vector<8x8xf32>
    %299 = tpu.matmul %297, %298, %cst_113 {dimension_numbers = #tpu.dot_dimension_numbers<[1], [1], [0], [0], [0, 0, 1, 0], [], []>} : vector<8x8xf32>, vector<8x8xf32>, vector<8x8xf32> -> vector<8x8xf32>
    %cst_114 = arith.constant dense<0xFF800000> : vector<8xf32>
    %300 = vector.multi_reduction <maximumf>, %299, %cst_114 [1] : vector<8x8xf32> to vector<8xf32>
    %301 = vector.shape_cast %300 : vector<8xf32> to vector<8x1xf32>
    %302 = vector.broadcast %301 : vector<8x1xf32> to vector<8x8xf32>
    %303 = arith.subf %299, %302 : vector<8x8xf32>
    %304 = math.exp %303 : vector<8x8xf32>
    %cst_115 = arith.constant dense<0.000000e+00> : vector<8xf32>
    %305 = vector.multi_reduction <add>, %304, %cst_115 [1] : vector<8x8xf32> to vector<8xf32>
    %306 = vector.shape_cast %305 : vector<8xf32> to vector<8x1xf32>
    %307 = tpu.reciprocal %306 : vector<8x1xf32> -> vector<8x1xf32>
    %308 = vector.broadcast %307 : vector<8x1xf32> to vector<8x8xf32>
    %309 = arith.mulf %304, %308 : vector<8x8xf32>
    %310 = vector.extract_strided_slice %198 {offsets = [8, 16], sizes = [8, 8], strides = [1, 1]} : vector<16x32xf32> to vector<8x8xf32>
    %cst_116 = arith.constant dense<0.000000e+00> : vector<8x8xf32>
    %311 = tpu.matmul %309, %310, %cst_116 {dimension_numbers = #tpu.dot_dimension_numbers<[1], [0], [0], [1], [0, 0, 1, 1], [], []>} : vector<8x8xf32>, vector<8x8xf32>, vector<8x8xf32> -> vector<8x8xf32>
    %c8_117 = arith.constant 8 : index
    %c16_118 = arith.constant 16 : index
    %312 = vector.load %arg15[%c8_117, %c16_118] : memref<16x32xf32, #tpu.memory_space<vmem>>, vector<8x8xf32>
    tpu.vector_store %arg15[%c8_117, %c16_118], %311 {strides = array<i32>} : memref<16x32xf32, #tpu.memory_space<vmem>>, vector<8x8xf32>,
    %313 = vector.extract_strided_slice %200 {offsets = [8, 24], sizes = [8, 8], strides = [1, 1]} : vector<16x32xf32> to vector<8x8xf32>
    %314 = vector.extract_strided_slice %197 {offsets = [8, 24], sizes = [8, 8], strides = [1, 1]} : vector<16x32xf32> to vector<8x8xf32>
    %cst_119 = arith.constant dense<0.000000e+00> : vector<8x8xf32>
    %315 = tpu.matmul %313, %314, %cst_119 {dimension_numbers = #tpu.dot_dimension_numbers<[1], [1], [0], [0], [0, 0, 1, 0], [], []>} : vector<8x8xf32>, vector<8x8xf32>, vector<8x8xf32> -> vector<8x8xf32>
    %cst_120 = arith.constant dense<0xFF800000> : vector<8xf32>
    %316 = vector.multi_reduction <maximumf>, %315, %cst_120 [1] : vector<8x8xf32> to vector<8xf32>
    %317 = vector.shape_cast %316 : vector<8xf32> to vector<8x1xf32>
    %318 = vector.broadcast %317 : vector<8x1xf32> to vector<8x8xf32>
    %319 = arith.subf %315, %318 : vector<8x8xf32>
    %320 = math.exp %319 : vector<8x8xf32>
    %cst_121 = arith.constant dense<0.000000e+00> : vector<8xf32>
    %321 = vector.multi_reduction <add>, %320, %cst_121 [1] : vector<8x8xf32> to vector<8xf32>
    %322 = vector.shape_cast %321 : vector<8xf32> to vector<8x1xf32>
    %323 = tpu.reciprocal %322 : vector<8x1xf32> -> vector<8x1xf32>
    %324 = vector.broadcast %323 : vector<8x1xf32> to vector<8x8xf32>
    %325 = arith.mulf %320, %324 : vector<8x8xf32>
    %326 = vector.extract_strided_slice %198 {offsets = [8, 24], sizes = [8, 8], strides = [1, 1]} : vector<16x32xf32> to vector<8x8xf32>
    %cst_122 = arith.constant dense<0.000000e+00> : vector<8x8xf32>
    %327 = tpu.matmul %325, %326, %cst_122 {dimension_numbers = #tpu.dot_dimension_numbers<[1], [0], [0], [1], [0, 0, 1, 1], [], []>} : vector<8x8xf32>, vector<8x8xf32>, vector<8x8xf32> -> vector<8x8xf32>
    %c8_123 = arith.constant 8 : index
    %c24_124 = arith.constant 24 : index
    %328 = vector.load %arg15[%c8_123, %c24_124] : memref<16x32xf32, #tpu.memory_space<vmem>>, vector<8x8xf32>
    tpu.vector_store %arg15[%c8_123, %c24_124], %327 {strides = array<i32>} : memref<16x32xf32, #tpu.memory_space<vmem>>, vector<8x8xf32>,
    %c0_125 = arith.constant 0 : index
    %c0_126 = arith.constant 0 : index
    %329 = vector.load %arg15[%c0_125, %c0_126] : memref<16x32xf32, #tpu.memory_space<vmem>>, vector<16x32xf32>
    %c0_127 = arith.constant 0 : index
    %c0_128 = arith.constant 0 : index
    %330 = vector.load %arg7[%c0_127, %c0_128] : memref<32x32xf32, #tpu.memory_space<vmem>>, vector<32x32xf32>
    %cst_129 = arith.constant dense<0.000000e+00> : vector<16x32xf32>
    %331 = tpu.matmul %329, %330, %cst_129 {dimension_numbers = #tpu.dot_dimension_numbers<[1], [0], [0], [1], [0, 0, 1, 1], [], []>} : vector<16x32xf32>, vector<32x32xf32>, vector<16x32xf32> -> vector<16x32xf32>
    %332 = arith.addf %167, %331 : vector<16x32xf32>
    %cst_130 = arith.constant dense<0.000000e+00> : vector<16xf32>
    %333 = vector.multi_reduction <add>, %332, %cst_130 [1] : vector<16x32xf32> to vector<16xf32>
    %334 = vector.shape_cast %333 : vector<16xf32> to vector<16x1xf32>
    %cst_131 = arith.constant 3.200000e+01 : f32
    %335 = vector.broadcast %cst_131 : f32 to vector<16x1xf32>
    %336 = arith.divf %334, %335 : vector<16x1xf32>
    %337 = vector.broadcast %336 : vector<16x1xf32> to vector<16x32xf32>
    %338 = arith.subf %332, %337 : vector<16x32xf32>
    %339 = arith.mulf %338, %338 : vector<16x32xf32>
    %cst_132 = arith.constant dense<0.000000e+00> : vector<16xf32>
    %340 = vector.multi_reduction <add>, %339, %cst_132 [1] : vector<16x32xf32> to vector<16xf32>
    %341 = vector.shape_cast %340 : vector<16xf32> to vector<16x1xf32>
    %cst_133 = arith.constant 0.0322580636 : f32
    %342 = vector.broadcast %cst_133 : f32 to vector<16x1xf32>
    %343 = arith.mulf %341, %342 : vector<16x1xf32>
    %344 = math.sqrt %343 : vector<16x1xf32>
    %cst_134 = arith.constant 9.99999997E-7 : f32
    %345 = vector.broadcast %cst_134 : f32 to vector<16x1xf32>
    %346 = arith.addf %344, %345 : vector<16x1xf32>
    %347 = tpu.reciprocal %346 : vector<16x1xf32> -> vector<16x1xf32>
    %348 = vector.extract_strided_slice %2 {offsets = [2, 0], sizes = [1, 32], strides = [1, 1]} : vector<3x32xf32> to vector<1x32xf32>
    %349 = vector.broadcast %336 : vector<16x1xf32> to vector<16x32xf32>
    %350 = arith.subf %332, %349 : vector<16x32xf32>
    %351 = vector.broadcast %347 : vector<16x1xf32> to vector<16x32xf32>
    %352 = arith.mulf %350, %351 : vector<16x32xf32>
    %353 = vector.broadcast %348 : vector<1x32xf32> to vector<16x32xf32>
    %354 = arith.mulf %353, %352 : vector<16x32xf32>
    %355 = vector.extract_strided_slice %3 {offsets = [2, 0], sizes = [1, 32], strides = [1, 1]} : vector<3x32xf32> to vector<1x32xf32>
    %356 = vector.broadcast %355 : vector<1x32xf32> to vector<16x32xf32>
    %357 = arith.addf %354, %356 : vector<16x32xf32>
    %cst_135 = arith.constant 0.000000e+00 : f32
    %358 = vector.broadcast %cst_135 : f32 to vector<16x32xf32>
    %c0_136 = arith.constant 0 : index
    %c0_137 = arith.constant 0 : index
    %359 = vector.load %arg15[%c0_136, %c0_137] : memref<16x32xf32, #tpu.memory_space<vmem>>, vector<16x32xf32>
    tpu.vector_store %arg15[%c0_136, %c0_137], %358 {strides = array<i32>} : memref<16x32xf32, #tpu.memory_space<vmem>>, vector<16x32xf32>,
    %c0_138 = arith.constant 0 : index
    %c0_139 = arith.constant 0 : index
    %360 = vector.load %arg8[%c0_138, %c0_139] : memref<32x64xf32, #tpu.memory_space<vmem>>, vector<32x64xf32>
    %cst_140 = arith.constant dense<0.000000e+00> : vector<16x64xf32>
    %361 = tpu.matmul %357, %360, %cst_140 {dimension_numbers = #tpu.dot_dimension_numbers<[1], [0], [0], [1], [0, 0, 1, 1], [], []>} : vector<16x32xf32>, vector<32x64xf32>, vector<16x64xf32> -> vector<16x64xf32>
    %c0_141 = arith.constant 0 : index
    %c0_142 = arith.constant 0 : index
    %362 = vector.load %arg9[%c0_141, %c0_142] : memref<1x64xf32, #tpu.memory_space<vmem>>, vector<1x64xf32>
    %363 = vector.broadcast %362 : vector<1x64xf32> to vector<16x64xf32>
    %364 = arith.addf %361, %363 : vector<16x64xf32>
    %cst_143 = arith.constant 0.000000e+00 : f32
    %365 = vector.broadcast %cst_143 : f32 to vector<16x64xf32>
    %366 = arith.maximumf %364, %365 : vector<16x64xf32>
    %c0_144 = arith.constant 0 : index
    %c0_145 = arith.constant 0 : index
    %367 = vector.load %arg15[%c0_144, %c0_145] : memref<16x32xf32, #tpu.memory_space<vmem>>, vector<16x32xf32>
    %c0_146 = arith.constant 0 : index
    %c0_147 = arith.constant 0 : index
    %368 = vector.load %arg10[%c0_146, %c0_147] : memref<64x32xf32, #tpu.memory_space<vmem>>, vector<64x32xf32>
    %cst_148 = arith.constant dense<0.000000e+00> : vector<16x32xf32>
    %369 = tpu.matmul %366, %368, %cst_148 {dimension_numbers = #tpu.dot_dimension_numbers<[1], [0], [0], [1], [0, 0, 1, 1], [], []>} : vector<16x64xf32>, vector<64x32xf32>, vector<16x32xf32> -> vector<16x32xf32>
    %370 = arith.addf %367, %369 : vector<16x32xf32>
    %c0_149 = arith.constant 0 : index
    %c0_150 = arith.constant 0 : index
    %371 = vector.load %arg15[%c0_149, %c0_150] : memref<16x32xf32, #tpu.memory_space<vmem>>, vector<16x32xf32>
    tpu.vector_store %arg15[%c0_149, %c0_150], %370 {strides = array<i32>} : memref<16x32xf32, #tpu.memory_space<vmem>>, vector<16x32xf32>,
    %c0_151 = arith.constant 0 : index
    %c0_152 = arith.constant 0 : index
    %372 = vector.load %arg15[%c0_151, %c0_152] : memref<16x32xf32, #tpu.memory_space<vmem>>, vector<16x32xf32>
    %373 = arith.addf %332, %372 : vector<16x32xf32>
    %c0_153 = arith.constant 0 : index
    %c0_154 = arith.constant 0 : index
    %374 = vector.load %arg11[%c0_153, %c0_154] : memref<1x32xf32, #tpu.memory_space<vmem>>, vector<1x32xf32>
    %375 = vector.broadcast %374 : vector<1x32xf32> to vector<16x32xf32>
    %376 = arith.addf %373, %375 : vector<16x32xf32>
    %c0_155 = arith.constant 0 : index
    %c0_156 = arith.constant 0 : index
    %377 = vector.load %arg14[%c0_155, %c0_156] : memref<16x32xf32, #tpu.memory_space<vmem>>, vector<16x32xf32>
    tpu.vector_store %arg14[%c0_155, %c0_156], %376 {strides = array<i32>} : memref<16x32xf32, #tpu.memory_space<vmem>>, vector<16x32xf32>,
    return
  }
  func.func @transform_0(%arg0: i32) -> (i32, i32) {
    %c0_i32 = arith.constant 0 : i32
    %c0_i32_0 = arith.constant 0 : i32
    return %arg0, %c0_i32 : i32, i32
  }
  func.func @transform_1(%arg0: i32) -> (i32, i32) {
    %c0_i32 = arith.constant 0 : i32
    %c0_i32_0 = arith.constant 0 : i32
    return %arg0, %c0_i32 : i32, i32
  }
  func.func @transform_2(%arg0: i32) -> (i32, i32) {
    %c0_i32 = arith.constant 0 : i32
    %c0_i32_0 = arith.constant 0 : i32
    %c0_i32_1 = arith.constant 0 : i32
    return %c0_i32, %c0_i32_0 : i32, i32
  }
  func.func @transform_3(%arg0: i32) -> (i32, i32) {
    %c0_i32 = arith.constant 0 : i32
    %c0_i32_0 = arith.constant 0 : i32
    %c0_i32_1 = arith.constant 0 : i32
    return %c0_i32, %c0_i32_0 : i32, i32
  }
  func.func @transform_4(%arg0: i32) -> (i32, i32) {
    %c0_i32 = arith.constant 0 : i32
    %c0_i32_0 = arith.constant 0 : i32
    %c0_i32_1 = arith.constant 0 : i32
    return %c0_i32, %c0_i32_0 : i32, i32
  }
  func.func @transform_5(%arg0: i32) -> (i32, i32) {
    %c0_i32 = arith.constant 0 : i32
    %c0_i32_0 = arith.constant 0 : i32
    %c0_i32_1 = arith.constant 0 : i32
    return %c0_i32, %c0_i32_0 : i32, i32
  }
  func.func @transform_6(%arg0: i32) -> (i32, i32) {
    %c0_i32 = arith.constant 0 : i32
    %c0_i32_0 = arith.constant 0 : i32
    %c0_i32_1 = arith.constant 0 : i32
    return %c0_i32, %c0_i32_0 : i32, i32
  }
  func.func @transform_7(%arg0: i32) -> (i32, i32) {
    %c0_i32 = arith.constant 0 : i32
    %c0_i32_0 = arith.constant 0 : i32
    %c0_i32_1 = arith.constant 0 : i32
    return %c0_i32, %c0_i32_0 : i32, i32
  }
  func.func @transform_8(%arg0: i32) -> (i32, i32) {
    %c0_i32 = arith.constant 0 : i32
    %c0_i32_0 = arith.constant 0 : i32
    %c0_i32_1 = arith.constant 0 : i32
    return %c0_i32, %c0_i32_0 : i32, i32
  }
  func.func @transform_9(%arg0: i32) -> (i32, i32) {
    %c0_i32 = arith.constant 0 : i32
    %c0_i32_0 = arith.constant 0 : i32
    %c0_i32_1 = arith.constant 0 : i32
    return %c0_i32, %c0_i32_0 : i32, i32
  }
  func.func @transform_10(%arg0: i32) -> (i32, i32) {
    %c0_i32 = arith.constant 0 : i32
    %c0_i32_0 = arith.constant 0 : i32
    %c0_i32_1 = arith.constant 0 : i32
    return %c0_i32, %c0_i32_0 : i32, i32
  }
  func.func @transform_11(%arg0: i32) -> (i32, i32) {
    %c0_i32 = arith.constant 0 : i32
    %c0_i32_0 = arith.constant 0 : i32
    %c0_i32_1 = arith.constant 0 : i32
    return %c0_i32, %c0_i32_0 : i32, i32
  }
  func.func @transform_12(%arg0: i32) -> (i32, i32) {
    %c0_i32 = arith.constant 0 : i32
    %c0_i32_0 = arith.constant 0 : i32
    %c0_i32_1 = arith.constant 0 : i32
    return %c0_i32, %c0_i32_0 : i32, i32
  }
  func.func @transform_13(%arg0: i32) -> (i32, i32) {
    %c0_i32 = arith.constant 0 : i32
    %c0_i32_0 = arith.constant 0 : i32
    return %arg0, %c0_i32 : i32, i32
  }
}

</mosaic_0001>

<llo_original>
// kernel: tpu_custom_call.1
$region0: #{tpu_custom_call.1}
  #allocation0 [shape = 'u32[]', space=smem, size = 0x4, offset = 0x4, fixed_abs, tag = 'smem constant byte address 0x4 - core index']
  #allocation1 [shape = 'u32[144,128]{1,0:T(1,128)}', space=vmem, size = 0x12000, scoped, tag = 'internal scratch']
  #allocation2 [shape = 'f32[16,32]{1,0:T(8,128)}', space=vmem, size = 0x2000, scoped, tag = 'scratch operand']
  %s0 = inlined_call_operand.hbm [shape: f32[16,32], index: 0, kind: input, shape index: {}]
  %s1 = inlined_call_operand.hbm [shape: f32[16,32], index: 1, kind: input, shape index: {}]
  %s2 = inlined_call_operand.vmem [shape: f32[32,96], index: 2, kind: input, shape index: {}]
  %s3 = inlined_call_operand.vmem [shape: f32[32,32], index: 3, kind: input, shape index: {}]
  %s4 = inlined_call_operand.vmem [shape: f32[32,32], index: 4, kind: input, shape index: {}]
  %s5 = inlined_call_operand.hbm [shape: f32[32,64], index: 5, kind: input, shape index: {}]
  %s6 = inlined_call_operand.hbm [shape: f32[32,32], index: 6, kind: input, shape index: {}]
  %s7 = inlined_call_operand.hbm [shape: f32[32,64], index: 7, kind: input, shape index: {}]
  %s8 = inlined_call_operand.vmem [shape: f32[1,64], index: 8, kind: input, shape index: {}]
  %s9 = inlined_call_operand.vmem [shape: f32[64,32], index: 9, kind: input, shape index: {}]
  %s10 = inlined_call_operand.hbm [shape: f32[1,32], index: 10, kind: input, shape index: {}]
  %s11 = inlined_call_operand.vmem [shape: f32[3,32], index: 11, kind: input, shape index: {}]
  %s12 = inlined_call_operand.vmem [shape: f32[3,32], index: 12, kind: input, shape index: {}]
  %s13 = inlined_call_operand.hbm [shape: f32[16,32], index: 13, kind: output, shape index: {}]
  %s14 = sld [smem:[#allocation0]]
  $region86: #{tpu_custom_call.1} parent=0
    _
  %s16 = ssub.s32 1, %s14
  %s17 = scalar_select 0, %s16, %s14
  $region1: #{tpu_custom_call.1} parent=0
    #allocation3 [shape = 'u8[8192]{0}', space=vmem, size = 0x2000, scoped, tag = 'input window, operand 0, single buffered']
    #allocation4 [shape = 's32[1]{0}', space=sflag, size = 0x4, scoped, tag = 'scoped memory for tpu_custom_call.1']
    #allocation5 [shape = 's32[1]{0}', space=sflag, size = 0x4, scoped, tag = 'scoped memory for tpu_custom_call.1']
    #allocation6 [shape = 'u8[8192]{0}', space=vmem, size = 0x2000, scoped, tag = 'input window, operand 1, single buffered']
    #allocation7 [shape = 's32[1]{0}', space=sflag, size = 0x4, scoped, tag = 'scoped memory for tpu_custom_call.1']
    #allocation8 [shape = 'u8[16384]{0}', space=vmem, size = 0x4000, scoped, tag = 'input window, operand 5, single buffered']
    #allocation9 [shape = 'u8[16384]{0}', space=vmem, size = 0x4000, scoped, tag = 'input window, operand 6, single buffered']
    #allocation10 [shape = 's32[1]{0}', space=sflag, size = 0x4, scoped, tag = 'scoped memory for tpu_custom_call.1']
    #allocation11 [shape = 'u8[16384]{0}', space=vmem, size = 0x4000, scoped, tag = 'input window, operand 7, single buffered']
    #allocation12 [shape = 'u8[512]{0}', space=vmem, size = 0x400, scoped, tag = 'input window, operand 10, single buffered']
    #allocation13 [shape = 's32[1]{0}', space=sflag, size = 0x4, scoped, tag = 'scoped memory for tpu_custom_call.1']
    #allocation14 [shape = 'u8[8192]{0}', space=vmem, size = 0x2000, scoped, tag = 'output window, operand 0, single buffered']
    %18 = vsyncpa [#allocation4], 0
    %19 = vsyncpa [#allocation7], 0
    %20 = vsyncpa [#allocation10], 0
    %21 = vsyncpa [#allocation13], 0
    %22 = vsyncpa [#allocation5], 0
    // Predicated region
    $region2: #{tpu_custom_call.1} parent=1 // pred_check
      _
    $region3: #{tpu_custom_call.1} parent=1 // pred_check_branch
      %24 = sbr.rel (0) target = $region5
    $region4: #{tpu_custom_call.1} parent=1 // pred_region
      %s26 = ssub.s32 256, 256
      %27 = vsyncadd [#allocation4], %s26
      %s28 = sshll.u32 [#allocation3], 4
      %s29 = int_to_ptr.vmem [resolvable:$true] %s28
      %34 = dma.hbm_to_vmem [thread:$0]  %s0, 256, %s29, [#allocation4], 128, 128, 8
    $region5: #{tpu_custom_call.1} parent=1 // pred_fallthru
      _
    // Predicated region
    $region6: #{tpu_custom_call.1} parent=1 // pred_check
      _
    $region7: #{tpu_custom_call.1} parent=1 // pred_check_branch
      %36 = sbr.rel (0) target = $region9
    $region8: #{tpu_custom_call.1} parent=1 // pred_region
      %s38 = ssub.s32 256, 256
      %39 = vsyncadd [#allocation7], %s38
      %s40 = sshll.u32 [#allocation6], 4
      %s41 = int_to_ptr.vmem [resolvable:$true] %s40
      %46 = dma.hbm_to_vmem [thread:$0]  %s1, 256, %s41, [#allocation7], 128, 128, 8
    $region9: #{tpu_custom_call.1} parent=1 // pred_fallthru
      _
    // Predicated region
    $region10: #{tpu_custom_call.1} parent=1 // pred_check
      _
    $region11: #{tpu_custom_call.1} parent=1 // pred_check_branch
      %48 = sbr.rel (0) target = $region13
    $region12: #{tpu_custom_call.1} parent=1 // pred_region
      _
    $region13: #{tpu_custom_call.1} parent=1 // pred_fallthru
      _
    // Predicated region
    $region14: #{tpu_custom_call.1} parent=1 // pred_check
      _
    $region15: #{tpu_custom_call.1} parent=1 // pred_check_branch
      %50 = sbr.rel (0) target = $region17
    $region16: #{tpu_custom_call.1} parent=1 // pred_region
      _
    $region17: #{tpu_custom_call.1} parent=1 // pred_fallthru
      _
    // Predicated region
    $region18: #{tpu_custom_call.1} parent=1 // pred_check
      _
    $region19: #{tpu_custom_call.1} parent=1 // pred_check_branch
      %52 = sbr.rel (0) target = $region21
    $region20: #{tpu_custom_call.1} parent=1 // pred_region
      _
    $region21: #{tpu_custom_call.1} parent=1 // pred_fallthru
      _
    // Predicated region
    $region22: #{tpu_custom_call.1} parent=1 // pred_check
      _
    $region23: #{tpu_custom_call.1} parent=1 // pred_check_branch
      %54 = sbr.rel (0) target = $region25
    $region24: #{tpu_custom_call.1} parent=1 // pred_region
      %s56 = ssub.s32 512, 512
      %57 = vsyncadd [#allocation7], %s56
      %s58 = sshll.u32 [#allocation8], 4
      %s59 = int_to_ptr.vmem [resolvable:$true] %s58
      %64 = dma.hbm_to_vmem [thread:$0]  %s5, 512, %s59, [#allocation7], 128, 128, 8
    $region25: #{tpu_custom_call.1} parent=1 // pred_fallthru
      _
    // Predicated region
    $region26: #{tpu_custom_call.1} parent=1 // pred_check
      _
    $region27: #{tpu_custom_call.1} parent=1 // pred_check_branch
      %66 = sbr.rel (0) target = $region29
    $region28: #{tpu_custom_call.1} parent=1 // pred_region
      %s68 = ssub.s32 512, 512
      %69 = vsyncadd [#allocation10], %s68
      %s70 = sshll.u32 [#allocation9], 4
      %s71 = int_to_ptr.vmem [resolvable:$true] %s70
      %76 = dma.hbm_to_vmem [thread:$0]  %s6, 512, %s71, [#allocation10], 128, 128, 8
    $region29: #{tpu_custom_call.1} parent=1 // pred_fallthru
      _
    // Predicated region
    $region30: #{tpu_custom_call.1} parent=1 // pred_check
      _
    $region31: #{tpu_custom_call.1} parent=1 // pred_check_branch
      %78 = sbr.rel (0) target = $region33
    $region32: #{tpu_custom_call.1} parent=1 // pred_region
      %s80 = ssub.s32 512, 512
      %81 = vsyncadd [#allocation10], %s80
      %s82 = sshll.u32 [#allocation11], 4
      %s83 = int_to_ptr.vmem [resolvable:$true] %s82
      %88 = dma.hbm_to_vmem [thread:$0]  %s7, 512, %s83, [#allocation10], 128, 128, 8
    $region33: #{tpu_custom_call.1} parent=1 // pred_fallthru
      _
    // Predicated region
    $region34: #{tpu_custom_call.1} parent=1 // pred_check
      _
    $region35: #{tpu_custom_call.1} parent=1 // pred_check_branch
      %90 = sbr.rel (0) target = $region37
    $region36: #{tpu_custom_call.1} parent=1 // pred_region
      _
    $region37: #{tpu_custom_call.1} parent=1 // pred_fallthru
      _
    // Predicated region
    $region38: #{tpu_custom_call.1} parent=1 // pred_check
      _
    $region39: #{tpu_custom_call.1} parent=1 // pred_check_branch
      %92 = sbr.rel (0) target = $region41
    $region40: #{tpu_custom_call.1} parent=1 // pred_region
      _
    $region41: #{tpu_custom_call.1} parent=1 // pred_fallthru
      _
    // Predicated region
    $region42: #{tpu_custom_call.1} parent=1 // pred_check
      _
    $region43: #{tpu_custom_call.1} parent=1 // pred_check_branch
      %94 = sbr.rel (0) target = $region45
    $region44: #{tpu_custom_call.1} parent=1 // pred_region
      %s96 = ssub.s32 16, 16
      %97 = vsyncadd [#allocation13], %s96
      %s99 = sshll.u32 [#allocation12], 4
      %s100 = int_to_ptr.vmem [resolvable:$true] %s99
      %102 = dma.hbm_to_vmem [thread:$0]  %s10, 16, %s100, [#allocation13]
    $region45: #{tpu_custom_call.1} parent=1 // pred_fallthru
      _
    // Predicated region
    $region46: #{tpu_custom_call.1} parent=1 // pred_check
      _
    $region47: #{tpu_custom_call.1} parent=1 // pred_check_branch
      %104 = sbr.rel (0) target = $region49
    $region48: #{tpu_custom_call.1} parent=1 // pred_region
      _
    $region49: #{tpu_custom_call.1} parent=1 // pred_fallthru
      _
    // Predicated region
    $region50: #{tpu_custom_call.1} parent=1 // pred_check
      _
    $region51: #{tpu_custom_call.1} parent=1 // pred_check_branch
      %106 = sbr.rel (0) target = $region53
    $region52: #{tpu_custom_call.1} parent=1 // pred_region
      _
    $region53: #{tpu_custom_call.1} parent=1 // pred_fallthru
      _
    // Predicated region
    $region54: #{tpu_custom_call.1} parent=1 // pred_check
      _
    $region55: #{tpu_custom_call.1} parent=1 // pred_check_branch
      %108 = sbr.rel (0) target = $region57
    $region56: #{tpu_custom_call.1} parent=1 // pred_region
      %109 = dma.done [#allocation4], 256
    $region57: #{tpu_custom_call.1} parent=1 // pred_fallthru
      _
    // Predicated region
    $region58: #{tpu_custom_call.1} parent=1 // pred_check
      _
    $region59: #{tpu_custom_call.1} parent=1 // pred_check_branch
      %111 = sbr.rel (0) target = $region61
    $region60: #{tpu_custom_call.1} parent=1 // pred_region
      %112 = dma.done [#allocation7], 256
    $region61: #{tpu_custom_call.1} parent=1 // pred_fallthru
      _
    // Predicated region
    $region62: #{tpu_custom_call.1} parent=1 // pred_check
      _
    $region63: #{tpu_custom_call.1} parent=1 // pred_check_branch
      %114 = sbr.rel (0) target = $region65
    $region64: #{tpu_custom_call.1} parent=1 // pred_region
      %115 = dma.done [#allocation7], 512
    $region65: #{tpu_custom_call.1} parent=1 // pred_fallthru
      _
    // Predicated region
    $region66: #{tpu_custom_call.1} parent=1 // pred_check
      _
    $region67: #{tpu_custom_call.1} parent=1 // pred_check_branch
      %117 = sbr.rel (0) target = $region69
    $region68: #{tpu_custom_call.1} parent=1 // pred_region
      %118 = dma.done [#allocation10], 512
    $region69: #{tpu_custom_call.1} parent=1 // pred_fallthru
      _
    // Predicated region
    $region70: #{tpu_custom_call.1} parent=1 // pred_check
      _
    $region71: #{tpu_custom_call.1} parent=1 // pred_check_branch
      %120 = sbr.rel (0) target = $region73
    $region72: #{tpu_custom_call.1} parent=1 // pred_region
      %121 = dma.done [#allocation10], 512
    $region73: #{tpu_custom_call.1} parent=1 // pred_fallthru
      _
    // Predicated region
    $region74: #{tpu_custom_call.1} parent=1 // pred_check
      _
    $region75: #{tpu_custom_call.1} parent=1 // pred_check_branch
      %123 = sbr.rel (0) target = $region77
    $region76: #{tpu_custom_call.1} parent=1 // pred_region
      %124 = dma.done [#allocation13], 16
    $region77: #{tpu_custom_call.1} parent=1 // pred_fallthru
      _
    %v125 = vld [vmem:[#allocation3] sm:$0xff]
    %v126 = vld [vmem:[#allocation3 + $0x8] sm:$0xff]
    %v127 = vld [vmem:[#allocation6] sm:$0xff]
    %v128 = vld [vmem:[#allocation6 + $0x8] sm:$0xff]
    %v129 = vld [vmem:[%s11] sm:$0x7]
    %v130 = vld [vmem:[%s12] sm:$0x7]
    %vm131 = vcmask 261120
    %v132 = vsel %vm131, %v125, 0.0
    %133 = vadd.xlane.f32.xlu0 %v132
    %v134 = vpop.xlane.xlu0 %133
    %v135 = vsel %vm131, %v126, 0.0
    %136 = vadd.xlane.f32.xlu0 %v135
    %v137 = vpop.xlane.xlu0 %136
    %v138 = vrcp.pop 32.0
    %v139 = vmul.f32 %v134, %v138
    %v140 = vmul.f32 %v137, %v138
    %v141 = vsub.f32 %v125, %v139
    %v142 = vsub.f32 %v126, %v140
    %v143 = vmul.f32 %v141, %v141
    %v144 = vmul.f32 %v142, %v142
    %v145 = vsel %vm131, %v143, 0.0
    %146 = vadd.xlane.f32.xlu0 %v145
    %v147 = vpop.xlane.xlu0 %146
    %v148 = vsel %vm131, %v144, 0.0
    %149 = vadd.xlane.f32.xlu0 %v148
    %v150 = vpop.xlane.xlu0 %149
    %v151 = vmul.f32 %v147, 0.032258064
    %v152 = vmul.f32 %v150, 0.032258064
    %v153 = vrsqrt.pop %v151
    %v154 = vmul.f32 %v151, %v153
    %vm155 = vcmp.eq.f32.partialorder %v151, inf
    %v156 = vsel %vm155, %v151, %v154
    %vm157 = vcmp.eq.f32.partialorder %v151, 0.0
    %v158 = vand.u32 %v151, 2147483648
    %v159 = vsel %vm157, %v158, %v156
    %v160 = vrsqrt.pop %v152
    %v161 = vmul.f32 %v152, %v160
    %vm162 = vcmp.eq.f32.partialorder %v152, inf
    %v163 = vsel %vm162, %v152, %v161
    %vm164 = vcmp.eq.f32.partialorder %v152, 0.0
    %v165 = vand.u32 %v152, 2147483648
    %v166 = vsel %vm164, %v165, %v163
    %v167 = vadd.f32 %v159, 1e-06
    %v168 = vadd.f32 %v166, 1e-06
    %v169 = vrcp.pop %v167
    %v170 = vrcp.pop %v168
    %v171 = vmul.f32 %v141, %v169
    %v172 = vmul.f32 %v142, %v170
    %v173 = vlaneseq
    %v174 = vshrl.u32 %v173, 7
    %v175 = vsub.s32 0, %v174
    %v176 = vrot.slane %v129, %v175
    %v177 = vmul.f32 %v176, %v171
    %v178 = vmul.f32 %v176, %v172
    %v179 = vlaneseq
    %v180 = vshrl.u32 %v179, 7
    %v181 = vsub.s32 0, %v180
    %v182 = vrot.slane %v130, %v181
    %v183 = vadd.f32 %v177, %v182
    %v184 = vadd.f32 %v178, %v182
    %v185 = vld [vmem:[%s2] sm:$0xff]
    %v186 = vld [vmem:[%s2 + $0x8] sm:$0xff]
    %v187 = vld [vmem:[%s2 + $0x10] sm:$0xff]
    %v188 = vld [vmem:[%s2 + $0x18] sm:$0xff]
    %v190 = vsel %vm131, %v183, 0
    %v193 = vsel %vm131, %v184, 0
    %195 = vmatprep.subr.mxu0 0.0
    %196 = vmatpush1.msra.mxu0 %v185
    %197 = vmatprep.subr.mxu0 0.0
    %198 = vmatpush1.msra.mxu0 %v186
    %199 = vmatprep.subr.mxu0 0.0
    %200 = vmatpush1.msra.mxu0 %v187
    %201 = vmatprep.subr.mxu0 0.0
    %202 = vmatpush1.msra.mxu0 %v188
    %203 = vmatprep.subr.mxu0 0.0
    %204 = vmatpush1.msra.mxu0 0.0
    %205 = vmatprep.subr.mxu0 0.0
    %206 = vmatpush1.msra.mxu0 0.0
    %207 = vmatprep.subr.mxu0 0.0
    %208 = vmatpush1.msra.mxu0 0.0
    %209 = vmatprep.subr.mxu0 0.0
    %210 = vmatpush1.msra.mxu0 0.0
    %211 = vmatprep.subr.mxu0 0.0
    %212 = vmatpush1.msra.mxu0 0.0
    %213 = vmatprep.subr.mxu0 0.0
    %214 = vmatpush1.msra.mxu0 0.0
    %215 = vmatprep.subr.mxu0 0.0
    %216 = vmatpush1.msra.mxu0 0.0
    %217 = vmatprep.subr.mxu0 0.0
    %218 = vmatpush1.msra.mxu0 0.0
    %219 = vmatprep.subr.mxu0 0.0
    %220 = vmatpush1.msra.mxu0 0.0
    %221 = vmatprep.subr.mxu0 0.0
    %222 = vmatpush1.msra.mxu0 0.0
    %223 = vmatprep.subr.mxu0 0.0
    %224 = vmatpush1.msra.mxu0 0.0
    %225 = vmatprep.subr.mxu0 0.0
    %226 = vmatpush1.msra.mxu0 0.0
    %227 = vmatprep.subr.mxu0 0.0
    %228 = vmatpush1.msra.mxu0 0.0
    %229 = vmatprep.subr.mxu0 0.0
    %230 = vmatpush1.msra.mxu0 0.0
    %231 = vmatprep.subr.mxu0 0.0
    %232 = vmatpush1.msra.mxu0 0.0
    %233 = vmatprep.subr.mxu0 0.0
    %234 = vmatpush1.msra.mxu0 0.0
    %235 = vmatprep.subr.mxu0 0.0
    %236 = vmatpush1.msra.mxu0 0.0
    %237 = vmatprep.subr.mxu0 0.0
    %238 = vmatpush1.msra.mxu0 0.0
    %239 = vmatprep.subr.mxu0 0.0
    %240 = vmatpush1.msra.mxu0 0.0
    %241 = vmatprep.subr.mxu0 0.0
    %242 = vmatpush1.msra.mxu0 0.0
    %243 = vmatprep.subr.mxu0 0.0
    %244 = vmatpush1.msra.mxu0 0.0
    %245 = vmatprep.subr.mxu0 0.0
    %246 = vmatpush1.msra.mxu0 0.0
    %247 = vmatprep.subr.mxu0 0.0
    %248 = vmatpush1.msra.mxu0 0.0
    %249 = vmatprep.subr.mxu0 0.0
    %250 = vmatpush1.msra.mxu0 0.0
    %251 = vmatprep.subr.mxu0 0.0
    %252 = vmatpush1.msra.mxu0 0.0
    %253 = vmatprep.subr.mxu0 0.0
    %254 = vmatpush1.msra.mxu0 0.0
    %255 = vmatprep.subr.mxu0 0.0
    %256 = vmatpush1.msra.mxu0 0.0
    %257 = vmatprep.subr.mxu0 0.0
    %258 = vmatpush1.msra.mxu0 0.0
    %259 = vmatprep.mubr.f32.mxu0 0.0
    %260 = vmatmul.mubr.f32.gmra.mrb[0].mxu0 %v190
    %v261 = vpop.f32.mrb[0].mxu0
    %v262 = vadd.f32 0.0, %v261
    %v263 = vpop.f32.mrb[0].mxu0
    %264 = vmatprep.mubr.f32.mxu0 0.0
    %265 = vmatmul.mubr.f32.gmra.mrb[0].mxu0 %v193
    %v266 = vpop.f32.mrb[0].mxu0
    %v267 = vadd.f32 0.0, %v266
    %v268 = vpop.f32.mrb[0].mxu0
    %269 = vdwg.mxu0
    %v270 = vmul.f32 %v262, 0.35355338
    %v271 = vmul.f32 %v267, 0.35355338
    %273 = vrot.lane.b32.xlu0 %v262, 96
    %v274 = vpop.permute.xlu0 %273
    %vm275 = vcmask 64512
    %v277 = vsel %vm275, %v270, 0
    %v279 = vsel %vm275, %v274, 0
    %281 = vmatprep.subr.mxu0 0.0
    %282 = vmatpush1.xpose.msra.mxu0 %v279
    %283 = vmatprep.subr.mxu0 0.0
    %284 = vmatpush1.xpose.msra.mxu0 0.0
    %285 = vmatprep.subr.mxu0 0.0
    %286 = vmatpush1.xpose.msra.mxu0 0.0
    %287 = vmatprep.subr.mxu0 0.0
    %288 = vmatpush1.xpose.msra.mxu0 0.0
    %289 = vmatprep.subr.mxu0 0.0
    %290 = vmatpush1.xpose.msra.mxu0 0.0
    %291 = vmatprep.subr.mxu0 0.0
    %292 = vmatpush1.xpose.msra.mxu0 0.0
    %293 = vmatprep.subr.mxu0 0.0
    %294 = vmatpush1.xpose.msra.mxu0 0.0
    %295 = vmatprep.subr.mxu0 0.0
    %296 = vmatpush1.xpose.msra.mxu0 0.0
    %297 = vmatprep.subr.mxu0 0.0
    %298 = vmatpush1.xpose.msra.mxu0 0.0
    %299 = vmatprep.subr.mxu0 0.0
    %300 = vmatpush1.xpose.msra.mxu0 0.0
    %301 = vmatprep.subr.mxu0 0.0
    %302 = vmatpush1.xpose.msra.mxu0 0.0
    %303 = vmatprep.subr.mxu0 0.0
    %304 = vmatpush1.xpose.msra.mxu0 0.0
    %305 = vmatprep.subr.mxu0 0.0
    %306 = vmatpush1.xpose.msra.mxu0 0.0
    %307 = vmatprep.subr.mxu0 0.0
    %308 = vmatpush1.xpose.msra.mxu0 0.0
    %309 = vmatprep.subr.mxu0 0.0
    %310 = vmatpush1.xpose.msra.mxu0 0.0
    %311 = vmatprep.subr.mxu0 0.0
    %312 = vmatpush1.xpose.msra.mxu0 0.0
    %313 = vmatprep.subr.mxu0 0.0
    %314 = vmatpush1.xpose.msra.mxu0 0.0
    %315 = vmatprep.subr.mxu0 0.0
    %316 = vmatpush1.xpose.msra.mxu0 0.0
    %317 = vmatprep.subr.mxu0 0.0
    %318 = vmatpush1.xpose.msra.mxu0 0.0
    %319 = vmatprep.subr.mxu0 0.0
    %320 = vmatpush1.xpose.msra.mxu0 0.0
    %321 = vmatprep.subr.mxu0 0.0
    %322 = vmatpush1.xpose.msra.mxu0 0.0
    %323 = vmatprep.subr.mxu0 0.0
    %324 = vmatpush1.xpose.msra.mxu0 0.0
    %325 = vmatprep.subr.mxu0 0.0
    %326 = vmatpush1.xpose.msra.mxu0 0.0
    %327 = vmatprep.subr.mxu0 0.0
    %328 = vmatpush1.xpose.msra.mxu0 0.0
    %329 = vmatprep.subr.mxu0 0.0
    %330 = vmatpush1.xpose.msra.mxu0 0.0
    %331 = vmatprep.subr.mxu0 0.0
    %332 = vmatpush1.xpose.msra.mxu0 0.0
    %333 = vmatprep.subr.mxu0 0.0
    %334 = vmatpush1.xpose.msra.mxu0 0.0
    %335 = vmatprep.subr.mxu0 0.0
    %336 = vmatpush1.xpose.msra.mxu0 0.0
    %337 = vmatprep.subr.mxu0 0.0
    %338 = vmatpush1.xpose.msra.mxu0 0.0
    %339 = vmatprep.subr.mxu0 0.0
    %340 = vmatpush1.xpose.msra.mxu0 0.0
    %341 = vmatprep.subr.mxu0 0.0
    %342 = vmatpush1.xpose.msra.mxu0 0.0
    %343 = vmatprep.subr.mxu0 0.0
    %344 = vmatpush1.xpose.msra.mxu0 0.0
    %345 = vmatprep.mubr.f32.mxu0 0.0
    %346 = vmatmul.mubr.f32.gmra.mrb[0].mxu0 %v277
    %v347 = vpop.f32.mrb[0].mxu0
    %v348 = vadd.f32 0.0, %v347
    %v349 = vpop.f32.mrb[0].mxu0
    %350 = vdwg.mxu0
    %v351 = vsel %vm275, %v348, -inf
    %352 = vmax.xlane.f32.xlu0 %v351
    %v353 = vpop.xlane.xlu0 %352
    %v354 = vsub.f32 %v348, %v353
    %v355 = vmul.f32 %v354, 1.442695
    %v356 = vpow.pop %v355
    %v357 = vsel %vm275, %v356, 0.0
    %358 = vadd.xlane.f32.xlu0 %v357
    %v359 = vpop.xlane.xlu0 %358
    %v360 = vrcp.pop %v359
    %v361 = vmul.f32 %v356, %v360
    %362 = vrot.lane.b32.xlu0 %v262, 64
    %v363 = vpop.permute.xlu0 %362
    %v366 = vsel %vm275, %v361, 0
    %368 = vmatprep.subr.mxu0 0.0
    %369 = vmatpush1.msra.mxu0 %v363
    %370 = vmatprep.subr.mxu0 0.0
    %371 = vmatpush1.msra.mxu0 0.0
    %372 = vmatprep.subr.mxu0 0.0
    %373 = vmatpush1.msra.mxu0 0.0
    %374 = vmatprep.subr.mxu0 0.0
    %375 = vmatpush1.msra.mxu0 0.0
    %376 = vmatprep.subr.mxu0 0.0
    %377 = vmatpush1.msra.mxu0 0.0
    %378 = vmatprep.subr.mxu0 0.0
    %379 = vmatpush1.msra.mxu0 0.0
    %380 = vmatprep.subr.mxu0 0.0
    %381 = vmatpush1.msra.mxu0 0.0
    %382 = vmatprep.subr.mxu0 0.0
    %383 = vmatpush1.msra.mxu0 0.0
    %384 = vmatprep.subr.mxu0 0.0
    %385 = vmatpush1.msra.mxu0 0.0
    %386 = vmatprep.subr.mxu0 0.0
    %387 = vmatpush1.msra.mxu0 0.0
    %388 = vmatprep.subr.mxu0 0.0
    %389 = vmatpush1.msra.mxu0 0.0
    %390 = vmatprep.subr.mxu0 0.0
    %391 = vmatpush1.msra.mxu0 0.0
    %392 = vmatprep.subr.mxu0 0.0
    %393 = vmatpush1.msra.mxu0 0.0
    %394 = vmatprep.subr.mxu0 0.0
    %395 = vmatpush1.msra.mxu0 0.0
    %396 = vmatprep.subr.mxu0 0.0
    %397 = vmatpush1.msra.mxu0 0.0
    %398 = vmatprep.subr.mxu0 0.0
    %399 = vmatpush1.msra.mxu0 0.0
    %400 = vmatprep.subr.mxu0 0.0
    %401 = vmatpush1.msra.mxu0 0.0
    %402 = vmatprep.subr.mxu0 0.0
    %403 = vmatpush1.msra.mxu0 0.0
    %404 = vmatprep.subr.mxu0 0.0
    %405 = vmatpush1.msra.mxu0 0.0
    %406 = vmatprep.subr.mxu0 0.0
    %407 = vmatpush1.msra.mxu0 0.0
    %408 = vmatprep.subr.mxu0 0.0
    %409 = vmatpush1.msra.mxu0 0.0
    %410 = vmatprep.subr.mxu0 0.0
    %411 = vmatpush1.msra.mxu0 0.0
    %412 = vmatprep.subr.mxu0 0.0
    %413 = vmatpush1.msra.mxu0 0.0
    %414 = vmatprep.subr.mxu0 0.0
    %415 = vmatpush1.msra.mxu0 0.0
    %416 = vmatprep.subr.mxu0 0.0
    %417 = vmatpush1.msra.mxu0 0.0
    %418 = vmatprep.subr.mxu0 0.0
    %419 = vmatpush1.msra.mxu0 0.0
    %420 = vmatprep.subr.mxu0 0.0
    %421 = vmatpush1.msra.mxu0 0.0
    %422 = vmatprep.subr.mxu0 0.0
    %423 = vmatpush1.msra.mxu0 0.0
    %424 = vmatprep.subr.mxu0 0.0
    %425 = vmatpush1.msra.mxu0 0.0
    %426 = vmatprep.subr.mxu0 0.0
    %427 = vmatpush1.msra.mxu0 0.0
    %428 = vmatprep.subr.mxu0 0.0
    %429 = vmatpush1.msra.mxu0 0.0
    %430 = vmatprep.subr.mxu0 0.0
    %431 = vmatpush1.msra.mxu0 0.0
    %432 = vmatprep.mubr.f32.mxu0 0.0
    %433 = vmatmul.mubr.f32.gmra.mrb[0].mxu0 %v366
    %v434 = vpop.f32.mrb[0].mxu0
    %v435 = vadd.f32 0.0, %v434
    %v436 = vpop.f32.mrb[0].mxu0
    %437 = vdwg.mxu0
    %438 = vst.msk [vmem:[#allocation2] sm:$0xff] %vm275, %v435
    %439 = vrot.lane.b32.xlu0 %v270, 120
    %v440 = vpop.permute.xlu0 %439
    %441 = vrot.lane.b32.xlu0 %v262, 88
    %v442 = vpop.permute.xlu0 %441
    %v443 = vsel %vm275, %v440, 0
    %v445 = vsel %vm275, %v442, 0
    %447 = vmatprep.subr.mxu0 0.0
    %448 = vmatpush1.xpose.msra.mxu0 %v445
    %449 = vmatprep.subr.mxu0 0.0
    %450 = vmatpush1.xpose.msra.mxu0 0.0
    %451 = vmatprep.subr.mxu0 0.0
    %452 = vmatpush1.xpose.msra.mxu0 0.0
    %453 = vmatprep.subr.mxu0 0.0
    %454 = vmatpush1.xpose.msra.mxu0 0.0
    %455 = vmatprep.subr.mxu0 0.0
    %456 = vmatpush1.xpose.msra.mxu0 0.0
    %457 = vmatprep.subr.mxu0 0.0
    %458 = vmatpush1.xpose.msra.mxu0 0.0
    %459 = vmatprep.subr.mxu0 0.0
    %460 = vmatpush1.xpose.msra.mxu0 0.0
    %461 = vmatprep.subr.mxu0 0.0
    %462 = vmatpush1.xpose.msra.mxu0 0.0
    %463 = vmatprep.subr.mxu0 0.0
    %464 = vmatpush1.xpose.msra.mxu0 0.0
    %465 = vmatprep.subr.mxu0 0.0
    %466 = vmatpush1.xpose.msra.mxu0 0.0
    %467 = vmatprep.subr.mxu0 0.0
    %468 = vmatpush1.xpose.msra.mxu0 0.0
    %469 = vmatprep.subr.mxu0 0.0
    %470 = vmatpush1.xpose.msra.mxu0 0.0
    %471 = vmatprep.subr.mxu0 0.0
    %472 = vmatpush1.xpose.msra.mxu0 0.0
    %473 = vmatprep.subr.mxu0 0.0
    %474 = vmatpush1.xpose.msra.mxu0 0.0
    %475 = vmatprep.subr.mxu0 0.0
    %476 = vmatpush1.xpose.msra.mxu0 0.0
    %477 = vmatprep.subr.mxu0 0.0
    %478 = vmatpush1.xpose.msra.mxu0 0.0
    %479 = vmatprep.subr.mxu0 0.0
    %480 = vmatpush1.xpose.msra.mxu0 0.0
    %481 = vmatprep.subr.mxu0 0.0
    %482 = vmatpush1.xpose.msra.mxu0 0.0
    %483 = vmatprep.subr.mxu0 0.0
    %484 = vmatpush1.xpose.msra.mxu0 0.0
    %485 = vmatprep.subr.mxu0 0.0
    %486 = vmatpush1.xpose.msra.mxu0 0.0
    %487 = vmatprep.subr.mxu0 0.0
    %488 = vmatpush1.xpose.msra.mxu0 0.0
    %489 = vmatprep.subr.mxu0 0.0
    %490 = vmatpush1.xpose.msra.mxu0 0.0
    %491 = vmatprep.subr.mxu0 0.0
    %492 = vmatpush1.xpose.msra.mxu0 0.0
    %493 = vmatprep.subr.mxu0 0.0
    %494 = vmatpush1.xpose.msra.mxu0 0.0
    %495 = vmatprep.subr.mxu0 0.0
    %496 = vmatpush1.xpose.msra.mxu0 0.0
    %497 = vmatprep.subr.mxu0 0.0
    %498 = vmatpush1.xpose.msra.mxu0 0.0
    %499 = vmatprep.subr.mxu0 0.0
    %500 = vmatpush1.xpose.msra.mxu0 0.0
    %501 = vmatprep.subr.mxu0 0.0
    %502 = vmatpush1.xpose.msra.mxu0 0.0
    %503 = vmatprep.subr.mxu0 0.0
    %504 = vmatpush1.xpose.msra.mxu0 0.0
    %505 = vmatprep.subr.mxu0 0.0
    %506 = vmatpush1.xpose.msra.mxu0 0.0
    %507 = vmatprep.subr.mxu0 0.0
    %508 = vmatpush1.xpose.msra.mxu0 0.0
    %509 = vmatprep.subr.mxu0 0.0
    %510 = vmatpush1.xpose.msra.mxu0 0.0
    %511 = vmatprep.mubr.f32.mxu0 0.0
    %512 = vmatmul.mubr.f32.gmra.mrb[0].mxu0 %v443
    %v513 = vpop.f32.mrb[0].mxu0
    %v514 = vadd.f32 0.0, %v513
    %v515 = vpop.f32.mrb[0].mxu0
    %516 = vdwg.mxu0
    %v517 = vsel %vm275, %v514, -inf
    %518 = vmax.xlane.f32.xlu0 %v517
    %v519 = vpop.xlane.xlu0 %518
    %v520 = vsub.f32 %v514, %v519
    %v521 = vmul.f32 %v520, 1.442695
    %v522 = vpow.pop %v521
    %v523 = vsel %vm275, %v522, 0.0
    %524 = vadd.xlane.f32.xlu0 %v523
    %v525 = vpop.xlane.xlu0 %524
    %v526 = vrcp.pop %v525
    %v527 = vmul.f32 %v522, %v526
    %528 = vrot.lane.b32.xlu0 %v262, 56
    %v529 = vpop.permute.xlu0 %528
    %v532 = vsel %vm275, %v527, 0
    %534 = vmatprep.subr.mxu0 0.0
    %535 = vmatpush1.msra.mxu0 %v529
    %536 = vmatprep.subr.mxu0 0.0
    %537 = vmatpush1.msra.mxu0 0.0
    %538 = vmatprep.subr.mxu0 0.0
    %539 = vmatpush1.msra.mxu0 0.0
    %540 = vmatprep.subr.mxu0 0.0
    %541 = vmatpush1.msra.mxu0 0.0
    %542 = vmatprep.subr.mxu0 0.0
    %543 = vmatpush1.msra.mxu0 0.0
    %544 = vmatprep.subr.mxu0 0.0
    %545 = vmatpush1.msra.mxu0 0.0
    %546 = vmatprep.subr.mxu0 0.0
    %547 = vmatpush1.msra.mxu0 0.0
    %548 = vmatprep.subr.mxu0 0.0
    %549 = vmatpush1.msra.mxu0 0.0
    %550 = vmatprep.subr.mxu0 0.0
    %551 = vmatpush1.msra.mxu0 0.0
    %552 = vmatprep.subr.mxu0 0.0
    %553 = vmatpush1.msra.mxu0 0.0
    %554 = vmatprep.subr.mxu0 0.0
    %555 = vmatpush1.msra.mxu0 0.0
    %556 = vmatprep.subr.mxu0 0.0
    %557 = vmatpush1.msra.mxu0 0.0
    %558 = vmatprep.subr.mxu0 0.0
    %559 = vmatpush1.msra.mxu0 0.0
    %560 = vmatprep.subr.mxu0 0.0
    %561 = vmatpush1.msra.mxu0 0.0
    %562 = vmatprep.subr.mxu0 0.0
    %563 = vmatpush1.msra.mxu0 0.0
    %564 = vmatprep.subr.mxu0 0.0
    %565 = vmatpush1.msra.mxu0 0.0
    %566 = vmatprep.subr.mxu0 0.0
    %567 = vmatpush1.msra.mxu0 0.0
    %568 = vmatprep.subr.mxu0 0.0
    %569 = vmatpush1.msra.mxu0 0.0
    %570 = vmatprep.subr.mxu0 0.0
    %571 = vmatpush1.msra.mxu0 0.0
    %572 = vmatprep.subr.mxu0 0.0
    %573 = vmatpush1.msra.mxu0 0.0
    %574 = vmatprep.subr.mxu0 0.0
    %575 = vmatpush1.msra.mxu0 0.0
    %576 = vmatprep.subr.mxu0 0.0
    %577 = vmatpush1.msra.mxu0 0.0
    %578 = vmatprep.subr.mxu0 0.0
    %579 = vmatpush1.msra.mxu0 0.0
    %580 = vmatprep.subr.mxu0 0.0
    %581 = vmatpush1.msra.mxu0 0.0
    %582 = vmatprep.subr.mxu0 0.0
    %583 = vmatpush1.msra.mxu0 0.0
    %584 = vmatprep.subr.mxu0 0.0
    %585 = vmatpush1.msra.mxu0 0.0
    %586 = vmatprep.subr.mxu0 0.0
    %587 = vmatpush1.msra.mxu0 0.0
    %588 = vmatprep.subr.mxu0 0.0
    %589 = vmatpush1.msra.mxu0 0.0
    %590 = vmatprep.subr.mxu0 0.0
    %591 = vmatpush1.msra.mxu0 0.0
    %592 = vmatprep.subr.mxu0 0.0
    %593 = vmatpush1.msra.mxu0 0.0
    %594 = vmatprep.subr.mxu0 0.0
    %595 = vmatpush1.msra.mxu0 0.0
    %596 = vmatprep.subr.mxu0 0.0
    %597 = vmatpush1.msra.mxu0 0.0
    %598 = vmatprep.mubr.f32.mxu0 0.0
    %599 = vmatmul.mubr.f32.gmra.mrb[0].mxu0 %v532
    %v600 = vpop.f32.mrb[0].mxu0
    %v601 = vadd.f32 0.0, %v600
    %v602 = vpop.f32.mrb[0].mxu0
    %603 = vdwg.mxu0
    %605 = vrot.lane.b32.xlu0 %v601, 8
    %v606 = vpop.permute.xlu0 %605
    %vm608 = vcmask 130112
    %609 = vst.msk [vmem:[#allocation2] sm:$0xff] %vm608, %v606
    %610 = vrot.lane.b32.xlu0 %v270, 112
    %v611 = vpop.permute.xlu0 %610
    %612 = vrot.lane.b32.xlu0 %v262, 80
    %v613 = vpop.permute.xlu0 %612
    %v614 = vsel %vm275, %v611, 0
    %v616 = vsel %vm275, %v613, 0
    %618 = vmatprep.subr.mxu0 0.0
    %619 = vmatpush1.xpose.msra.mxu0 %v616
    %620 = vmatprep.subr.mxu0 0.0
    %621 = vmatpush1.xpose.msra.mxu0 0.0
    %622 = vmatprep.subr.mxu0 0.0
    %623 = vmatpush1.xpose.msra.mxu0 0.0
    %624 = vmatprep.subr.mxu0 0.0
    %625 = vmatpush1.xpose.msra.mxu0 0.0
    %626 = vmatprep.subr.mxu0 0.0
    %627 = vmatpush1.xpose.msra.mxu0 0.0
    %628 = vmatprep.subr.mxu0 0.0
    %629 = vmatpush1.xpose.msra.mxu0 0.0
    %630 = vmatprep.subr.mxu0 0.0
    %631 = vmatpush1.xpose.msra.mxu0 0.0
    %632 = vmatprep.subr.mxu0 0.0
    %633 = vmatpush1.xpose.msra.mxu0 0.0
    %634 = vmatprep.subr.mxu0 0.0
    %635 = vmatpush1.xpose.msra.mxu0 0.0
    %636 = vmatprep.subr.mxu0 0.0
    %637 = vmatpush1.xpose.msra.mxu0 0.0
    %638 = vmatprep.subr.mxu0 0.0
    %639 = vmatpush1.xpose.msra.mxu0 0.0
    %640 = vmatprep.subr.mxu0 0.0
    %641 = vmatpush1.xpose.msra.mxu0 0.0
    %642 = vmatprep.subr.mxu0 0.0
    %643 = vmatpush1.xpose.msra.mxu0 0.0
    %644 = vmatprep.subr.mxu0 0.0
    %645 = vmatpush1.xpose.msra.mxu0 0.0
    %646 = vmatprep.subr.mxu0 0.0
    %647 = vmatpush1.xpose.msra.mxu0 0.0
    %648 = vmatprep.subr.mxu0 0.0
    %649 = vmatpush1.xpose.msra.mxu0 0.0
    %650 = vmatprep.subr.mxu0 0.0
    %651 = vmatpush1.xpose.msra.mxu0 0.0
    %652 = vmatprep.subr.mxu0 0.0
    %653 = vmatpush1.xpose.msra.mxu0 0.0
    %654 = vmatprep.subr.mxu0 0.0
    %655 = vmatpush1.xpose.msra.mxu0 0.0
    %656 = vmatprep.subr.mxu0 0.0
    %657 = vmatpush1.xpose.msra.mxu0 0.0
    %658 = vmatprep.subr.mxu0 0.0
    %659 = vmatpush1.xpose.msra.mxu0 0.0
    %660 = vmatprep.subr.mxu0 0.0
    %661 = vmatpush1.xpose.msra.mxu0 0.0
    %662 = vmatprep.subr.mxu0 0.0
    %663 = vmatpush1.xpose.msra.mxu0 0.0
    %664 = vmatprep.subr.mxu0 0.0
    %665 = vmatpush1.xpose.msra.mxu0 0.0
    %666 = vmatprep.subr.mxu0 0.0
    %667 = vmatpush1.xpose.msra.mxu0 0.0
    %668 = vmatprep.subr.mxu0 0.0
    %669 = vmatpush1.xpose.msra.mxu0 0.0
    %670 = vmatprep.subr.mxu0 0.0
    %671 = vmatpush1.xpose.msra.mxu0 0.0
    %672 = vmatprep.subr.mxu0 0.0
    %673 = vmatpush1.xpose.msra.mxu0 0.0
    %674 = vmatprep.subr.mxu0 0.0
    %675 = vmatpush1.xpose.msra.mxu0 0.0
    %676 = vmatprep.subr.mxu0 0.0
    %677 = vmatpush1.xpose.msra.mxu0 0.0
    %678 = vmatprep.subr.mxu0 0.0
    %679 = vmatpush1.xpose.msra.mxu0 0.0
    %680 = vmatprep.subr.mxu0 0.0
    %681 = vmatpush1.xpose.msra.mxu0 0.0
    %682 = vmatprep.mubr.f32.mxu0 0.0
    %683 = vmatmul.mubr.f32.gmra.mrb[0].mxu0 %v614
    %v684 = vpop.f32.mrb[0].mxu0
    %v685 = vadd.f32 0.0, %v684
    %v686 = vpop.f32.mrb[0].mxu0
    %687 = vdwg.mxu0
    %v688 = vsel %vm275, %v685, -inf
    %689 = vmax.xlane.f32.xlu0 %v688
    %v690 = vpop.xlane.xlu0 %689
    %v691 = vsub.f32 %v685, %v690
    %v692 = vmul.f32 %v691, 1.442695
    %v693 = vpow.pop %v692
    %v694 = vsel %vm275, %v693, 0.0
    %695 = vadd.xlane.f32.xlu0 %v694
    %v696 = vpop.xlane.xlu0 %695
    %v697 = vrcp.pop %v696
    %v698 = vmul.f32 %v693, %v697
    %699 = vrot.lane.b32.xlu0 %v262, 48
    %v700 = vpop.permute.xlu0 %699
    %v703 = vsel %vm275, %v698, 0
    %705 = vmatprep.subr.mxu0 0.0
    %706 = vmatpush1.msra.mxu0 %v700
    %707 = vmatprep.subr.mxu0 0.0
    %708 = vmatpush1.msra.mxu0 0.0
    %709 = vmatprep.subr.mxu0 0.0
    %710 = vmatpush1.msra.mxu0 0.0
    %711 = vmatprep.subr.mxu0 0.0
    %712 = vmatpush1.msra.mxu0 0.0
    %713 = vmatprep.subr.mxu0 0.0
    %714 = vmatpush1.msra.mxu0 0.0
    %715 = vmatprep.subr.mxu0 0.0
    %716 = vmatpush1.msra.mxu0 0.0
    %717 = vmatprep.subr.mxu0 0.0
    %718 = vmatpush1.msra.mxu0 0.0
    %719 = vmatprep.subr.mxu0 0.0
    %720 = vmatpush1.msra.mxu0 0.0
    %721 = vmatprep.subr.mxu0 0.0
    %722 = vmatpush1.msra.mxu0 0.0
    %723 = vmatprep.subr.mxu0 0.0
    %724 = vmatpush1.msra.mxu0 0.0
    %725 = vmatprep.subr.mxu0 0.0
    %726 = vmatpush1.msra.mxu0 0.0
    %727 = vmatprep.subr.mxu0 0.0
    %728 = vmatpush1.msra.mxu0 0.0
    %729 = vmatprep.subr.mxu0 0.0
    %730 = vmatpush1.msra.mxu0 0.0
    %731 = vmatprep.subr.mxu0 0.0
    %732 = vmatpush1.msra.mxu0 0.0
    %733 = vmatprep.subr.mxu0 0.0
    %734 = vmatpush1.msra.mxu0 0.0
    %735 = vmatprep.subr.mxu0 0.0
    %736 = vmatpush1.msra.mxu0 0.0
    %737 = vmatprep.subr.mxu0 0.0
    %738 = vmatpush1.msra.mxu0 0.0
    %739 = vmatprep.subr.mxu0 0.0
    %740 = vmatpush1.msra.mxu0 0.0
    %741 = vmatprep.subr.mxu0 0.0
    %742 = vmatpush1.msra.mxu0 0.0
    %743 = vmatprep.subr.mxu0 0.0
    %744 = vmatpush1.msra.mxu0 0.0
    %745 = vmatprep.subr.mxu0 0.0
    %746 = vmatpush1.msra.mxu0 0.0
    %747 = vmatprep.subr.mxu0 0.0
    %748 = vmatpush1.msra.mxu0 0.0
    %749 = vmatprep.subr.mxu0 0.0
    %750 = vmatpush1.msra.mxu0 0.0
    %751 = vmatprep.subr.mxu0 0.0
    %752 = vmatpush1.msra.mxu0 0.0
    %753 = vmatprep.subr.mxu0 0.0
    %754 = vmatpush1.msra.mxu0 0.0
    %755 = vmatprep.subr.mxu0 0.0
    %756 = vmatpush1.msra.mxu0 0.0
    %757 = vmatprep.subr.mxu0 0.0
    %758 = vmatpush1.msra.mxu0 0.0
    %759 = vmatprep.subr.mxu0 0.0
    %760 = vmatpush1.msra.mxu0 0.0
    %761 = vmatprep.subr.mxu0 0.0
    %762 = vmatpush1.msra.mxu0 0.0
    %763 = vmatprep.subr.mxu0 0.0
    %764 = vmatpush1.msra.mxu0 0.0
    %765 = vmatprep.subr.mxu0 0.0
    %766 = vmatpush1.msra.mxu0 0.0
    %767 = vmatprep.subr.mxu0 0.0
    %768 = vmatpush1.msra.mxu0 0.0
    %769 = vmatprep.mubr.f32.mxu0 0.0
    %770 = vmatmul.mubr.f32.gmra.mrb[0].mxu0 %v703
    %v771 = vpop.f32.mrb[0].mxu0
    %v772 = vadd.f32 0.0, %v771
    %v773 = vpop.f32.mrb[0].mxu0
    %774 = vdwg.mxu0
    %776 = vrot.lane.b32.xlu0 %v772, 16
    %v777 = vpop.permute.xlu0 %776
    %vm779 = vcmask 195712
    %780 = vst.msk [vmem:[#allocation2] sm:$0xff] %vm779, %v777
    %781 = vrot.lane.b32.xlu0 %v270, 104
    %v782 = vpop.permute.xlu0 %781
    %783 = vrot.lane.b32.xlu0 %v262, 72
    %v784 = vpop.permute.xlu0 %783
    %v785 = vsel %vm275, %v782, 0
    %v787 = vsel %vm275, %v784, 0
    %789 = vmatprep.subr.mxu0 0.0
    %790 = vmatpush1.xpose.msra.mxu0 %v787
    %791 = vmatprep.subr.mxu0 0.0
    %792 = vmatpush1.xpose.msra.mxu0 0.0
    %793 = vmatprep.subr.mxu0 0.0
    %794 = vmatpush1.xpose.msra.mxu0 0.0
    %795 = vmatprep.subr.mxu0 0.0
    %796 = vmatpush1.xpose.msra.mxu0 0.0
    %797 = vmatprep.subr.mxu0 0.0
    %798 = vmatpush1.xpose.msra.mxu0 0.0
    %799 = vmatprep.subr.mxu0 0.0
    %800 = vmatpush1.xpose.msra.mxu0 0.0
    %801 = vmatprep.subr.mxu0 0.0
    %802 = vmatpush1.xpose.msra.mxu0 0.0
    %803 = vmatprep.subr.mxu0 0.0
    %804 = vmatpush1.xpose.msra.mxu0 0.0
    %805 = vmatprep.subr.mxu0 0.0
    %806 = vmatpush1.xpose.msra.mxu0 0.0
    %807 = vmatprep.subr.mxu0 0.0
    %808 = vmatpush1.xpose.msra.mxu0 0.0
    %809 = vmatprep.subr.mxu0 0.0
    %810 = vmatpush1.xpose.msra.mxu0 0.0
    %811 = vmatprep.subr.mxu0 0.0
    %812 = vmatpush1.xpose.msra.mxu0 0.0
    %813 = vmatprep.subr.mxu0 0.0
    %814 = vmatpush1.xpose.msra.mxu0 0.0
    %815 = vmatprep.subr.mxu0 0.0
    %816 = vmatpush1.xpose.msra.mxu0 0.0
    %817 = vmatprep.subr.mxu0 0.0
    %818 = vmatpush1.xpose.msra.mxu0 0.0
    %819 = vmatprep.subr.mxu0 0.0
    %820 = vmatpush1.xpose.msra.mxu0 0.0
    %821 = vmatprep.subr.mxu0 0.0
    %822 = vmatpush1.xpose.msra.mxu0 0.0
    %823 = vmatprep.subr.mxu0 0.0
    %824 = vmatpush1.xpose.msra.mxu0 0.0
    %825 = vmatprep.subr.mxu0 0.0
    %826 = vmatpush1.xpose.msra.mxu0 0.0
    %827 = vmatprep.subr.mxu0 0.0
    %828 = vmatpush1.xpose.msra.mxu0 0.0
    %829 = vmatprep.subr.mxu0 0.0
    %830 = vmatpush1.xpose.msra.mxu0 0.0
    %831 = vmatprep.subr.mxu0 0.0
    %832 = vmatpush1.xpose.msra.mxu0 0.0
    %833 = vmatprep.subr.mxu0 0.0
    %834 = vmatpush1.xpose.msra.mxu0 0.0
    %835 = vmatprep.subr.mxu0 0.0
    %836 = vmatpush1.xpose.msra.mxu0 0.0
    %837 = vmatprep.subr.mxu0 0.0
    %838 = vmatpush1.xpose.msra.mxu0 0.0
    %839 = vmatprep.subr.mxu0 0.0
    %840 = vmatpush1.xpose.msra.mxu0 0.0
    %841 = vmatprep.subr.mxu0 0.0
    %842 = vmatpush1.xpose.msra.mxu0 0.0
    %843 = vmatprep.subr.mxu0 0.0
    %844 = vmatpush1.xpose.msra.mxu0 0.0
    %845 = vmatprep.subr.mxu0 0.0
    %846 = vmatpush1.xpose.msra.mxu0 0.0
    %847 = vmatprep.subr.mxu0 0.0
    %848 = vmatpush1.xpose.msra.mxu0 0.0
    %849 = vmatprep.subr.mxu0 0.0
    %850 = vmatpush1.xpose.msra.mxu0 0.0
    %851 = vmatprep.subr.mxu0 0.0
    %852 = vmatpush1.xpose.msra.mxu0 0.0
    %853 = vmatprep.mubr.f32.mxu0 0.0
    %854 = vmatmul.mubr.f32.gmra.mrb[0].mxu0 %v785
    %v855 = vpop.f32.mrb[0].mxu0
    %v856 = vadd.f32 0.0, %v855
    %v857 = vpop.f32.mrb[0].mxu0
    %858 = vdwg.mxu0
    %v859 = vsel %vm275, %v856, -inf
    %860 = vmax.xlane.f32.xlu0 %v859
    %v861 = vpop.xlane.xlu0 %860
    %v862 = vsub.f32 %v856, %v861
    %v863 = vmul.f32 %v862, 1.442695
    %v864 = vpow.pop %v863
    %v865 = vsel %vm275, %v864, 0.0
    %866 = vadd.xlane.f32.xlu0 %v865
    %v867 = vpop.xlane.xlu0 %866
    %v868 = vrcp.pop %v867
    %v869 = vmul.f32 %v864, %v868
    %870 = vrot.lane.b32.xlu0 %v262, 40
    %v871 = vpop.permute.xlu0 %870
    %v874 = vsel %vm275, %v869, 0
    %876 = vmatprep.subr.mxu0 0.0
    %877 = vmatpush1.msra.mxu0 %v871
    %878 = vmatprep.subr.mxu0 0.0
    %879 = vmatpush1.msra.mxu0 0.0
    %880 = vmatprep.subr.mxu0 0.0
    %881 = vmatpush1.msra.mxu0 0.0
    %882 = vmatprep.subr.mxu0 0.0
    %883 = vmatpush1.msra.mxu0 0.0
    %884 = vmatprep.subr.mxu0 0.0
    %885 = vmatpush1.msra.mxu0 0.0
    %886 = vmatprep.subr.mxu0 0.0
    %887 = vmatpush1.msra.mxu0 0.0
    %888 = vmatprep.subr.mxu0 0.0
    %889 = vmatpush1.msra.mxu0 0.0
    %890 = vmatprep.subr.mxu0 0.0
    %891 = vmatpush1.msra.mxu0 0.0
    %892 = vmatprep.subr.mxu0 0.0
    %893 = vmatpush1.msra.mxu0 0.0
    %894 = vmatprep.subr.mxu0 0.0
    %895 = vmatpush1.msra.mxu0 0.0
    %896 = vmatprep.subr.mxu0 0.0
    %897 = vmatpush1.msra.mxu0 0.0
    %898 = vmatprep.subr.mxu0 0.0
    %899 = vmatpush1.msra.mxu0 0.0
    %900 = vmatprep.subr.mxu0 0.0
    %901 = vmatpush1.msra.mxu0 0.0
    %902 = vmatprep.subr.mxu0 0.0
    %903 = vmatpush1.msra.mxu0 0.0
    %904 = vmatprep.subr.mxu0 0.0
    %905 = vmatpush1.msra.mxu0 0.0
    %906 = vmatprep.subr.mxu0 0.0
    %907 = vmatpush1.msra.mxu0 0.0
    %908 = vmatprep.subr.mxu0 0.0
    %909 = vmatpush1.msra.mxu0 0.0
    %910 = vmatprep.subr.mxu0 0.0
    %911 = vmatpush1.msra.mxu0 0.0
    %912 = vmatprep.subr.mxu0 0.0
    %913 = vmatpush1.msra.mxu0 0.0
    %914 = vmatprep.subr.mxu0 0.0
    %915 = vmatpush1.msra.mxu0 0.0
    %916 = vmatprep.subr.mxu0 0.0
    %917 = vmatpush1.msra.mxu0 0.0
    %918 = vmatprep.subr.mxu0 0.0
    %919 = vmatpush1.msra.mxu0 0.0
    %920 = vmatprep.subr.mxu0 0.0
    %921 = vmatpush1.msra.mxu0 0.0
    %922 = vmatprep.subr.mxu0 0.0
    %923 = vmatpush1.msra.mxu0 0.0
    %924 = vmatprep.subr.mxu0 0.0
    %925 = vmatpush1.msra.mxu0 0.0
    %926 = vmatprep.subr.mxu0 0.0
    %927 = vmatpush1.msra.mxu0 0.0
    %928 = vmatprep.subr.mxu0 0.0
    %929 = vmatpush1.msra.mxu0 0.0
    %930 = vmatprep.subr.mxu0 0.0
    %931 = vmatpush1.msra.mxu0 0.0
    %932 = vmatprep.subr.mxu0 0.0
    %933 = vmatpush1.msra.mxu0 0.0
    %934 = vmatprep.subr.mxu0 0.0
    %935 = vmatpush1.msra.mxu0 0.0
    %936 = vmatprep.subr.mxu0 0.0
    %937 = vmatpush1.msra.mxu0 0.0
    %938 = vmatprep.subr.mxu0 0.0
    %939 = vmatpush1.msra.mxu0 0.0
    %940 = vmatprep.mubr.f32.mxu0 0.0
    %941 = vmatmul.mubr.f32.gmra.mrb[0].mxu0 %v874
    %v942 = vpop.f32.mrb[0].mxu0
    %v943 = vadd.f32 0.0, %v942
    %v944 = vpop.f32.mrb[0].mxu0
    %945 = vdwg.mxu0
    %947 = vrot.lane.b32.xlu0 %v943, 24
    %v948 = vpop.permute.xlu0 %947
    %vm950 = vcmask 261312
    %951 = vst.msk [vmem:[#allocation2] sm:$0xff] %vm950, %v948
    %953 = vrot.lane.b32.xlu0 %v267, 96
    %v954 = vpop.permute.xlu0 %953
    %v956 = vsel %vm275, %v271, 0
    %v958 = vsel %vm275, %v954, 0
    %960 = vmatprep.subr.mxu0 0.0
    %961 = vmatpush1.xpose.msra.mxu0 %v958
    %962 = vmatprep.subr.mxu0 0.0
    %963 = vmatpush1.xpose.msra.mxu0 0.0
    %964 = vmatprep.subr.mxu0 0.0
    %965 = vmatpush1.xpose.msra.mxu0 0.0
    %966 = vmatprep.subr.mxu0 0.0
    %967 = vmatpush1.xpose.msra.mxu0 0.0
    %968 = vmatprep.subr.mxu0 0.0
    %969 = vmatpush1.xpose.msra.mxu0 0.0
    %970 = vmatprep.subr.mxu0 0.0
    %971 = vmatpush1.xpose.msra.mxu0 0.0
    %972 = vmatprep.subr.mxu0 0.0
    %973 = vmatpush1.xpose.msra.mxu0 0.0
    %974 = vmatprep.subr.mxu0 0.0
    %975 = vmatpush1.xpose.msra.mxu0 0.0
    %976 = vmatprep.subr.mxu0 0.0
    %977 = vmatpush1.xpose.msra.mxu0 0.0
    %978 = vmatprep.subr.mxu0 0.0
    %979 = vmatpush1.xpose.msra.mxu0 0.0
    %980 = vmatprep.subr.mxu0 0.0
    %981 = vmatpush1.xpose.msra.mxu0 0.0
    %982 = vmatprep.subr.mxu0 0.0
    %983 = vmatpush1.xpose.msra.mxu0 0.0
    %984 = vmatprep.subr.mxu0 0.0
    %985 = vmatpush1.xpose.msra.mxu0 0.0
    %986 = vmatprep.subr.mxu0 0.0
    %987 = vmatpush1.xpose.msra.mxu0 0.0
    %988 = vmatprep.subr.mxu0 0.0
    %989 = vmatpush1.xpose.msra.mxu0 0.0
    %990 = vmatprep.subr.mxu0 0.0
    %991 = vmatpush1.xpose.msra.mxu0 0.0
    %992 = vmatprep.subr.mxu0 0.0
    %993 = vmatpush1.xpose.msra.mxu0 0.0
    %994 = vmatprep.subr.mxu0 0.0
    %995 = vmatpush1.xpose.msra.mxu0 0.0
    %996 = vmatprep.subr.mxu0 0.0
    %997 = vmatpush1.xpose.msra.mxu0 0.0
    %998 = vmatprep.subr.mxu0 0.0
    %999 = vmatpush1.xpose.msra.mxu0 0.0
    %1000 = vmatprep.subr.mxu0 0.0
    %1001 = vmatpush1.xpose.msra.mxu0 0.0
    %1002 = vmatprep.subr.mxu0 0.0
    %1003 = vmatpush1.xpose.msra.mxu0 0.0
    %1004 = vmatprep.subr.mxu0 0.0
    %1005 = vmatpush1.xpose.msra.mxu0 0.0
    %1006 = vmatprep.subr.mxu0 0.0
    %1007 = vmatpush1.xpose.msra.mxu0 0.0
    %1008 = vmatprep.subr.mxu0 0.0
    %1009 = vmatpush1.xpose.msra.mxu0 0.0
    %1010 = vmatprep.subr.mxu0 0.0
    %1011 = vmatpush1.xpose.msra.mxu0 0.0
    %1012 = vmatprep.subr.mxu0 0.0
    %1013 = vmatpush1.xpose.msra.mxu0 0.0
    %1014 = vmatprep.subr.mxu0 0.0
    %1015 = vmatpush1.xpose.msra.mxu0 0.0
    %1016 = vmatprep.subr.mxu0 0.0
    %1017 = vmatpush1.xpose.msra.mxu0 0.0
    %1018 = vmatprep.subr.mxu0 0.0
    %1019 = vmatpush1.xpose.msra.mxu0 0.0
    %1020 = vmatprep.subr.mxu0 0.0
    %1021 = vmatpush1.xpose.msra.mxu0 0.0
    %1022 = vmatprep.subr.mxu0 0.0
    %1023 = vmatpush1.xpose.msra.mxu0 0.0
    %1024 = vmatprep.mubr.f32.mxu0 0.0
    %1025 = vmatmul.mubr.f32.gmra.mrb[0].mxu0 %v956
    %v1026 = vpop.f32.mrb[0].mxu0
    %v1027 = vadd.f32 0.0, %v1026
    %v1028 = vpop.f32.mrb[0].mxu0
    %1029 = vdwg.mxu0
    %v1030 = vsel %vm275, %v1027, -inf
    %1031 = vmax.xlane.f32.xlu0 %v1030
    %v1032 = vpop.xlane.xlu0 %1031
    %v1033 = vsub.f32 %v1027, %v1032
    %v1034 = vmul.f32 %v1033, 1.442695
    %v1035 = vpow.pop %v1034
    %v1036 = vsel %vm275, %v1035, 0.0
    %1037 = vadd.xlane.f32.xlu0 %v1036
    %v1038 = vpop.xlane.xlu0 %1037
    %v1039 = vrcp.pop %v1038
    %v1040 = vmul.f32 %v1035, %v1039
    %1041 = vrot.lane.b32.xlu0 %v267, 64
    %v1042 = vpop.permute.xlu0 %1041
    %v1045 = vsel %vm275, %v1040, 0
    %1047 = vmatprep.subr.mxu0 0.0
    %1048 = vmatpush1.msra.mxu0 %v1042
    %1049 = vmatprep.subr.mxu0 0.0
    %1050 = vmatpush1.msra.mxu0 0.0
    %1051 = vmatprep.subr.mxu0 0.0
    %1052 = vmatpush1.msra.mxu0 0.0
    %1053 = vmatprep.subr.mxu0 0.0
    %1054 = vmatpush1.msra.mxu0 0.0
    %1055 = vmatprep.subr.mxu0 0.0
    %1056 = vmatpush1.msra.mxu0 0.0
    %1057 = vmatprep.subr.mxu0 0.0
    %1058 = vmatpush1.msra.mxu0 0.0
    %1059 = vmatprep.subr.mxu0 0.0
    %1060 = vmatpush1.msra.mxu0 0.0
    %1061 = vmatprep.subr.mxu0 0.0
    %1062 = vmatpush1.msra.mxu0 0.0
    %1063 = vmatprep.subr.mxu0 0.0
    %1064 = vmatpush1.msra.mxu0 0.0
    %1065 = vmatprep.subr.mxu0 0.0
    %1066 = vmatpush1.msra.mxu0 0.0
    %1067 = vmatprep.subr.mxu0 0.0
    %1068 = vmatpush1.msra.mxu0 0.0
    %1069 = vmatprep.subr.mxu0 0.0
    %1070 = vmatpush1.msra.mxu0 0.0
    %1071 = vmatprep.subr.mxu0 0.0
    %1072 = vmatpush1.msra.mxu0 0.0
    %1073 = vmatprep.subr.mxu0 0.0
    %1074 = vmatpush1.msra.mxu0 0.0
    %1075 = vmatprep.subr.mxu0 0.0
    %1076 = vmatpush1.msra.mxu0 0.0
    %1077 = vmatprep.subr.mxu0 0.0
    %1078 = vmatpush1.msra.mxu0 0.0
    %1079 = vmatprep.subr.mxu0 0.0
    %1080 = vmatpush1.msra.mxu0 0.0
    %1081 = vmatprep.subr.mxu0 0.0
    %1082 = vmatpush1.msra.mxu0 0.0
    %1083 = vmatprep.subr.mxu0 0.0
    %1084 = vmatpush1.msra.mxu0 0.0
    %1085 = vmatprep.subr.mxu0 0.0
    %1086 = vmatpush1.msra.mxu0 0.0
    %1087 = vmatprep.subr.mxu0 0.0
    %1088 = vmatpush1.msra.mxu0 0.0
    %1089 = vmatprep.subr.mxu0 0.0
    %1090 = vmatpush1.msra.mxu0 0.0
    %1091 = vmatprep.subr.mxu0 0.0
    %1092 = vmatpush1.msra.mxu0 0.0
    %1093 = vmatprep.subr.mxu0 0.0
    %1094 = vmatpush1.msra.mxu0 0.0
    %1095 = vmatprep.subr.mxu0 0.0
    %1096 = vmatpush1.msra.mxu0 0.0
    %1097 = vmatprep.subr.mxu0 0.0
    %1098 = vmatpush1.msra.mxu0 0.0
    %1099 = vmatprep.subr.mxu0 0.0
    %1100 = vmatpush1.msra.mxu0 0.0
    %1101 = vmatprep.subr.mxu0 0.0
    %1102 = vmatpush1.msra.mxu0 0.0
    %1103 = vmatprep.subr.mxu0 0.0
    %1104 = vmatpush1.msra.mxu0 0.0
    %1105 = vmatprep.subr.mxu0 0.0
    %1106 = vmatpush1.msra.mxu0 0.0
    %1107 = vmatprep.subr.mxu0 0.0
    %1108 = vmatpush1.msra.mxu0 0.0
    %1109 = vmatprep.subr.mxu0 0.0
    %1110 = vmatpush1.msra.mxu0 0.0
    %1111 = vmatprep.mubr.f32.mxu0 0.0
    %1112 = vmatmul.mubr.f32.gmra.mrb[0].mxu0 %v1045
    %v1113 = vpop.f32.mrb[0].mxu0
    %v1114 = vadd.f32 0.0, %v1113
    %v1115 = vpop.f32.mrb[0].mxu0
    %1116 = vdwg.mxu0
    %1117 = vst.msk [vmem:[#allocation2 + $0x8] sm:$0xff] %vm275, %v1114
    %1118 = vrot.lane.b32.xlu0 %v271, 120
    %v1119 = vpop.permute.xlu0 %1118
    %1120 = vrot.lane.b32.xlu0 %v267, 88
    %v1121 = vpop.permute.xlu0 %1120
    %v1122 = vsel %vm275, %v1119, 0
    %v1124 = vsel %vm275, %v1121, 0
    %1126 = vmatprep.subr.mxu0 0.0
    %1127 = vmatpush1.xpose.msra.mxu0 %v1124
    %1128 = vmatprep.subr.mxu0 0.0
    %1129 = vmatpush1.xpose.msra.mxu0 0.0
    %1130 = vmatprep.subr.mxu0 0.0
    %1131 = vmatpush1.xpose.msra.mxu0 0.0
    %1132 = vmatprep.subr.mxu0 0.0
    %1133 = vmatpush1.xpose.msra.mxu0 0.0
    %1134 = vmatprep.subr.mxu0 0.0
    %1135 = vmatpush1.xpose.msra.mxu0 0.0
    %1136 = vmatprep.subr.mxu0 0.0
    %1137 = vmatpush1.xpose.msra.mxu0 0.0
    %1138 = vmatprep.subr.mxu0 0.0
    %1139 = vmatpush1.xpose.msra.mxu0 0.0
    %1140 = vmatprep.subr.mxu0 0.0
    %1141 = vmatpush1.xpose.msra.mxu0 0.0
    %1142 = vmatprep.subr.mxu0 0.0
    %1143 = vmatpush1.xpose.msra.mxu0 0.0
    %1144 = vmatprep.subr.mxu0 0.0
    %1145 = vmatpush1.xpose.msra.mxu0 0.0
    %1146 = vmatprep.subr.mxu0 0.0
    %1147 = vmatpush1.xpose.msra.mxu0 0.0
    %1148 = vmatprep.subr.mxu0 0.0
    %1149 = vmatpush1.xpose.msra.mxu0 0.0
    %1150 = vmatprep.subr.mxu0 0.0
    %1151 = vmatpush1.xpose.msra.mxu0 0.0
    %1152 = vmatprep.subr.mxu0 0.0
    %1153 = vmatpush1.xpose.msra.mxu0 0.0
    %1154 = vmatprep.subr.mxu0 0.0
    %1155 = vmatpush1.xpose.msra.mxu0 0.0
    %1156 = vmatprep.subr.mxu0 0.0
    %1157 = vmatpush1.xpose.msra.mxu0 0.0
    %1158 = vmatprep.subr.mxu0 0.0
    %1159 = vmatpush1.xpose.msra.mxu0 0.0
    %1160 = vmatprep.subr.mxu0 0.0
    %1161 = vmatpush1.xpose.msra.mxu0 0.0
    %1162 = vmatprep.subr.mxu0 0.0
    %1163 = vmatpush1.xpose.msra.mxu0 0.0
    %1164 = vmatprep.subr.mxu0 0.0
    %1165 = vmatpush1.xpose.msra.mxu0 0.0
    %1166 = vmatprep.subr.mxu0 0.0
    %1167 = vmatpush1.xpose.msra.mxu0 0.0
    %1168 = vmatprep.subr.mxu0 0.0
    %1169 = vmatpush1.xpose.msra.mxu0 0.0
    %1170 = vmatprep.subr.mxu0 0.0
    %1171 = vmatpush1.xpose.msra.mxu0 0.0
    %1172 = vmatprep.subr.mxu0 0.0
    %1173 = vmatpush1.xpose.msra.mxu0 0.0
    %1174 = vmatprep.subr.mxu0 0.0
    %1175 = vmatpush1.xpose.msra.mxu0 0.0
    %1176 = vmatprep.subr.mxu0 0.0
    %1177 = vmatpush1.xpose.msra.mxu0 0.0
    %1178 = vmatprep.subr.mxu0 0.0
    %1179 = vmatpush1.xpose.msra.mxu0 0.0
    %1180 = vmatprep.subr.mxu0 0.0
    %1181 = vmatpush1.xpose.msra.mxu0 0.0
    %1182 = vmatprep.subr.mxu0 0.0
    %1183 = vmatpush1.xpose.msra.mxu0 0.0
    %1184 = vmatprep.subr.mxu0 0.0
    %1185 = vmatpush1.xpose.msra.mxu0 0.0
    %1186 = vmatprep.subr.mxu0 0.0
    %1187 = vmatpush1.xpose.msra.mxu0 0.0
    %1188 = vmatprep.subr.mxu0 0.0
    %1189 = vmatpush1.xpose.msra.mxu0 0.0
    %1190 = vmatprep.mubr.f32.mxu0 0.0
    %1191 = vmatmul.mubr.f32.gmra.mrb[0].mxu0 %v1122
    %v1192 = vpop.f32.mrb[0].mxu0
    %v1193 = vadd.f32 0.0, %v1192
    %v1194 = vpop.f32.mrb[0].mxu0
    %1195 = vdwg.mxu0
    %v1196 = vsel %vm275, %v1193, -inf
    %1197 = vmax.xlane.f32.xlu0 %v1196
    %v1198 = vpop.xlane.xlu0 %1197
    %v1199 = vsub.f32 %v1193, %v1198
    %v1200 = vmul.f32 %v1199, 1.442695
    %v1201 = vpow.pop %v1200
    %v1202 = vsel %vm275, %v1201, 0.0
    %1203 = vadd.xlane.f32.xlu0 %v1202
    %v1204 = vpop.xlane.xlu0 %1203
    %v1205 = vrcp.pop %v1204
    %v1206 = vmul.f32 %v1201, %v1205
    %1207 = vrot.lane.b32.xlu0 %v267, 56
    %v1208 = vpop.permute.xlu0 %1207
    %v1211 = vsel %vm275, %v1206, 0
    %1213 = vmatprep.subr.mxu0 0.0
    %1214 = vmatpush1.msra.mxu0 %v1208
    %1215 = vmatprep.subr.mxu0 0.0
    %1216 = vmatpush1.msra.mxu0 0.0
    %1217 = vmatprep.subr.mxu0 0.0
    %1218 = vmatpush1.msra.mxu0 0.0
    %1219 = vmatprep.subr.mxu0 0.0
    %1220 = vmatpush1.msra.mxu0 0.0
    %1221 = vmatprep.subr.mxu0 0.0
    %1222 = vmatpush1.msra.mxu0 0.0
    %1223 = vmatprep.subr.mxu0 0.0
    %1224 = vmatpush1.msra.mxu0 0.0
    %1225 = vmatprep.subr.mxu0 0.0
    %1226 = vmatpush1.msra.mxu0 0.0
    %1227 = vmatprep.subr.mxu0 0.0
    %1228 = vmatpush1.msra.mxu0 0.0
    %1229 = vmatprep.subr.mxu0 0.0
    %1230 = vmatpush1.msra.mxu0 0.0
    %1231 = vmatprep.subr.mxu0 0.0
    %1232 = vmatpush1.msra.mxu0 0.0
    %1233 = vmatprep.subr.mxu0 0.0
    %1234 = vmatpush1.msra.mxu0 0.0
    %1235 = vmatprep.subr.mxu0 0.0
    %1236 = vmatpush1.msra.mxu0 0.0
    %1237 = vmatprep.subr.mxu0 0.0
    %1238 = vmatpush1.msra.mxu0 0.0
    %1239 = vmatprep.subr.mxu0 0.0
    %1240 = vmatpush1.msra.mxu0 0.0
    %1241 = vmatprep.subr.mxu0 0.0
    %1242 = vmatpush1.msra.mxu0 0.0
    %1243 = vmatprep.subr.mxu0 0.0
    %1244 = vmatpush1.msra.mxu0 0.0
    %1245 = vmatprep.subr.mxu0 0.0
    %1246 = vmatpush1.msra.mxu0 0.0
    %1247 = vmatprep.subr.mxu0 0.0
    %1248 = vmatpush1.msra.mxu0 0.0
    %1249 = vmatprep.subr.mxu0 0.0
    %1250 = vmatpush1.msra.mxu0 0.0
    %1251 = vmatprep.subr.mxu0 0.0
    %1252 = vmatpush1.msra.mxu0 0.0
    %1253 = vmatprep.subr.mxu0 0.0
    %1254 = vmatpush1.msra.mxu0 0.0
    %1255 = vmatprep.subr.mxu0 0.0
    %1256 = vmatpush1.msra.mxu0 0.0
    %1257 = vmatprep.subr.mxu0 0.0
    %1258 = vmatpush1.msra.mxu0 0.0
    %1259 = vmatprep.subr.mxu0 0.0
    %1260 = vmatpush1.msra.mxu0 0.0
    %1261 = vmatprep.subr.mxu0 0.0
    %1262 = vmatpush1.msra.mxu0 0.0
    %1263 = vmatprep.subr.mxu0 0.0
    %1264 = vmatpush1.msra.mxu0 0.0
    %1265 = vmatprep.subr.mxu0 0.0
    %1266 = vmatpush1.msra.mxu0 0.0
    %1267 = vmatprep.subr.mxu0 0.0
    %1268 = vmatpush1.msra.mxu0 0.0
    %1269 = vmatprep.subr.mxu0 0.0
    %1270 = vmatpush1.msra.mxu0 0.0
    %1271 = vmatprep.subr.mxu0 0.0
    %1272 = vmatpush1.msra.mxu0 0.0
    %1273 = vmatprep.subr.mxu0 0.0
    %1274 = vmatpush1.msra.mxu0 0.0
    %1275 = vmatprep.subr.mxu0 0.0
    %1276 = vmatpush1.msra.mxu0 0.0
    %1277 = vmatprep.mubr.f32.mxu0 0.0
    %1278 = vmatmul.mubr.f32.gmra.mrb[0].mxu0 %v1211
    %v1279 = vpop.f32.mrb[0].mxu0
    %v1280 = vadd.f32 0.0, %v1279
    %v1281 = vpop.f32.mrb[0].mxu0
    %1282 = vdwg.mxu0
    %1284 = vrot.lane.b32.xlu0 %v1280, 8
    %v1285 = vpop.permute.xlu0 %1284
    %1287 = vst.msk [vmem:[#allocation2 + $0x8] sm:$0xff] %vm608, %v1285
    %1288 = vrot.lane.b32.xlu0 %v271, 112
    %v1289 = vpop.permute.xlu0 %1288
    %1290 = vrot.lane.b32.xlu0 %v267, 80
    %v1291 = vpop.permute.xlu0 %1290
    %v1292 = vsel %vm275, %v1289, 0
    %v1294 = vsel %vm275, %v1291, 0
    %1296 = vmatprep.subr.mxu0 0.0
    %1297 = vmatpush1.xpose.msra.mxu0 %v1294
    %1298 = vmatprep.subr.mxu0 0.0
    %1299 = vmatpush1.xpose.msra.mxu0 0.0
    %1300 = vmatprep.subr.mxu0 0.0
    %1301 = vmatpush1.xpose.msra.mxu0 0.0
    %1302 = vmatprep.subr.mxu0 0.0
    %1303 = vmatpush1.xpose.msra.mxu0 0.0
    %1304 = vmatprep.subr.mxu0 0.0
    %1305 = vmatpush1.xpose.msra.mxu0 0.0
    %1306 = vmatprep.subr.mxu0 0.0
    %1307 = vmatpush1.xpose.msra.mxu0 0.0
    %1308 = vmatprep.subr.mxu0 0.0
    %1309 = vmatpush1.xpose.msra.mxu0 0.0
    %1310 = vmatprep.subr.mxu0 0.0
    %1311 = vmatpush1.xpose.msra.mxu0 0.0
    %1312 = vmatprep.subr.mxu0 0.0
    %1313 = vmatpush1.xpose.msra.mxu0 0.0
    %1314 = vmatprep.subr.mxu0 0.0
    %1315 = vmatpush1.xpose.msra.mxu0 0.0
    %1316 = vmatprep.subr.mxu0 0.0
    %1317 = vmatpush1.xpose.msra.mxu0 0.0
    %1318 = vmatprep.subr.mxu0 0.0
    %1319 = vmatpush1.xpose.msra.mxu0 0.0
    %1320 = vmatprep.subr.mxu0 0.0
    %1321 = vmatpush1.xpose.msra.mxu0 0.0
    %1322 = vmatprep.subr.mxu0 0.0
    %1323 = vmatpush1.xpose.msra.mxu0 0.0
    %1324 = vmatprep.subr.mxu0 0.0
    %1325 = vmatpush1.xpose.msra.mxu0 0.0
    %1326 = vmatprep.subr.mxu0 0.0
    %1327 = vmatpush1.xpose.msra.mxu0 0.0
    %1328 = vmatprep.subr.mxu0 0.0
    %1329 = vmatpush1.xpose.msra.mxu0 0.0
    %1330 = vmatprep.subr.mxu0 0.0
    %1331 = vmatpush1.xpose.msra.mxu0 0.0
    %1332 = vmatprep.subr.mxu0 0.0
    %1333 = vmatpush1.xpose.msra.mxu0 0.0
    %1334 = vmatprep.subr.mxu0 0.0
    %1335 = vmatpush1.xpose.msra.mxu0 0.0
    %1336 = vmatprep.subr.mxu0 0.0
    %1337 = vmatpush1.xpose.msra.mxu0 0.0
    %1338 = vmatprep.subr.mxu0 0.0
    %1339 = vmatpush1.xpose.msra.mxu0 0.0
    %1340 = vmatprep.subr.mxu0 0.0
    %1341 = vmatpush1.xpose.msra.mxu0 0.0
    %1342 = vmatprep.subr.mxu0 0.0
    %1343 = vmatpush1.xpose.msra.mxu0 0.0
    %1344 = vmatprep.subr.mxu0 0.0
    %1345 = vmatpush1.xpose.msra.mxu0 0.0
    %1346 = vmatprep.subr.mxu0 0.0
    %1347 = vmatpush1.xpose.msra.mxu0 0.0
    %1348 = vmatprep.subr.mxu0 0.0
    %1349 = vmatpush1.xpose.msra.mxu0 0.0
    %1350 = vmatprep.subr.mxu0 0.0
    %1351 = vmatpush1.xpose.msra.mxu0 0.0
    %1352 = vmatprep.subr.mxu0 0.0
    %1353 = vmatpush1.xpose.msra.mxu0 0.0
    %1354 = vmatprep.subr.mxu0 0.0
    %1355 = vmatpush1.xpose.msra.mxu0 0.0
    %1356 = vmatprep.subr.mxu0 0.0
    %1357 = vmatpush1.xpose.msra.mxu0 0.0
    %1358 = vmatprep.subr.mxu0 0.0
    %1359 = vmatpush1.xpose.msra.mxu0 0.0
    %1360 = vmatprep.mubr.f32.mxu0 0.0
    %1361 = vmatmul.mubr.f32.gmra.mrb[0].mxu0 %v1292
    %v1362 = vpop.f32.mrb[0].mxu0
    %v1363 = vadd.f32 0.0, %v1362
    %v1364 = vpop.f32.mrb[0].mxu0
    %1365 = vdwg.mxu0
    %v1366 = vsel %vm275, %v1363, -inf
    %1367 = vmax.xlane.f32.xlu0 %v1366
    %v1368 = vpop.xlane.xlu0 %1367
    %v1369 = vsub.f32 %v1363, %v1368
    %v1370 = vmul.f32 %v1369, 1.442695
    %v1371 = vpow.pop %v1370
    %v1372 = vsel %vm275, %v1371, 0.0
    %1373 = vadd.xlane.f32.xlu0 %v1372
    %v1374 = vpop.xlane.xlu0 %1373
    %v1375 = vrcp.pop %v1374
    %v1376 = vmul.f32 %v1371, %v1375
    %1377 = vrot.lane.b32.xlu0 %v267, 48
    %v1378 = vpop.permute.xlu0 %1377
    %v1381 = vsel %vm275, %v1376, 0
    %1383 = vmatprep.subr.mxu0 0.0
    %1384 = vmatpush1.msra.mxu0 %v1378
    %1385 = vmatprep.subr.mxu0 0.0
    %1386 = vmatpush1.msra.mxu0 0.0
    %1387 = vmatprep.subr.mxu0 0.0
    %1388 = vmatpush1.msra.mxu0 0.0
    %1389 = vmatprep.subr.mxu0 0.0
    %1390 = vmatpush1.msra.mxu0 0.0
    %1391 = vmatprep.subr.mxu0 0.0
    %1392 = vmatpush1.msra.mxu0 0.0
    %1393 = vmatprep.subr.mxu0 0.0
    %1394 = vmatpush1.msra.mxu0 0.0
    %1395 = vmatprep.subr.mxu0 0.0
    %1396 = vmatpush1.msra.mxu0 0.0
    %1397 = vmatprep.subr.mxu0 0.0
    %1398 = vmatpush1.msra.mxu0 0.0
    %1399 = vmatprep.subr.mxu0 0.0
    %1400 = vmatpush1.msra.mxu0 0.0
    %1401 = vmatprep.subr.mxu0 0.0
    %1402 = vmatpush1.msra.mxu0 0.0
    %1403 = vmatprep.subr.mxu0 0.0
    %1404 = vmatpush1.msra.mxu0 0.0
    %1405 = vmatprep.subr.mxu0 0.0
    %1406 = vmatpush1.msra.mxu0 0.0
    %1407 = vmatprep.subr.mxu0 0.0
    %1408 = vmatpush1.msra.mxu0 0.0
    %1409 = vmatprep.subr.mxu0 0.0
    %1410 = vmatpush1.msra.mxu0 0.0
    %1411 = vmatprep.subr.mxu0 0.0
    %1412 = vmatpush1.msra.mxu0 0.0
    %1413 = vmatprep.subr.mxu0 0.0
    %1414 = vmatpush1.msra.mxu0 0.0
    %1415 = vmatprep.subr.mxu0 0.0
    %1416 = vmatpush1.msra.mxu0 0.0
    %1417 = vmatprep.subr.mxu0 0.0
    %1418 = vmatpush1.msra.mxu0 0.0
    %1419 = vmatprep.subr.mxu0 0.0
    %1420 = vmatpush1.msra.mxu0 0.0
    %1421 = vmatprep.subr.mxu0 0.0
    %1422 = vmatpush1.msra.mxu0 0.0
    %1423 = vmatprep.subr.mxu0 0.0
    %1424 = vmatpush1.msra.mxu0 0.0
    %1425 = vmatprep.subr.mxu0 0.0
    %1426 = vmatpush1.msra.mxu0 0.0
    %1427 = vmatprep.subr.mxu0 0.0
    %1428 = vmatpush1.msra.mxu0 0.0
    %1429 = vmatprep.subr.mxu0 0.0
    %1430 = vmatpush1.msra.mxu0 0.0
    %1431 = vmatprep.subr.mxu0 0.0
    %1432 = vmatpush1.msra.mxu0 0.0
    %1433 = vmatprep.subr.mxu0 0.0
    %1434 = vmatpush1.msra.mxu0 0.0
    %1435 = vmatprep.subr.mxu0 0.0
    %1436 = vmatpush1.msra.mxu0 0.0
    %1437 = vmatprep.subr.mxu0 0.0
    %1438 = vmatpush1.msra.mxu0 0.0
    %1439 = vmatprep.subr.mxu0 0.0
    %1440 = vmatpush1.msra.mxu0 0.0
    %1441 = vmatprep.subr.mxu0 0.0
    %1442 = vmatpush1.msra.mxu0 0.0
    %1443 = vmatprep.subr.mxu0 0.0
    %1444 = vmatpush1.msra.mxu0 0.0
    %1445 = vmatprep.subr.mxu0 0.0
    %1446 = vmatpush1.msra.mxu0 0.0
    %1447 = vmatprep.mubr.f32.mxu0 0.0
    %1448 = vmatmul.mubr.f32.gmra.mrb[0].mxu0 %v1381
    %v1449 = vpop.f32.mrb[0].mxu0
    %v1450 = vadd.f32 0.0, %v1449
    %v1451 = vpop.f32.mrb[0].mxu0
    %1452 = vdwg.mxu0
    %1454 = vrot.lane.b32.xlu0 %v1450, 16
    %v1455 = vpop.permute.xlu0 %1454
    %1457 = vst.msk [vmem:[#allocation2 + $0x8] sm:$0xff] %vm779, %v1455
    %1458 = vrot.lane.b32.xlu0 %v271, 104
    %v1459 = vpop.permute.xlu0 %1458
    %1460 = vrot.lane.b32.xlu0 %v267, 72
    %v1461 = vpop.permute.xlu0 %1460
    %v1462 = vsel %vm275, %v1459, 0
    %v1464 = vsel %vm275, %v1461, 0
    %1466 = vmatprep.subr.mxu0 0.0
    %1467 = vmatpush1.xpose.msra.mxu0 %v1464
    %1468 = vmatprep.subr.mxu0 0.0
    %1469 = vmatpush1.xpose.msra.mxu0 0.0
    %1470 = vmatprep.subr.mxu0 0.0
    %1471 = vmatpush1.xpose.msra.mxu0 0.0
    %1472 = vmatprep.subr.mxu0 0.0
    %1473 = vmatpush1.xpose.msra.mxu0 0.0
    %1474 = vmatprep.subr.mxu0 0.0
    %1475 = vmatpush1.xpose.msra.mxu0 0.0
    %1476 = vmatprep.subr.mxu0 0.0
    %1477 = vmatpush1.xpose.msra.mxu0 0.0
    %1478 = vmatprep.subr.mxu0 0.0
    %1479 = vmatpush1.xpose.msra.mxu0 0.0
    %1480 = vmatprep.subr.mxu0 0.0
    %1481 = vmatpush1.xpose.msra.mxu0 0.0
    %1482 = vmatprep.subr.mxu0 0.0
    %1483 = vmatpush1.xpose.msra.mxu0 0.0
    %1484 = vmatprep.subr.mxu0 0.0
    %1485 = vmatpush1.xpose.msra.mxu0 0.0
    %1486 = vmatprep.subr.mxu0 0.0
    %1487 = vmatpush1.xpose.msra.mxu0 0.0
    %1488 = vmatprep.subr.mxu0 0.0
    %1489 = vmatpush1.xpose.msra.mxu0 0.0
    %1490 = vmatprep.subr.mxu0 0.0
    %1491 = vmatpush1.xpose.msra.mxu0 0.0
    %1492 = vmatprep.subr.mxu0 0.0
    %1493 = vmatpush1.xpose.msra.mxu0 0.0
    %1494 = vmatprep.subr.mxu0 0.0
    %1495 = vmatpush1.xpose.msra.mxu0 0.0
    %1496 = vmatprep.subr.mxu0 0.0
    %1497 = vmatpush1.xpose.msra.mxu0 0.0
    %1498 = vmatprep.subr.mxu0 0.0
    %1499 = vmatpush1.xpose.msra.mxu0 0.0
    %1500 = vmatprep.subr.mxu0 0.0
    %1501 = vmatpush1.xpose.msra.mxu0 0.0
    %1502 = vmatprep.subr.mxu0 0.0
    %1503 = vmatpush1.xpose.msra.mxu0 0.0
    %1504 = vmatprep.subr.mxu0 0.0
    %1505 = vmatpush1.xpose.msra.mxu0 0.0
    %1506 = vmatprep.subr.mxu0 0.0
    %1507 = vmatpush1.xpose.msra.mxu0 0.0
    %1508 = vmatprep.subr.mxu0 0.0
    %1509 = vmatpush1.xpose.msra.mxu0 0.0
    %1510 = vmatprep.subr.mxu0 0.0
    %1511 = vmatpush1.xpose.msra.mxu0 0.0
    %1512 = vmatprep.subr.mxu0 0.0
    %1513 = vmatpush1.xpose.msra.mxu0 0.0
    %1514 = vmatprep.subr.mxu0 0.0
    %1515 = vmatpush1.xpose.msra.mxu0 0.0
    %1516 = vmatprep.subr.mxu0 0.0
    %1517 = vmatpush1.xpose.msra.mxu0 0.0
    %1518 = vmatprep.subr.mxu0 0.0
    %1519 = vmatpush1.xpose.msra.mxu0 0.0
    %1520 = vmatprep.subr.mxu0 0.0
    %1521 = vmatpush1.xpose.msra.mxu0 0.0
    %1522 = vmatprep.subr.mxu0 0.0
    %1523 = vmatpush1.xpose.msra.mxu0 0.0
    %1524 = vmatprep.subr.mxu0 0.0
    %1525 = vmatpush1.xpose.msra.mxu0 0.0
    %1526 = vmatprep.subr.mxu0 0.0
    %1527 = vmatpush1.xpose.msra.mxu0 0.0
    %1528 = vmatprep.subr.mxu0 0.0
    %1529 = vmatpush1.xpose.msra.mxu0 0.0
    %1530 = vmatprep.mubr.f32.mxu0 0.0
    %1531 = vmatmul.mubr.f32.gmra.mrb[0].mxu0 %v1462
    %v1532 = vpop.f32.mrb[0].mxu0
    %v1533 = vadd.f32 0.0, %v1532
    %v1534 = vpop.f32.mrb[0].mxu0
    %1535 = vdwg.mxu0
    %v1536 = vsel %vm275, %v1533, -inf
    %1537 = vmax.xlane.f32.xlu0 %v1536
    %v1538 = vpop.xlane.xlu0 %1537
    %v1539 = vsub.f32 %v1533, %v1538
    %v1540 = vmul.f32 %v1539, 1.442695
    %v1541 = vpow.pop %v1540
    %v1542 = vsel %vm275, %v1541, 0.0
    %1543 = vadd.xlane.f32.xlu0 %v1542
    %v1544 = vpop.xlane.xlu0 %1543
    %v1545 = vrcp.pop %v1544
    %v1546 = vmul.f32 %v1541, %v1545
    %1547 = vrot.lane.b32.xlu0 %v267, 40
    %v1548 = vpop.permute.xlu0 %1547
    %v1551 = vsel %vm275, %v1546, 0
    %1553 = vmatprep.subr.mxu0 0.0
    %1554 = vmatpush1.msra.mxu0 %v1548
    %1555 = vmatprep.subr.mxu0 0.0
    %1556 = vmatpush1.msra.mxu0 0.0
    %1557 = vmatprep.subr.mxu0 0.0
    %1558 = vmatpush1.msra.mxu0 0.0
    %1559 = vmatprep.subr.mxu0 0.0
    %1560 = vmatpush1.msra.mxu0 0.0
    %1561 = vmatprep.subr.mxu0 0.0
    %1562 = vmatpush1.msra.mxu0 0.0
    %1563 = vmatprep.subr.mxu0 0.0
    %1564 = vmatpush1.msra.mxu0 0.0
    %1565 = vmatprep.subr.mxu0 0.0
    %1566 = vmatpush1.msra.mxu0 0.0
    %1567 = vmatprep.subr.mxu0 0.0
    %1568 = vmatpush1.msra.mxu0 0.0
    %1569 = vmatprep.subr.mxu0 0.0
    %1570 = vmatpush1.msra.mxu0 0.0
    %1571 = vmatprep.subr.mxu0 0.0
    %1572 = vmatpush1.msra.mxu0 0.0
    %1573 = vmatprep.subr.mxu0 0.0
    %1574 = vmatpush1.msra.mxu0 0.0
    %1575 = vmatprep.subr.mxu0 0.0
    %1576 = vmatpush1.msra.mxu0 0.0
    %1577 = vmatprep.subr.mxu0 0.0
    %1578 = vmatpush1.msra.mxu0 0.0
    %1579 = vmatprep.subr.mxu0 0.0
    %1580 = vmatpush1.msra.mxu0 0.0
    %1581 = vmatprep.subr.mxu0 0.0
    %1582 = vmatpush1.msra.mxu0 0.0
    %1583 = vmatprep.subr.mxu0 0.0
    %1584 = vmatpush1.msra.mxu0 0.0
    %1585 = vmatprep.subr.mxu0 0.0
    %1586 = vmatpush1.msra.mxu0 0.0
    %1587 = vmatprep.subr.mxu0 0.0
    %1588 = vmatpush1.msra.mxu0 0.0
    %1589 = vmatprep.subr.mxu0 0.0
    %1590 = vmatpush1.msra.mxu0 0.0
    %1591 = vmatprep.subr.mxu0 0.0
    %1592 = vmatpush1.msra.mxu0 0.0
    %1593 = vmatprep.subr.mxu0 0.0
    %1594 = vmatpush1.msra.mxu0 0.0
    %1595 = vmatprep.subr.mxu0 0.0
    %1596 = vmatpush1.msra.mxu0 0.0
    %1597 = vmatprep.subr.mxu0 0.0
    %1598 = vmatpush1.msra.mxu0 0.0
    %1599 = vmatprep.subr.mxu0 0.0
    %1600 = vmatpush1.msra.mxu0 0.0
    %1601 = vmatprep.subr.mxu0 0.0
    %1602 = vmatpush1.msra.mxu0 0.0
    %1603 = vmatprep.subr.mxu0 0.0
    %1604 = vmatpush1.msra.mxu0 0.0
    %1605 = vmatprep.subr.mxu0 0.0
    %1606 = vmatpush1.msra.mxu0 0.0
    %1607 = vmatprep.subr.mxu0 0.0
    %1608 = vmatpush1.msra.mxu0 0.0
    %1609 = vmatprep.subr.mxu0 0.0
    %1610 = vmatpush1.msra.mxu0 0.0
    %1611 = vmatprep.subr.mxu0 0.0
    %1612 = vmatpush1.msra.mxu0 0.0
    %1613 = vmatprep.subr.mxu0 0.0
    %1614 = vmatpush1.msra.mxu0 0.0
    %1615 = vmatprep.subr.mxu0 0.0
    %1616 = vmatpush1.msra.mxu0 0.0
    %1617 = vmatprep.mubr.f32.mxu0 0.0
    %1618 = vmatmul.mubr.f32.gmra.mrb[0].mxu0 %v1551
    %v1619 = vpop.f32.mrb[0].mxu0
    %v1620 = vadd.f32 0.0, %v1619
    %v1621 = vpop.f32.mrb[0].mxu0
    %1622 = vdwg.mxu0
    %1624 = vrot.lane.b32.xlu0 %v1620, 24
    %v1625 = vpop.permute.xlu0 %1624
    %1627 = vst.msk [vmem:[#allocation2 + $0x8] sm:$0xff] %vm950, %v1625
    %v1628 = vld [vmem:[#allocation2] sm:$0xff]
    %v1629 = vld [vmem:[#allocation2 + $0x8] sm:$0xff]
    %v1630 = vld [vmem:[%s3] sm:$0xff]
    %v1631 = vld [vmem:[%s3 + $0x8] sm:$0xff]
    %v1632 = vld [vmem:[%s3 + $0x10] sm:$0xff]
    %v1633 = vld [vmem:[%s3 + $0x18] sm:$0xff]
    %v1635 = vsel %vm131, %v1628, 0
    %v1638 = vsel %vm131, %v1629, 0
    %1640 = vmatprep.subr.mxu0 0.0
    %1641 = vmatpush1.msra.mxu0 %v1630
    %1642 = vmatprep.subr.mxu0 0.0
    %1643 = vmatpush1.msra.mxu0 %v1631
    %1644 = vmatprep.subr.mxu0 0.0
    %1645 = vmatpush1.msra.mxu0 %v1632
    %1646 = vmatprep.subr.mxu0 0.0
    %1647 = vmatpush1.msra.mxu0 %v1633
    %1648 = vmatprep.subr.mxu0 0.0
    %1649 = vmatpush1.msra.mxu0 0.0
    %1650 = vmatprep.subr.mxu0 0.0
    %1651 = vmatpush1.msra.mxu0 0.0
    %1652 = vmatprep.subr.mxu0 0.0
    %1653 = vmatpush1.msra.mxu0 0.0
    %1654 = vmatprep.subr.mxu0 0.0
    %1655 = vmatpush1.msra.mxu0 0.0
    %1656 = vmatprep.subr.mxu0 0.0
    %1657 = vmatpush1.msra.mxu0 0.0
    %1658 = vmatprep.subr.mxu0 0.0
    %1659 = vmatpush1.msra.mxu0 0.0
    %1660 = vmatprep.subr.mxu0 0.0
    %1661 = vmatpush1.msra.mxu0 0.0
    %1662 = vmatprep.subr.mxu0 0.0
    %1663 = vmatpush1.msra.mxu0 0.0
    %1664 = vmatprep.subr.mxu0 0.0
    %1665 = vmatpush1.msra.mxu0 0.0
    %1666 = vmatprep.subr.mxu0 0.0
    %1667 = vmatpush1.msra.mxu0 0.0
    %1668 = vmatprep.subr.mxu0 0.0
    %1669 = vmatpush1.msra.mxu0 0.0
    %1670 = vmatprep.subr.mxu0 0.0
    %1671 = vmatpush1.msra.mxu0 0.0
    %1672 = vmatprep.subr.mxu0 0.0
    %1673 = vmatpush1.msra.mxu0 0.0
    %1674 = vmatprep.subr.mxu0 0.0
    %1675 = vmatpush1.msra.mxu0 0.0
    %1676 = vmatprep.subr.mxu0 0.0
    %1677 = vmatpush1.msra.mxu0 0.0
    %1678 = vmatprep.subr.mxu0 0.0
    %1679 = vmatpush1.msra.mxu0 0.0
    %1680 = vmatprep.subr.mxu0 0.0
    %1681 = vmatpush1.msra.mxu0 0.0
    %1682 = vmatprep.subr.mxu0 0.0
    %1683 = vmatpush1.msra.mxu0 0.0
    %1684 = vmatprep.subr.mxu0 0.0
    %1685 = vmatpush1.msra.mxu0 0.0
    %1686 = vmatprep.subr.mxu0 0.0
    %1687 = vmatpush1.msra.mxu0 0.0
    %1688 = vmatprep.subr.mxu0 0.0
    %1689 = vmatpush1.msra.mxu0 0.0
    %1690 = vmatprep.subr.mxu0 0.0
    %1691 = vmatpush1.msra.mxu0 0.0
    %1692 = vmatprep.subr.mxu0 0.0
    %1693 = vmatpush1.msra.mxu0 0.0
    %1694 = vmatprep.subr.mxu0 0.0
    %1695 = vmatpush1.msra.mxu0 0.0
    %1696 = vmatprep.subr.mxu0 0.0
    %1697 = vmatpush1.msra.mxu0 0.0
    %1698 = vmatprep.subr.mxu0 0.0
    %1699 = vmatpush1.msra.mxu0 0.0
    %1700 = vmatprep.subr.mxu0 0.0
    %1701 = vmatpush1.msra.mxu0 0.0
    %1702 = vmatprep.subr.mxu0 0.0
    %1703 = vmatpush1.msra.mxu0 0.0
    %1704 = vmatprep.mubr.f32.mxu0 0.0
    %1705 = vmatmul.mubr.f32.gmra.mrb[0].mxu0 %v1635
    %v1706 = vpop.f32.mrb[0].mxu0
    %v1707 = vadd.f32 0.0, %v1706
    %v1708 = vpop.f32.mrb[0].mxu0
    %1709 = vmatprep.mubr.f32.mxu0 0.0
    %1710 = vmatmul.mubr.f32.gmra.mrb[0].mxu0 %v1638
    %v1711 = vpop.f32.mrb[0].mxu0
    %v1712 = vadd.f32 0.0, %v1711
    %v1713 = vpop.f32.mrb[0].mxu0
    %1714 = vdwg.mxu0
    %v1715 = vadd.f32 %v125, %v1707
    %v1716 = vadd.f32 %v126, %v1712
    %v1717 = vsel %vm131, %v1715, 0.0
    %1718 = vadd.xlane.f32.xlu0 %v1717
    %v1719 = vpop.xlane.xlu0 %1718
    %v1720 = vsel %vm131, %v1716, 0.0
    %1721 = vadd.xlane.f32.xlu0 %v1720
    %v1722 = vpop.xlane.xlu0 %1721
    %v1723 = vmul.f32 %v1719, %v138
    %v1724 = vmul.f32 %v1722, %v138
    %v1725 = vsub.f32 %v1715, %v1723
    %v1726 = vsub.f32 %v1716, %v1724
    %v1727 = vmul.f32 %v1725, %v1725
    %v1728 = vmul.f32 %v1726, %v1726
    %v1729 = vsel %vm131, %v1727, 0.0
    %1730 = vadd.xlane.f32.xlu0 %v1729
    %v1731 = vpop.xlane.xlu0 %1730
    %v1732 = vsel %vm131, %v1728, 0.0
    %1733 = vadd.xlane.f32.xlu0 %v1732
    %v1734 = vpop.xlane.xlu0 %1733
    %v1735 = vmul.f32 %v1731, 0.032258064
    %v1736 = vmul.f32 %v1734, 0.032258064
    %v1737 = vrsqrt.pop %v1735
    %v1738 = vmul.f32 %v1735, %v1737
    %vm1739 = vcmp.eq.f32.partialorder %v1735, inf
    %v1740 = vsel %vm1739, %v1735, %v1738
    %vm1741 = vcmp.eq.f32.partialorder %v1735, 0.0
    %v1742 = vand.u32 %v1735, 2147483648
    %v1743 = vsel %vm1741, %v1742, %v1740
    %v1744 = vrsqrt.pop %v1736
    %v1745 = vmul.f32 %v1736, %v1744
    %vm1746 = vcmp.eq.f32.partialorder %v1736, inf
    %v1747 = vsel %vm1746, %v1736, %v1745
    %vm1748 = vcmp.eq.f32.partialorder %v1736, 0.0
    %v1749 = vand.u32 %v1736, 2147483648
    %v1750 = vsel %vm1748, %v1749, %v1747
    %v1751 = vadd.f32 %v1743, 1e-06
    %v1752 = vadd.f32 %v1750, 1e-06
    %v1753 = vrcp.pop %v1751
    %v1754 = vrcp.pop %v1752
    %v1755 = vmul.f32 %v1725, %v1753
    %v1756 = vmul.f32 %v1726, %v1754
    %v1757 = vlaneseq
    %v1758 = vshrl.u32 %v1757, 7
    %v1759 = vsub.s32 1, %v1758
    %v1760 = vrot.slane %v129, %v1759
    %v1761 = vmul.f32 %v1760, %v1755
    %v1762 = vmul.f32 %v1760, %v1756
    %v1763 = vlaneseq
    %v1764 = vshrl.u32 %v1763, 7
    %v1765 = vsub.s32 1, %v1764
    %v1766 = vrot.slane %v130, %v1765
    %v1767 = vadd.f32 %v1761, %v1766
    %v1768 = vadd.f32 %v1762, %v1766
    %v1769 = vld [vmem:[%s4] sm:$0xff]
    %v1770 = vld [vmem:[%s4 + $0x8] sm:$0xff]
    %v1771 = vld [vmem:[%s4 + $0x10] sm:$0xff]
    %v1772 = vld [vmem:[%s4 + $0x18] sm:$0xff]
    %v1774 = vsel %vm131, %v1767, 0
    %v1777 = vsel %vm131, %v1768, 0
    %1779 = vmatprep.subr.mxu0 0.0
    %1780 = vmatpush1.msra.mxu0 %v1769
    %1781 = vmatprep.subr.mxu0 0.0
    %1782 = vmatpush1.msra.mxu0 %v1770
    %1783 = vmatprep.subr.mxu0 0.0
    %1784 = vmatpush1.msra.mxu0 %v1771
    %1785 = vmatprep.subr.mxu0 0.0
    %1786 = vmatpush1.msra.mxu0 %v1772
    %1787 = vmatprep.subr.mxu0 0.0
    %1788 = vmatpush1.msra.mxu0 0.0
    %1789 = vmatprep.subr.mxu0 0.0
    %1790 = vmatpush1.msra.mxu0 0.0
    %1791 = vmatprep.subr.mxu0 0.0
    %1792 = vmatpush1.msra.mxu0 0.0
    %1793 = vmatprep.subr.mxu0 0.0
    %1794 = vmatpush1.msra.mxu0 0.0
    %1795 = vmatprep.subr.mxu0 0.0
    %1796 = vmatpush1.msra.mxu0 0.0
    %1797 = vmatprep.subr.mxu0 0.0
    %1798 = vmatpush1.msra.mxu0 0.0
    %1799 = vmatprep.subr.mxu0 0.0
    %1800 = vmatpush1.msra.mxu0 0.0
    %1801 = vmatprep.subr.mxu0 0.0
    %1802 = vmatpush1.msra.mxu0 0.0
    %1803 = vmatprep.subr.mxu0 0.0
    %1804 = vmatpush1.msra.mxu0 0.0
    %1805 = vmatprep.subr.mxu0 0.0
    %1806 = vmatpush1.msra.mxu0 0.0
    %1807 = vmatprep.subr.mxu0 0.0
    %1808 = vmatpush1.msra.mxu0 0.0
    %1809 = vmatprep.subr.mxu0 0.0
    %1810 = vmatpush1.msra.mxu0 0.0
    %1811 = vmatprep.subr.mxu0 0.0
    %1812 = vmatpush1.msra.mxu0 0.0
    %1813 = vmatprep.subr.mxu0 0.0
    %1814 = vmatpush1.msra.mxu0 0.0
    %1815 = vmatprep.subr.mxu0 0.0
    %1816 = vmatpush1.msra.mxu0 0.0
    %1817 = vmatprep.subr.mxu0 0.0
    %1818 = vmatpush1.msra.mxu0 0.0
    %1819 = vmatprep.subr.mxu0 0.0
    %1820 = vmatpush1.msra.mxu0 0.0
    %1821 = vmatprep.subr.mxu0 0.0
    %1822 = vmatpush1.msra.mxu0 0.0
    %1823 = vmatprep.subr.mxu0 0.0
    %1824 = vmatpush1.msra.mxu0 0.0
    %1825 = vmatprep.subr.mxu0 0.0
    %1826 = vmatpush1.msra.mxu0 0.0
    %1827 = vmatprep.subr.mxu0 0.0
    %1828 = vmatpush1.msra.mxu0 0.0
    %1829 = vmatprep.subr.mxu0 0.0
    %1830 = vmatpush1.msra.mxu0 0.0
    %1831 = vmatprep.subr.mxu0 0.0
    %1832 = vmatpush1.msra.mxu0 0.0
    %1833 = vmatprep.subr.mxu0 0.0
    %1834 = vmatpush1.msra.mxu0 0.0
    %1835 = vmatprep.subr.mxu0 0.0
    %1836 = vmatpush1.msra.mxu0 0.0
    %1837 = vmatprep.subr.mxu0 0.0
    %1838 = vmatpush1.msra.mxu0 0.0
    %1839 = vmatprep.subr.mxu0 0.0
    %1840 = vmatpush1.msra.mxu0 0.0
    %1841 = vmatprep.subr.mxu0 0.0
    %1842 = vmatpush1.msra.mxu0 0.0
    %1843 = vmatprep.mubr.f32.mxu0 0.0
    %1844 = vmatmul.mubr.f32.gmra.mrb[0].mxu0 %v1774
    %v1845 = vpop.f32.mrb[0].mxu0
    %v1846 = vadd.f32 0.0, %v1845
    %v1847 = vpop.f32.mrb[0].mxu0
    %1848 = vmatprep.mubr.f32.mxu0 0.0
    %1849 = vmatmul.mubr.f32.gmra.mrb[0].mxu0 %v1777
    %v1850 = vpop.f32.mrb[0].mxu0
    %v1851 = vadd.f32 0.0, %v1850
    %v1852 = vpop.f32.mrb[0].mxu0
    %1853 = vdwg.mxu0
    %v1854 = vld [vmem:[#allocation8] sm:$0xff]
    %v1855 = vld [vmem:[#allocation8 + $0x8] sm:$0xff]
    %v1856 = vld [vmem:[#allocation8 + $0x10] sm:$0xff]
    %v1857 = vld [vmem:[#allocation8 + $0x18] sm:$0xff]
    %v1859 = vsel %vm131, %v127, 0
    %v1862 = vsel %vm131, %v128, 0
    %1864 = vmatprep.subr.mxu0 0.0
    %1865 = vmatpush1.msra.mxu0 %v1854
    %1866 = vmatprep.subr.mxu0 0.0
    %1867 = vmatpush1.msra.mxu0 %v1855
    %1868 = vmatprep.subr.mxu0 0.0
    %1869 = vmatpush1.msra.mxu0 %v1856
    %1870 = vmatprep.subr.mxu0 0.0
    %1871 = vmatpush1.msra.mxu0 %v1857
    %1872 = vmatprep.subr.mxu0 0.0
    %1873 = vmatpush1.msra.mxu0 0.0
    %1874 = vmatprep.subr.mxu0 0.0
    %1875 = vmatpush1.msra.mxu0 0.0
    %1876 = vmatprep.subr.mxu0 0.0
    %1877 = vmatpush1.msra.mxu0 0.0
    %1878 = vmatprep.subr.mxu0 0.0
    %1879 = vmatpush1.msra.mxu0 0.0
    %1880 = vmatprep.subr.mxu0 0.0
    %1881 = vmatpush1.msra.mxu0 0.0
    %1882 = vmatprep.subr.mxu0 0.0
    %1883 = vmatpush1.msra.mxu0 0.0
    %1884 = vmatprep.subr.mxu0 0.0
    %1885 = vmatpush1.msra.mxu0 0.0
    %1886 = vmatprep.subr.mxu0 0.0
    %1887 = vmatpush1.msra.mxu0 0.0
    %1888 = vmatprep.subr.mxu0 0.0
    %1889 = vmatpush1.msra.mxu0 0.0
    %1890 = vmatprep.subr.mxu0 0.0
    %1891 = vmatpush1.msra.mxu0 0.0
    %1892 = vmatprep.subr.mxu0 0.0
    %1893 = vmatpush1.msra.mxu0 0.0
    %1894 = vmatprep.subr.mxu0 0.0
    %1895 = vmatpush1.msra.mxu0 0.0
    %1896 = vmatprep.subr.mxu0 0.0
    %1897 = vmatpush1.msra.mxu0 0.0
    %1898 = vmatprep.subr.mxu0 0.0
    %1899 = vmatpush1.msra.mxu0 0.0
    %1900 = vmatprep.subr.mxu0 0.0
    %1901 = vmatpush1.msra.mxu0 0.0
    %1902 = vmatprep.subr.mxu0 0.0
    %1903 = vmatpush1.msra.mxu0 0.0
    %1904 = vmatprep.subr.mxu0 0.0
    %1905 = vmatpush1.msra.mxu0 0.0
    %1906 = vmatprep.subr.mxu0 0.0
    %1907 = vmatpush1.msra.mxu0 0.0
    %1908 = vmatprep.subr.mxu0 0.0
    %1909 = vmatpush1.msra.mxu0 0.0
    %1910 = vmatprep.subr.mxu0 0.0
    %1911 = vmatpush1.msra.mxu0 0.0
    %1912 = vmatprep.subr.mxu0 0.0
    %1913 = vmatpush1.msra.mxu0 0.0
    %1914 = vmatprep.subr.mxu0 0.0
    %1915 = vmatpush1.msra.mxu0 0.0
    %1916 = vmatprep.subr.mxu0 0.0
    %1917 = vmatpush1.msra.mxu0 0.0
    %1918 = vmatprep.subr.mxu0 0.0
    %1919 = vmatpush1.msra.mxu0 0.0
    %1920 = vmatprep.subr.mxu0 0.0
    %1921 = vmatpush1.msra.mxu0 0.0
    %1922 = vmatprep.subr.mxu0 0.0
    %1923 = vmatpush1.msra.mxu0 0.0
    %1924 = vmatprep.subr.mxu0 0.0
    %1925 = vmatpush1.msra.mxu0 0.0
    %1926 = vmatprep.subr.mxu0 0.0
    %1927 = vmatpush1.msra.mxu0 0.0
    %1928 = vmatprep.mubr.f32.mxu0 0.0
    %1929 = vmatmul.mubr.f32.gmra.mrb[0].mxu0 %v1859
    %v1930 = vpop.f32.mrb[0].mxu0
    %v1931 = vadd.f32 0.0, %v1930
    %v1932 = vpop.f32.mrb[0].mxu0
    %1933 = vmatprep.mubr.f32.mxu0 0.0
    %1934 = vmatmul.mubr.f32.gmra.mrb[0].mxu0 %v1862
    %v1935 = vpop.f32.mrb[0].mxu0
    %v1936 = vadd.f32 0.0, %v1935
    %v1937 = vpop.f32.mrb[0].mxu0
    %1938 = vdwg.mxu0
    %v1939 = vmul.f32 %v1846, 0.35355338
    %v1940 = vmul.f32 %v1851, 0.35355338
    %v1942 = vsel %vm275, %v1939, 0
    %v1945 = vsel %vm275, %v1931, 0
    %1947 = vmatprep.subr.mxu0 0.0
    %1948 = vmatpush1.xpose.msra.mxu0 %v1945
    %1949 = vmatprep.subr.mxu0 0.0
    %1950 = vmatpush1.xpose.msra.mxu0 0.0
    %1951 = vmatprep.subr.mxu0 0.0
    %1952 = vmatpush1.xpose.msra.mxu0 0.0
    %1953 = vmatprep.subr.mxu0 0.0
    %1954 = vmatpush1.xpose.msra.mxu0 0.0
    %1955 = vmatprep.subr.mxu0 0.0
    %1956 = vmatpush1.xpose.msra.mxu0 0.0
    %1957 = vmatprep.subr.mxu0 0.0
    %1958 = vmatpush1.xpose.msra.mxu0 0.0
    %1959 = vmatprep.subr.mxu0 0.0
    %1960 = vmatpush1.xpose.msra.mxu0 0.0
    %1961 = vmatprep.subr.mxu0 0.0
    %1962 = vmatpush1.xpose.msra.mxu0 0.0
    %1963 = vmatprep.subr.mxu0 0.0
    %1964 = vmatpush1.xpose.msra.mxu0 0.0
    %1965 = vmatprep.subr.mxu0 0.0
    %1966 = vmatpush1.xpose.msra.mxu0 0.0
    %1967 = vmatprep.subr.mxu0 0.0
    %1968 = vmatpush1.xpose.msra.mxu0 0.0
    %1969 = vmatprep.subr.mxu0 0.0
    %1970 = vmatpush1.xpose.msra.mxu0 0.0
    %1971 = vmatprep.subr.mxu0 0.0
    %1972 = vmatpush1.xpose.msra.mxu0 0.0
    %1973 = vmatprep.subr.mxu0 0.0
    %1974 = vmatpush1.xpose.msra.mxu0 0.0
    %1975 = vmatprep.subr.mxu0 0.0
    %1976 = vmatpush1.xpose.msra.mxu0 0.0
    %1977 = vmatprep.subr.mxu0 0.0
    %1978 = vmatpush1.xpose.msra.mxu0 0.0
    %1979 = vmatprep.subr.mxu0 0.0
    %1980 = vmatpush1.xpose.msra.mxu0 0.0
    %1981 = vmatprep.subr.mxu0 0.0
    %1982 = vmatpush1.xpose.msra.mxu0 0.0
    %1983 = vmatprep.subr.mxu0 0.0
    %1984 = vmatpush1.xpose.msra.mxu0 0.0
    %1985 = vmatprep.subr.mxu0 0.0
    %1986 = vmatpush1.xpose.msra.mxu0 0.0
    %1987 = vmatprep.subr.mxu0 0.0
    %1988 = vmatpush1.xpose.msra.mxu0 0.0
    %1989 = vmatprep.subr.mxu0 0.0
    %1990 = vmatpush1.xpose.msra.mxu0 0.0
    %1991 = vmatprep.subr.mxu0 0.0
    %1992 = vmatpush1.xpose.msra.mxu0 0.0
    %1993 = vmatprep.subr.mxu0 0.0
    %1994 = vmatpush1.xpose.msra.mxu0 0.0
    %1995 = vmatprep.subr.mxu0 0.0
    %1996 = vmatpush1.xpose.msra.mxu0 0.0
    %1997 = vmatprep.subr.mxu0 0.0
    %1998 = vmatpush1.xpose.msra.mxu0 0.0
    %1999 = vmatprep.subr.mxu0 0.0
    %2000 = vmatpush1.xpose.msra.mxu0 0.0
    %2001 = vmatprep.subr.mxu0 0.0
    %2002 = vmatpush1.xpose.msra.mxu0 0.0
    %2003 = vmatprep.subr.mxu0 0.0
    %2004 = vmatpush1.xpose.msra.mxu0 0.0
    %2005 = vmatprep.subr.mxu0 0.0
    %2006 = vmatpush1.xpose.msra.mxu0 0.0
    %2007 = vmatprep.subr.mxu0 0.0
    %2008 = vmatpush1.xpose.msra.mxu0 0.0
    %2009 = vmatprep.subr.mxu0 0.0
    %2010 = vmatpush1.xpose.msra.mxu0 0.0
    %2011 = vmatprep.mubr.f32.mxu0 0.0
    %2012 = vmatmul.mubr.f32.gmra.mrb[0].mxu0 %v1942
    %v2013 = vpop.f32.mrb[0].mxu0
    %v2014 = vadd.f32 0.0, %v2013
    %v2015 = vpop.f32.mrb[0].mxu0
    %2016 = vdwg.mxu0
    %v2017 = vsel %vm275, %v2014, -inf
    %2018 = vmax.xlane.f32.xlu0 %v2017
    %v2019 = vpop.xlane.xlu0 %2018
    %v2020 = vsub.f32 %v2014, %v2019
    %v2021 = vmul.f32 %v2020, 1.442695
    %v2022 = vpow.pop %v2021
    %v2023 = vsel %vm275, %v2022, 0.0
    %2024 = vadd.xlane.f32.xlu0 %v2023
    %v2025 = vpop.xlane.xlu0 %2024
    %v2026 = vrcp.pop %v2025
    %v2027 = vmul.f32 %v2022, %v2026
    %2028 = vrot.lane.b32.xlu0 %v1931, 96
    %v2029 = vpop.permute.xlu0 %2028
    %v2032 = vsel %vm275, %v2027, 0
    %2034 = vmatprep.subr.mxu0 0.0
    %2035 = vmatpush1.msra.mxu0 %v2029
    %2036 = vmatprep.subr.mxu0 0.0
    %2037 = vmatpush1.msra.mxu0 0.0
    %2038 = vmatprep.subr.mxu0 0.0
    %2039 = vmatpush1.msra.mxu0 0.0
    %2040 = vmatprep.subr.mxu0 0.0
    %2041 = vmatpush1.msra.mxu0 0.0
    %2042 = vmatprep.subr.mxu0 0.0
    %2043 = vmatpush1.msra.mxu0 0.0
    %2044 = vmatprep.subr.mxu0 0.0
    %2045 = vmatpush1.msra.mxu0 0.0
    %2046 = vmatprep.subr.mxu0 0.0
    %2047 = vmatpush1.msra.mxu0 0.0
    %2048 = vmatprep.subr.mxu0 0.0
    %2049 = vmatpush1.msra.mxu0 0.0
    %2050 = vmatprep.subr.mxu0 0.0
    %2051 = vmatpush1.msra.mxu0 0.0
    %2052 = vmatprep.subr.mxu0 0.0
    %2053 = vmatpush1.msra.mxu0 0.0
    %2054 = vmatprep.subr.mxu0 0.0
    %2055 = vmatpush1.msra.mxu0 0.0
    %2056 = vmatprep.subr.mxu0 0.0
    %2057 = vmatpush1.msra.mxu0 0.0
    %2058 = vmatprep.subr.mxu0 0.0
    %2059 = vmatpush1.msra.mxu0 0.0
    %2060 = vmatprep.subr.mxu0 0.0
    %2061 = vmatpush1.msra.mxu0 0.0
    %2062 = vmatprep.subr.mxu0 0.0
    %2063 = vmatpush1.msra.mxu0 0.0
    %2064 = vmatprep.subr.mxu0 0.0
    %2065 = vmatpush1.msra.mxu0 0.0
    %2066 = vmatprep.subr.mxu0 0.0
    %2067 = vmatpush1.msra.mxu0 0.0
    %2068 = vmatprep.subr.mxu0 0.0
    %2069 = vmatpush1.msra.mxu0 0.0
    %2070 = vmatprep.subr.mxu0 0.0
    %2071 = vmatpush1.msra.mxu0 0.0
    %2072 = vmatprep.subr.mxu0 0.0
    %2073 = vmatpush1.msra.mxu0 0.0
    %2074 = vmatprep.subr.mxu0 0.0
    %2075 = vmatpush1.msra.mxu0 0.0
    %2076 = vmatprep.subr.mxu0 0.0
    %2077 = vmatpush1.msra.mxu0 0.0
    %2078 = vmatprep.subr.mxu0 0.0
    %2079 = vmatpush1.msra.mxu0 0.0
    %2080 = vmatprep.subr.mxu0 0.0
    %2081 = vmatpush1.msra.mxu0 0.0
    %2082 = vmatprep.subr.mxu0 0.0
    %2083 = vmatpush1.msra.mxu0 0.0
    %2084 = vmatprep.subr.mxu0 0.0
    %2085 = vmatpush1.msra.mxu0 0.0
    %2086 = vmatprep.subr.mxu0 0.0
    %2087 = vmatpush1.msra.mxu0 0.0
    %2088 = vmatprep.subr.mxu0 0.0
    %2089 = vmatpush1.msra.mxu0 0.0
    %2090 = vmatprep.subr.mxu0 0.0
    %2091 = vmatpush1.msra.mxu0 0.0
    %2092 = vmatprep.subr.mxu0 0.0
    %2093 = vmatpush1.msra.mxu0 0.0
    %2094 = vmatprep.subr.mxu0 0.0
    %2095 = vmatpush1.msra.mxu0 0.0
    %2096 = vmatprep.subr.mxu0 0.0
    %2097 = vmatpush1.msra.mxu0 0.0
    %2098 = vmatprep.mubr.f32.mxu0 0.0
    %2099 = vmatmul.mubr.f32.gmra.mrb[0].mxu0 %v2032
    %v2100 = vpop.f32.mrb[0].mxu0
    %v2101 = vadd.f32 0.0, %v2100
    %v2102 = vpop.f32.mrb[0].mxu0
    %2103 = vdwg.mxu0
    %2104 = vst.msk [vmem:[#allocation2] sm:$0xff] %vm275, %v2101
    %2105 = vrot.lane.b32.xlu0 %v1939, 120
    %v2106 = vpop.permute.xlu0 %2105
    %2107 = vrot.lane.b32.xlu0 %v1931, 120
    %v2108 = vpop.permute.xlu0 %2107
    %v2109 = vsel %vm275, %v2106, 0
    %v2111 = vsel %vm275, %v2108, 0
    %2113 = vmatprep.subr.mxu0 0.0
    %2114 = vmatpush1.xpose.msra.mxu0 %v2111
    %2115 = vmatprep.subr.mxu0 0.0
    %2116 = vmatpush1.xpose.msra.mxu0 0.0
    %2117 = vmatprep.subr.mxu0 0.0
    %2118 = vmatpush1.xpose.msra.mxu0 0.0
    %2119 = vmatprep.subr.mxu0 0.0
    %2120 = vmatpush1.xpose.msra.mxu0 0.0
    %2121 = vmatprep.subr.mxu0 0.0
    %2122 = vmatpush1.xpose.msra.mxu0 0.0
    %2123 = vmatprep.subr.mxu0 0.0
    %2124 = vmatpush1.xpose.msra.mxu0 0.0
    %2125 = vmatprep.subr.mxu0 0.0
    %2126 = vmatpush1.xpose.msra.mxu0 0.0
    %2127 = vmatprep.subr.mxu0 0.0
    %2128 = vmatpush1.xpose.msra.mxu0 0.0
    %2129 = vmatprep.subr.mxu0 0.0
    %2130 = vmatpush1.xpose.msra.mxu0 0.0
    %2131 = vmatprep.subr.mxu0 0.0
    %2132 = vmatpush1.xpose.msra.mxu0 0.0
    %2133 = vmatprep.subr.mxu0 0.0
    %2134 = vmatpush1.xpose.msra.mxu0 0.0
    %2135 = vmatprep.subr.mxu0 0.0
    %2136 = vmatpush1.xpose.msra.mxu0 0.0
    %2137 = vmatprep.subr.mxu0 0.0
    %2138 = vmatpush1.xpose.msra.mxu0 0.0
    %2139 = vmatprep.subr.mxu0 0.0
    %2140 = vmatpush1.xpose.msra.mxu0 0.0
    %2141 = vmatprep.subr.mxu0 0.0
    %2142 = vmatpush1.xpose.msra.mxu0 0.0
    %2143 = vmatprep.subr.mxu0 0.0
    %2144 = vmatpush1.xpose.msra.mxu0 0.0
    %2145 = vmatprep.subr.mxu0 0.0
    %2146 = vmatpush1.xpose.msra.mxu0 0.0
    %2147 = vmatprep.subr.mxu0 0.0
    %2148 = vmatpush1.xpose.msra.mxu0 0.0
    %2149 = vmatprep.subr.mxu0 0.0
    %2150 = vmatpush1.xpose.msra.mxu0 0.0
    %2151 = vmatprep.subr.mxu0 0.0
    %2152 = vmatpush1.xpose.msra.mxu0 0.0
    %2153 = vmatprep.subr.mxu0 0.0
    %2154 = vmatpush1.xpose.msra.mxu0 0.0
    %2155 = vmatprep.subr.mxu0 0.0
    %2156 = vmatpush1.xpose.msra.mxu0 0.0
    %2157 = vmatprep.subr.mxu0 0.0
    %2158 = vmatpush1.xpose.msra.mxu0 0.0
    %2159 = vmatprep.subr.mxu0 0.0
    %2160 = vmatpush1.xpose.msra.mxu0 0.0
    %2161 = vmatprep.subr.mxu0 0.0
    %2162 = vmatpush1.xpose.msra.mxu0 0.0
    %2163 = vmatprep.subr.mxu0 0.0
    %2164 = vmatpush1.xpose.msra.mxu0 0.0
    %2165 = vmatprep.subr.mxu0 0.0
    %2166 = vmatpush1.xpose.msra.mxu0 0.0
    %2167 = vmatprep.subr.mxu0 0.0
    %2168 = vmatpush1.xpose.msra.mxu0 0.0
    %2169 = vmatprep.subr.mxu0 0.0
    %2170 = vmatpush1.xpose.msra.mxu0 0.0
    %2171 = vmatprep.subr.mxu0 0.0
    %2172 = vmatpush1.xpose.msra.mxu0 0.0
    %2173 = vmatprep.subr.mxu0 0.0
    %2174 = vmatpush1.xpose.msra.mxu0 0.0
    %2175 = vmatprep.subr.mxu0 0.0
    %2176 = vmatpush1.xpose.msra.mxu0 0.0
    %2177 = vmatprep.mubr.f32.mxu0 0.0
    %2178 = vmatmul.mubr.f32.gmra.mrb[0].mxu0 %v2109
    %v2179 = vpop.f32.mrb[0].mxu0
    %v2180 = vadd.f32 0.0, %v2179
    %v2181 = vpop.f32.mrb[0].mxu0
    %2182 = vdwg.mxu0
    %v2183 = vsel %vm275, %v2180, -inf
    %2184 = vmax.xlane.f32.xlu0 %v2183
    %v2185 = vpop.xlane.xlu0 %2184
    %v2186 = vsub.f32 %v2180, %v2185
    %v2187 = vmul.f32 %v2186, 1.442695
    %v2188 = vpow.pop %v2187
    %v2189 = vsel %vm275, %v2188, 0.0
    %2190 = vadd.xlane.f32.xlu0 %v2189
    %v2191 = vpop.xlane.xlu0 %2190
    %v2192 = vrcp.pop %v2191
    %v2193 = vmul.f32 %v2188, %v2192
    %2194 = vrot.lane.b32.xlu0 %v1931, 88
    %v2195 = vpop.permute.xlu0 %2194
    %v2198 = vsel %vm275, %v2193, 0
    %2200 = vmatprep.subr.mxu0 0.0
    %2201 = vmatpush1.msra.mxu0 %v2195
    %2202 = vmatprep.subr.mxu0 0.0
    %2203 = vmatpush1.msra.mxu0 0.0
    %2204 = vmatprep.subr.mxu0 0.0
    %2205 = vmatpush1.msra.mxu0 0.0
    %2206 = vmatprep.subr.mxu0 0.0
    %2207 = vmatpush1.msra.mxu0 0.0
    %2208 = vmatprep.subr.mxu0 0.0
    %2209 = vmatpush1.msra.mxu0 0.0
    %2210 = vmatprep.subr.mxu0 0.0
    %2211 = vmatpush1.msra.mxu0 0.0
    %2212 = vmatprep.subr.mxu0 0.0
    %2213 = vmatpush1.msra.mxu0 0.0
    %2214 = vmatprep.subr.mxu0 0.0
    %2215 = vmatpush1.msra.mxu0 0.0
    %2216 = vmatprep.subr.mxu0 0.0
    %2217 = vmatpush1.msra.mxu0 0.0
    %2218 = vmatprep.subr.mxu0 0.0
    %2219 = vmatpush1.msra.mxu0 0.0
    %2220 = vmatprep.subr.mxu0 0.0
    %2221 = vmatpush1.msra.mxu0 0.0
    %2222 = vmatprep.subr.mxu0 0.0
    %2223 = vmatpush1.msra.mxu0 0.0
    %2224 = vmatprep.subr.mxu0 0.0
    %2225 = vmatpush1.msra.mxu0 0.0
    %2226 = vmatprep.subr.mxu0 0.0
    %2227 = vmatpush1.msra.mxu0 0.0
    %2228 = vmatprep.subr.mxu0 0.0
    %2229 = vmatpush1.msra.mxu0 0.0
    %2230 = vmatprep.subr.mxu0 0.0
    %2231 = vmatpush1.msra.mxu0 0.0
    %2232 = vmatprep.subr.mxu0 0.0
    %2233 = vmatpush1.msra.mxu0 0.0
    %2234 = vmatprep.subr.mxu0 0.0
    %2235 = vmatpush1.msra.mxu0 0.0
    %2236 = vmatprep.subr.mxu0 0.0
    %2237 = vmatpush1.msra.mxu0 0.0
    %2238 = vmatprep.subr.mxu0 0.0
    %2239 = vmatpush1.msra.mxu0 0.0
    %2240 = vmatprep.subr.mxu0 0.0
    %2241 = vmatpush1.msra.mxu0 0.0
    %2242 = vmatprep.subr.mxu0 0.0
    %2243 = vmatpush1.msra.mxu0 0.0
    %2244 = vmatprep.subr.mxu0 0.0
    %2245 = vmatpush1.msra.mxu0 0.0
    %2246 = vmatprep.subr.mxu0 0.0
    %2247 = vmatpush1.msra.mxu0 0.0
    %2248 = vmatprep.subr.mxu0 0.0
    %2249 = vmatpush1.msra.mxu0 0.0
    %2250 = vmatprep.subr.mxu0 0.0
    %2251 = vmatpush1.msra.mxu0 0.0
    %2252 = vmatprep.subr.mxu0 0.0
    %2253 = vmatpush1.msra.mxu0 0.0
    %2254 = vmatprep.subr.mxu0 0.0
    %2255 = vmatpush1.msra.mxu0 0.0
    %2256 = vmatprep.subr.mxu0 0.0
    %2257 = vmatpush1.msra.mxu0 0.0
    %2258 = vmatprep.subr.mxu0 0.0
    %2259 = vmatpush1.msra.mxu0 0.0
    %2260 = vmatprep.subr.mxu0 0.0
    %2261 = vmatpush1.msra.mxu0 0.0
    %2262 = vmatprep.subr.mxu0 0.0
    %2263 = vmatpush1.msra.mxu0 0.0
    %2264 = vmatprep.mubr.f32.mxu0 0.0
    %2265 = vmatmul.mubr.f32.gmra.mrb[0].mxu0 %v2198
    %v2266 = vpop.f32.mrb[0].mxu0
    %v2267 = vadd.f32 0.0, %v2266
    %v2268 = vpop.f32.mrb[0].mxu0
    %2269 = vdwg.mxu0
    %2271 = vrot.lane.b32.xlu0 %v2267, 8
    %v2272 = vpop.permute.xlu0 %2271
    %2274 = vst.msk [vmem:[#allocation2] sm:$0xff] %vm608, %v2272
    %2275 = vrot.lane.b32.xlu0 %v1939, 112
    %v2276 = vpop.permute.xlu0 %2275
    %2277 = vrot.lane.b32.xlu0 %v1931, 112
    %v2278 = vpop.permute.xlu0 %2277
    %v2279 = vsel %vm275, %v2276, 0
    %v2281 = vsel %vm275, %v2278, 0
    %2283 = vmatprep.subr.mxu0 0.0
    %2284 = vmatpush1.xpose.msra.mxu0 %v2281
    %2285 = vmatprep.subr.mxu0 0.0
    %2286 = vmatpush1.xpose.msra.mxu0 0.0
    %2287 = vmatprep.subr.mxu0 0.0
    %2288 = vmatpush1.xpose.msra.mxu0 0.0
    %2289 = vmatprep.subr.mxu0 0.0
    %2290 = vmatpush1.xpose.msra.mxu0 0.0
    %2291 = vmatprep.subr.mxu0 0.0
    %2292 = vmatpush1.xpose.msra.mxu0 0.0
    %2293 = vmatprep.subr.mxu0 0.0
    %2294 = vmatpush1.xpose.msra.mxu0 0.0
    %2295 = vmatprep.subr.mxu0 0.0
    %2296 = vmatpush1.xpose.msra.mxu0 0.0
    %2297 = vmatprep.subr.mxu0 0.0
    %2298 = vmatpush1.xpose.msra.mxu0 0.0
    %2299 = vmatprep.subr.mxu0 0.0
    %2300 = vmatpush1.xpose.msra.mxu0 0.0
    %2301 = vmatprep.subr.mxu0 0.0
    %2302 = vmatpush1.xpose.msra.mxu0 0.0
    %2303 = vmatprep.subr.mxu0 0.0
    %2304 = vmatpush1.xpose.msra.mxu0 0.0
    %2305 = vmatprep.subr.mxu0 0.0
    %2306 = vmatpush1.xpose.msra.mxu0 0.0
    %2307 = vmatprep.subr.mxu0 0.0
    %2308 = vmatpush1.xpose.msra.mxu0 0.0
    %2309 = vmatprep.subr.mxu0 0.0
    %2310 = vmatpush1.xpose.msra.mxu0 0.0
    %2311 = vmatprep.subr.mxu0 0.0
    %2312 = vmatpush1.xpose.msra.mxu0 0.0
    %2313 = vmatprep.subr.mxu0 0.0
    %2314 = vmatpush1.xpose.msra.mxu0 0.0
    %2315 = vmatprep.subr.mxu0 0.0
    %2316 = vmatpush1.xpose.msra.mxu0 0.0
    %2317 = vmatprep.subr.mxu0 0.0
    %2318 = vmatpush1.xpose.msra.mxu0 0.0
    %2319 = vmatprep.subr.mxu0 0.0
    %2320 = vmatpush1.xpose.msra.mxu0 0.0
    %2321 = vmatprep.subr.mxu0 0.0
    %2322 = vmatpush1.xpose.msra.mxu0 0.0
    %2323 = vmatprep.subr.mxu0 0.0
    %2324 = vmatpush1.xpose.msra.mxu0 0.0
    %2325 = vmatprep.subr.mxu0 0.0
    %2326 = vmatpush1.xpose.msra.mxu0 0.0
    %2327 = vmatprep.subr.mxu0 0.0
    %2328 = vmatpush1.xpose.msra.mxu0 0.0
    %2329 = vmatprep.subr.mxu0 0.0
    %2330 = vmatpush1.xpose.msra.mxu0 0.0
    %2331 = vmatprep.subr.mxu0 0.0
    %2332 = vmatpush1.xpose.msra.mxu0 0.0
    %2333 = vmatprep.subr.mxu0 0.0
    %2334 = vmatpush1.xpose.msra.mxu0 0.0
    %2335 = vmatprep.subr.mxu0 0.0
    %2336 = vmatpush1.xpose.msra.mxu0 0.0
    %2337 = vmatprep.subr.mxu0 0.0
    %2338 = vmatpush1.xpose.msra.mxu0 0.0
    %2339 = vmatprep.subr.mxu0 0.0
    %2340 = vmatpush1.xpose.msra.mxu0 0.0
    %2341 = vmatprep.subr.mxu0 0.0
    %2342 = vmatpush1.xpose.msra.mxu0 0.0
    %2343 = vmatprep.subr.mxu0 0.0
    %2344 = vmatpush1.xpose.msra.mxu0 0.0
    %2345 = vmatprep.subr.mxu0 0.0
    %2346 = vmatpush1.xpose.msra.mxu0 0.0
    %2347 = vmatprep.mubr.f32.mxu0 0.0
    %2348 = vmatmul.mubr.f32.gmra.mrb[0].mxu0 %v2279
    %v2349 = vpop.f32.mrb[0].mxu0
    %v2350 = vadd.f32 0.0, %v2349
    %v2351 = vpop.f32.mrb[0].mxu0
    %2352 = vdwg.mxu0
    %v2353 = vsel %vm275, %v2350, -inf
    %2354 = vmax.xlane.f32.xlu0 %v2353
    %v2355 = vpop.xlane.xlu0 %2354
    %v2356 = vsub.f32 %v2350, %v2355
    %v2357 = vmul.f32 %v2356, 1.442695
    %v2358 = vpow.pop %v2357
    %v2359 = vsel %vm275, %v2358, 0.0
    %2360 = vadd.xlane.f32.xlu0 %v2359
    %v2361 = vpop.xlane.xlu0 %2360
    %v2362 = vrcp.pop %v2361
    %v2363 = vmul.f32 %v2358, %v2362
    %2364 = vrot.lane.b32.xlu0 %v1931, 80
    %v2365 = vpop.permute.xlu0 %2364
    %v2368 = vsel %vm275, %v2363, 0
    %2370 = vmatprep.subr.mxu0 0.0
    %2371 = vmatpush1.msra.mxu0 %v2365
    %2372 = vmatprep.subr.mxu0 0.0
    %2373 = vmatpush1.msra.mxu0 0.0
    %2374 = vmatprep.subr.mxu0 0.0
    %2375 = vmatpush1.msra.mxu0 0.0
    %2376 = vmatprep.subr.mxu0 0.0
    %2377 = vmatpush1.msra.mxu0 0.0
    %2378 = vmatprep.subr.mxu0 0.0
    %2379 = vmatpush1.msra.mxu0 0.0
    %2380 = vmatprep.subr.mxu0 0.0
    %2381 = vmatpush1.msra.mxu0 0.0
    %2382 = vmatprep.subr.mxu0 0.0
    %2383 = vmatpush1.msra.mxu0 0.0
    %2384 = vmatprep.subr.mxu0 0.0
    %2385 = vmatpush1.msra.mxu0 0.0
    %2386 = vmatprep.subr.mxu0 0.0
    %2387 = vmatpush1.msra.mxu0 0.0
    %2388 = vmatprep.subr.mxu0 0.0
    %2389 = vmatpush1.msra.mxu0 0.0
    %2390 = vmatprep.subr.mxu0 0.0
    %2391 = vmatpush1.msra.mxu0 0.0
    %2392 = vmatprep.subr.mxu0 0.0
    %2393 = vmatpush1.msra.mxu0 0.0
    %2394 = vmatprep.subr.mxu0 0.0
    %2395 = vmatpush1.msra.mxu0 0.0
    %2396 = vmatprep.subr.mxu0 0.0
    %2397 = vmatpush1.msra.mxu0 0.0
    %2398 = vmatprep.subr.mxu0 0.0
    %2399 = vmatpush1.msra.mxu0 0.0
    %2400 = vmatprep.subr.mxu0 0.0
    %2401 = vmatpush1.msra.mxu0 0.0
    %2402 = vmatprep.subr.mxu0 0.0
    %2403 = vmatpush1.msra.mxu0 0.0
    %2404 = vmatprep.subr.mxu0 0.0
    %2405 = vmatpush1.msra.mxu0 0.0
    %2406 = vmatprep.subr.mxu0 0.0
    %2407 = vmatpush1.msra.mxu0 0.0
    %2408 = vmatprep.subr.mxu0 0.0
    %2409 = vmatpush1.msra.mxu0 0.0
    %2410 = vmatprep.subr.mxu0 0.0
    %2411 = vmatpush1.msra.mxu0 0.0
    %2412 = vmatprep.subr.mxu0 0.0
    %2413 = vmatpush1.msra.mxu0 0.0
    %2414 = vmatprep.subr.mxu0 0.0
    %2415 = vmatpush1.msra.mxu0 0.0
    %2416 = vmatprep.subr.mxu0 0.0
    %2417 = vmatpush1.msra.mxu0 0.0
    %2418 = vmatprep.subr.mxu0 0.0
    %2419 = vmatpush1.msra.mxu0 0.0
    %2420 = vmatprep.subr.mxu0 0.0
    %2421 = vmatpush1.msra.mxu0 0.0
    %2422 = vmatprep.subr.mxu0 0.0
    %2423 = vmatpush1.msra.mxu0 0.0
    %2424 = vmatprep.subr.mxu0 0.0
    %2425 = vmatpush1.msra.mxu0 0.0
    %2426 = vmatprep.subr.mxu0 0.0
    %2427 = vmatpush1.msra.mxu0 0.0
    %2428 = vmatprep.subr.mxu0 0.0
    %2429 = vmatpush1.msra.mxu0 0.0
    %2430 = vmatprep.subr.mxu0 0.0
    %2431 = vmatpush1.msra.mxu0 0.0
    %2432 = vmatprep.subr.mxu0 0.0
    %2433 = vmatpush1.msra.mxu0 0.0
    %2434 = vmatprep.mubr.f32.mxu0 0.0
    %2435 = vmatmul.mubr.f32.gmra.mrb[0].mxu0 %v2368
    %v2436 = vpop.f32.mrb[0].mxu0
    %v2437 = vadd.f32 0.0, %v2436
    %v2438 = vpop.f32.mrb[0].mxu0
    %2439 = vdwg.mxu0
    %2441 = vrot.lane.b32.xlu0 %v2437, 16
    %v2442 = vpop.permute.xlu0 %2441
    %2444 = vst.msk [vmem:[#allocation2] sm:$0xff] %vm779, %v2442
    %2445 = vrot.lane.b32.xlu0 %v1939, 104
    %v2446 = vpop.permute.xlu0 %2445
    %2447 = vrot.lane.b32.xlu0 %v1931, 104
    %v2448 = vpop.permute.xlu0 %2447
    %v2449 = vsel %vm275, %v2446, 0
    %v2451 = vsel %vm275, %v2448, 0
    %2453 = vmatprep.subr.mxu0 0.0
    %2454 = vmatpush1.xpose.msra.mxu0 %v2451
    %2455 = vmatprep.subr.mxu0 0.0
    %2456 = vmatpush1.xpose.msra.mxu0 0.0
    %2457 = vmatprep.subr.mxu0 0.0
    %2458 = vmatpush1.xpose.msra.mxu0 0.0
    %2459 = vmatprep.subr.mxu0 0.0
    %2460 = vmatpush1.xpose.msra.mxu0 0.0
    %2461 = vmatprep.subr.mxu0 0.0
    %2462 = vmatpush1.xpose.msra.mxu0 0.0
    %2463 = vmatprep.subr.mxu0 0.0
    %2464 = vmatpush1.xpose.msra.mxu0 0.0
    %2465 = vmatprep.subr.mxu0 0.0
    %2466 = vmatpush1.xpose.msra.mxu0 0.0
    %2467 = vmatprep.subr.mxu0 0.0
    %2468 = vmatpush1.xpose.msra.mxu0 0.0
    %2469 = vmatprep.subr.mxu0 0.0
    %2470 = vmatpush1.xpose.msra.mxu0 0.0
    %2471 = vmatprep.subr.mxu0 0.0
    %2472 = vmatpush1.xpose.msra.mxu0 0.0
    %2473 = vmatprep.subr.mxu0 0.0
    %2474 = vmatpush1.xpose.msra.mxu0 0.0
    %2475 = vmatprep.subr.mxu0 0.0
    %2476 = vmatpush1.xpose.msra.mxu0 0.0
    %2477 = vmatprep.subr.mxu0 0.0
    %2478 = vmatpush1.xpose.msra.mxu0 0.0
    %2479 = vmatprep.subr.mxu0 0.0
    %2480 = vmatpush1.xpose.msra.mxu0 0.0
    %2481 = vmatprep.subr.mxu0 0.0
    %2482 = vmatpush1.xpose.msra.mxu0 0.0
    %2483 = vmatprep.subr.mxu0 0.0
    %2484 = vmatpush1.xpose.msra.mxu0 0.0
    %2485 = vmatprep.subr.mxu0 0.0
    %2486 = vmatpush1.xpose.msra.mxu0 0.0
    %2487 = vmatprep.subr.mxu0 0.0
    %2488 = vmatpush1.xpose.msra.mxu0 0.0
    %2489 = vmatprep.subr.mxu0 0.0
    %2490 = vmatpush1.xpose.msra.mxu0 0.0
    %2491 = vmatprep.subr.mxu0 0.0
    %2492 = vmatpush1.xpose.msra.mxu0 0.0
    %2493 = vmatprep.subr.mxu0 0.0
    %2494 = vmatpush1.xpose.msra.mxu0 0.0
    %2495 = vmatprep.subr.mxu0 0.0
    %2496 = vmatpush1.xpose.msra.mxu0 0.0
    %2497 = vmatprep.subr.mxu0 0.0
    %2498 = vmatpush1.xpose.msra.mxu0 0.0
    %2499 = vmatprep.subr.mxu0 0.0
    %2500 = vmatpush1.xpose.msra.mxu0 0.0
    %2501 = vmatprep.subr.mxu0 0.0
    %2502 = vmatpush1.xpose.msra.mxu0 0.0
    %2503 = vmatprep.subr.mxu0 0.0
    %2504 = vmatpush1.xpose.msra.mxu0 0.0
    %2505 = vmatprep.subr.mxu0 0.0
    %2506 = vmatpush1.xpose.msra.mxu0 0.0
    %2507 = vmatprep.subr.mxu0 0.0
    %2508 = vmatpush1.xpose.msra.mxu0 0.0
    %2509 = vmatprep.subr.mxu0 0.0
    %2510 = vmatpush1.xpose.msra.mxu0 0.0
    %2511 = vmatprep.subr.mxu0 0.0
    %2512 = vmatpush1.xpose.msra.mxu0 0.0
    %2513 = vmatprep.subr.mxu0 0.0
    %2514 = vmatpush1.xpose.msra.mxu0 0.0
    %2515 = vmatprep.subr.mxu0 0.0
    %2516 = vmatpush1.xpose.msra.mxu0 0.0
    %2517 = vmatprep.mubr.f32.mxu0 0.0
    %2518 = vmatmul.mubr.f32.gmra.mrb[0].mxu0 %v2449
    %v2519 = vpop.f32.mrb[0].mxu0
    %v2520 = vadd.f32 0.0, %v2519
    %v2521 = vpop.f32.mrb[0].mxu0
    %2522 = vdwg.mxu0
    %v2523 = vsel %vm275, %v2520, -inf
    %2524 = vmax.xlane.f32.xlu0 %v2523
    %v2525 = vpop.xlane.xlu0 %2524
    %v2526 = vsub.f32 %v2520, %v2525
    %v2527 = vmul.f32 %v2526, 1.442695
    %v2528 = vpow.pop %v2527
    %v2529 = vsel %vm275, %v2528, 0.0
    %2530 = vadd.xlane.f32.xlu0 %v2529
    %v2531 = vpop.xlane.xlu0 %2530
    %v2532 = vrcp.pop %v2531
    %v2533 = vmul.f32 %v2528, %v2532
    %2534 = vrot.lane.b32.xlu0 %v1931, 72
    %v2535 = vpop.permute.xlu0 %2534
    %v2538 = vsel %vm275, %v2533, 0
    %2540 = vmatprep.subr.mxu0 0.0
    %2541 = vmatpush1.msra.mxu0 %v2535
    %2542 = vmatprep.subr.mxu0 0.0
    %2543 = vmatpush1.msra.mxu0 0.0
    %2544 = vmatprep.subr.mxu0 0.0
    %2545 = vmatpush1.msra.mxu0 0.0
    %2546 = vmatprep.subr.mxu0 0.0
    %2547 = vmatpush1.msra.mxu0 0.0
    %2548 = vmatprep.subr.mxu0 0.0
    %2549 = vmatpush1.msra.mxu0 0.0
    %2550 = vmatprep.subr.mxu0 0.0
    %2551 = vmatpush1.msra.mxu0 0.0
    %2552 = vmatprep.subr.mxu0 0.0
    %2553 = vmatpush1.msra.mxu0 0.0
    %2554 = vmatprep.subr.mxu0 0.0
    %2555 = vmatpush1.msra.mxu0 0.0
    %2556 = vmatprep.subr.mxu0 0.0
    %2557 = vmatpush1.msra.mxu0 0.0
    %2558 = vmatprep.subr.mxu0 0.0
    %2559 = vmatpush1.msra.mxu0 0.0
    %2560 = vmatprep.subr.mxu0 0.0
    %2561 = vmatpush1.msra.mxu0 0.0
    %2562 = vmatprep.subr.mxu0 0.0
    %2563 = vmatpush1.msra.mxu0 0.0
    %2564 = vmatprep.subr.mxu0 0.0
    %2565 = vmatpush1.msra.mxu0 0.0
    %2566 = vmatprep.subr.mxu0 0.0
    %2567 = vmatpush1.msra.mxu0 0.0
    %2568 = vmatprep.subr.mxu0 0.0
    %2569 = vmatpush1.msra.mxu0 0.0
    %2570 = vmatprep.subr.mxu0 0.0
    %2571 = vmatpush1.msra.mxu0 0.0
    %2572 = vmatprep.subr.mxu0 0.0
    %2573 = vmatpush1.msra.mxu0 0.0
    %2574 = vmatprep.subr.mxu0 0.0
    %2575 = vmatpush1.msra.mxu0 0.0
    %2576 = vmatprep.subr.mxu0 0.0
    %2577 = vmatpush1.msra.mxu0 0.0
    %2578 = vmatprep.subr.mxu0 0.0
    %2579 = vmatpush1.msra.mxu0 0.0
    %2580 = vmatprep.subr.mxu0 0.0
    %2581 = vmatpush1.msra.mxu0 0.0
    %2582 = vmatprep.subr.mxu0 0.0
    %2583 = vmatpush1.msra.mxu0 0.0
    %2584 = vmatprep.subr.mxu0 0.0
    %2585 = vmatpush1.msra.mxu0 0.0
    %2586 = vmatprep.subr.mxu0 0.0
    %2587 = vmatpush1.msra.mxu0 0.0
    %2588 = vmatprep.subr.mxu0 0.0
    %2589 = vmatpush1.msra.mxu0 0.0
    %2590 = vmatprep.subr.mxu0 0.0
    %2591 = vmatpush1.msra.mxu0 0.0
    %2592 = vmatprep.subr.mxu0 0.0
    %2593 = vmatpush1.msra.mxu0 0.0
    %2594 = vmatprep.subr.mxu0 0.0
    %2595 = vmatpush1.msra.mxu0 0.0
    %2596 = vmatprep.subr.mxu0 0.0
    %2597 = vmatpush1.msra.mxu0 0.0
    %2598 = vmatprep.subr.mxu0 0.0
    %2599 = vmatpush1.msra.mxu0 0.0
    %2600 = vmatprep.subr.mxu0 0.0
    %2601 = vmatpush1.msra.mxu0 0.0
    %2602 = vmatprep.subr.mxu0 0.0
    %2603 = vmatpush1.msra.mxu0 0.0
    %2604 = vmatprep.mubr.f32.mxu0 0.0
    %2605 = vmatmul.mubr.f32.gmra.mrb[0].mxu0 %v2538
    %v2606 = vpop.f32.mrb[0].mxu0
    %v2607 = vadd.f32 0.0, %v2606
    %v2608 = vpop.f32.mrb[0].mxu0
    %2609 = vdwg.mxu0
    %2611 = vrot.lane.b32.xlu0 %v2607, 24
    %v2612 = vpop.permute.xlu0 %2611
    %2614 = vst.msk [vmem:[#allocation2] sm:$0xff] %vm950, %v2612
    %v2616 = vsel %vm275, %v1940, 0
    %v2619 = vsel %vm275, %v1936, 0
    %2621 = vmatprep.subr.mxu0 0.0
    %2622 = vmatpush1.xpose.msra.mxu0 %v2619
    %2623 = vmatprep.subr.mxu0 0.0
    %2624 = vmatpush1.xpose.msra.mxu0 0.0
    %2625 = vmatprep.subr.mxu0 0.0
    %2626 = vmatpush1.xpose.msra.mxu0 0.0
    %2627 = vmatprep.subr.mxu0 0.0
    %2628 = vmatpush1.xpose.msra.mxu0 0.0
    %2629 = vmatprep.subr.mxu0 0.0
    %2630 = vmatpush1.xpose.msra.mxu0 0.0
    %2631 = vmatprep.subr.mxu0 0.0
    %2632 = vmatpush1.xpose.msra.mxu0 0.0
    %2633 = vmatprep.subr.mxu0 0.0
    %2634 = vmatpush1.xpose.msra.mxu0 0.0
    %2635 = vmatprep.subr.mxu0 0.0
    %2636 = vmatpush1.xpose.msra.mxu0 0.0
    %2637 = vmatprep.subr.mxu0 0.0
    %2638 = vmatpush1.xpose.msra.mxu0 0.0
    %2639 = vmatprep.subr.mxu0 0.0
    %2640 = vmatpush1.xpose.msra.mxu0 0.0
    %2641 = vmatprep.subr.mxu0 0.0
    %2642 = vmatpush1.xpose.msra.mxu0 0.0
    %2643 = vmatprep.subr.mxu0 0.0
    %2644 = vmatpush1.xpose.msra.mxu0 0.0
    %2645 = vmatprep.subr.mxu0 0.0
    %2646 = vmatpush1.xpose.msra.mxu0 0.0
    %2647 = vmatprep.subr.mxu0 0.0
    %2648 = vmatpush1.xpose.msra.mxu0 0.0
    %2649 = vmatprep.subr.mxu0 0.0
    %2650 = vmatpush1.xpose.msra.mxu0 0.0
    %2651 = vmatprep.subr.mxu0 0.0
    %2652 = vmatpush1.xpose.msra.mxu0 0.0
    %2653 = vmatprep.subr.mxu0 0.0
    %2654 = vmatpush1.xpose.msra.mxu0 0.0
    %2655 = vmatprep.subr.mxu0 0.0
    %2656 = vmatpush1.xpose.msra.mxu0 0.0
    %2657 = vmatprep.subr.mxu0 0.0
    %2658 = vmatpush1.xpose.msra.mxu0 0.0
    %2659 = vmatprep.subr.mxu0 0.0
    %2660 = vmatpush1.xpose.msra.mxu0 0.0
    %2661 = vmatprep.subr.mxu0 0.0
    %2662 = vmatpush1.xpose.msra.mxu0 0.0
    %2663 = vmatprep.subr.mxu0 0.0
    %2664 = vmatpush1.xpose.msra.mxu0 0.0
    %2665 = vmatprep.subr.mxu0 0.0
    %2666 = vmatpush1.xpose.msra.mxu0 0.0
    %2667 = vmatprep.subr.mxu0 0.0
    %2668 = vmatpush1.xpose.msra.mxu0 0.0
    %2669 = vmatprep.subr.mxu0 0.0
    %2670 = vmatpush1.xpose.msra.mxu0 0.0
    %2671 = vmatprep.subr.mxu0 0.0
    %2672 = vmatpush1.xpose.msra.mxu0 0.0
    %2673 = vmatprep.subr.mxu0 0.0
    %2674 = vmatpush1.xpose.msra.mxu0 0.0
    %2675 = vmatprep.subr.mxu0 0.0
    %2676 = vmatpush1.xpose.msra.mxu0 0.0
    %2677 = vmatprep.subr.mxu0 0.0
    %2678 = vmatpush1.xpose.msra.mxu0 0.0
    %2679 = vmatprep.subr.mxu0 0.0
    %2680 = vmatpush1.xpose.msra.mxu0 0.0
    %2681 = vmatprep.subr.mxu0 0.0
    %2682 = vmatpush1.xpose.msra.mxu0 0.0
    %2683 = vmatprep.subr.mxu0 0.0
    %2684 = vmatpush1.xpose.msra.mxu0 0.0
    %2685 = vmatprep.mubr.f32.mxu0 0.0
    %2686 = vmatmul.mubr.f32.gmra.mrb[0].mxu0 %v2616
    %v2687 = vpop.f32.mrb[0].mxu0
    %v2688 = vadd.f32 0.0, %v2687
    %v2689 = vpop.f32.mrb[0].mxu0
    %2690 = vdwg.mxu0
    %v2691 = vsel %vm275, %v2688, -inf
    %2692 = vmax.xlane.f32.xlu0 %v2691
    %v2693 = vpop.xlane.xlu0 %2692
    %v2694 = vsub.f32 %v2688, %v2693
    %v2695 = vmul.f32 %v2694, 1.442695
    %v2696 = vpow.pop %v2695
    %v2697 = vsel %vm275, %v2696, 0.0
    %2698 = vadd.xlane.f32.xlu0 %v2697
    %v2699 = vpop.xlane.xlu0 %2698
    %v2700 = vrcp.pop %v2699
    %v2701 = vmul.f32 %v2696, %v2700
    %2702 = vrot.lane.b32.xlu0 %v1936, 96
    %v2703 = vpop.permute.xlu0 %2702
    %v2706 = vsel %vm275, %v2701, 0
    %2708 = vmatprep.subr.mxu0 0.0
    %2709 = vmatpush1.msra.mxu0 %v2703
    %2710 = vmatprep.subr.mxu0 0.0
    %2711 = vmatpush1.msra.mxu0 0.0
    %2712 = vmatprep.subr.mxu0 0.0
    %2713 = vmatpush1.msra.mxu0 0.0
    %2714 = vmatprep.subr.mxu0 0.0
    %2715 = vmatpush1.msra.mxu0 0.0
    %2716 = vmatprep.subr.mxu0 0.0
    %2717 = vmatpush1.msra.mxu0 0.0
    %2718 = vmatprep.subr.mxu0 0.0
    %2719 = vmatpush1.msra.mxu0 0.0
    %2720 = vmatprep.subr.mxu0 0.0
    %2721 = vmatpush1.msra.mxu0 0.0
    %2722 = vmatprep.subr.mxu0 0.0
    %2723 = vmatpush1.msra.mxu0 0.0
    %2724 = vmatprep.subr.mxu0 0.0
    %2725 = vmatpush1.msra.mxu0 0.0
    %2726 = vmatprep.subr.mxu0 0.0
    %2727 = vmatpush1.msra.mxu0 0.0
    %2728 = vmatprep.subr.mxu0 0.0
    %2729 = vmatpush1.msra.mxu0 0.0
    %2730 = vmatprep.subr.mxu0 0.0
    %2731 = vmatpush1.msra.mxu0 0.0
    %2732 = vmatprep.subr.mxu0 0.0
    %2733 = vmatpush1.msra.mxu0 0.0
    %2734 = vmatprep.subr.mxu0 0.0
    %2735 = vmatpush1.msra.mxu0 0.0
    %2736 = vmatprep.subr.mxu0 0.0
    %2737 = vmatpush1.msra.mxu0 0.0
    %2738 = vmatprep.subr.mxu0 0.0
    %2739 = vmatpush1.msra.mxu0 0.0
    %2740 = vmatprep.subr.mxu0 0.0
    %2741 = vmatpush1.msra.mxu0 0.0
    %2742 = vmatprep.subr.mxu0 0.0
    %2743 = vmatpush1.msra.mxu0 0.0
    %2744 = vmatprep.subr.mxu0 0.0
    %2745 = vmatpush1.msra.mxu0 0.0
    %2746 = vmatprep.subr.mxu0 0.0
    %2747 = vmatpush1.msra.mxu0 0.0
    %2748 = vmatprep.subr.mxu0 0.0
    %2749 = vmatpush1.msra.mxu0 0.0
    %2750 = vmatprep.subr.mxu0 0.0
    %2751 = vmatpush1.msra.mxu0 0.0
    %2752 = vmatprep.subr.mxu0 0.0
    %2753 = vmatpush1.msra.mxu0 0.0
    %2754 = vmatprep.subr.mxu0 0.0
    %2755 = vmatpush1.msra.mxu0 0.0
    %2756 = vmatprep.subr.mxu0 0.0
    %2757 = vmatpush1.msra.mxu0 0.0
    %2758 = vmatprep.subr.mxu0 0.0
    %2759 = vmatpush1.msra.mxu0 0.0
    %2760 = vmatprep.subr.mxu0 0.0
    %2761 = vmatpush1.msra.mxu0 0.0
    %2762 = vmatprep.subr.mxu0 0.0
    %2763 = vmatpush1.msra.mxu0 0.0
    %2764 = vmatprep.subr.mxu0 0.0
    %2765 = vmatpush1.msra.mxu0 0.0
    %2766 = vmatprep.subr.mxu0 0.0
    %2767 = vmatpush1.msra.mxu0 0.0
    %2768 = vmatprep.subr.mxu0 0.0
    %2769 = vmatpush1.msra.mxu0 0.0
    %2770 = vmatprep.subr.mxu0 0.0
    %2771 = vmatpush1.msra.mxu0 0.0
    %2772 = vmatprep.mubr.f32.mxu0 0.0
    %2773 = vmatmul.mubr.f32.gmra.mrb[0].mxu0 %v2706
    %v2774 = vpop.f32.mrb[0].mxu0
    %v2775 = vadd.f32 0.0, %v2774
    %v2776 = vpop.f32.mrb[0].mxu0
    %2777 = vdwg.mxu0
    %2778 = vst.msk [vmem:[#allocation2 + $0x8] sm:$0xff] %vm275, %v2775
    %2779 = vrot.lane.b32.xlu0 %v1940, 120
    %v2780 = vpop.permute.xlu0 %2779
    %2781 = vrot.lane.b32.xlu0 %v1936, 120
    %v2782 = vpop.permute.xlu0 %2781
    %v2783 = vsel %vm275, %v2780, 0
    %v2785 = vsel %vm275, %v2782, 0
    %2787 = vmatprep.subr.mxu0 0.0
    %2788 = vmatpush1.xpose.msra.mxu0 %v2785
    %2789 = vmatprep.subr.mxu0 0.0
    %2790 = vmatpush1.xpose.msra.mxu0 0.0
    %2791 = vmatprep.subr.mxu0 0.0
    %2792 = vmatpush1.xpose.msra.mxu0 0.0
    %2793 = vmatprep.subr.mxu0 0.0
    %2794 = vmatpush1.xpose.msra.mxu0 0.0
    %2795 = vmatprep.subr.mxu0 0.0
    %2796 = vmatpush1.xpose.msra.mxu0 0.0
    %2797 = vmatprep.subr.mxu0 0.0
    %2798 = vmatpush1.xpose.msra.mxu0 0.0
    %2799 = vmatprep.subr.mxu0 0.0
    %2800 = vmatpush1.xpose.msra.mxu0 0.0
    %2801 = vmatprep.subr.mxu0 0.0
    %2802 = vmatpush1.xpose.msra.mxu0 0.0
    %2803 = vmatprep.subr.mxu0 0.0
    %2804 = vmatpush1.xpose.msra.mxu0 0.0
    %2805 = vmatprep.subr.mxu0 0.0
    %2806 = vmatpush1.xpose.msra.mxu0 0.0
    %2807 = vmatprep.subr.mxu0 0.0
    %2808 = vmatpush1.xpose.msra.mxu0 0.0
    %2809 = vmatprep.subr.mxu0 0.0
    %2810 = vmatpush1.xpose.msra.mxu0 0.0
    %2811 = vmatprep.subr.mxu0 0.0
    %2812 = vmatpush1.xpose.msra.mxu0 0.0
    %2813 = vmatprep.subr.mxu0 0.0
    %2814 = vmatpush1.xpose.msra.mxu0 0.0
    %2815 = vmatprep.subr.mxu0 0.0
    %2816 = vmatpush1.xpose.msra.mxu0 0.0
    %2817 = vmatprep.subr.mxu0 0.0
    %2818 = vmatpush1.xpose.msra.mxu0 0.0
    %2819 = vmatprep.subr.mxu0 0.0
    %2820 = vmatpush1.xpose.msra.mxu0 0.0
    %2821 = vmatprep.subr.mxu0 0.0
    %2822 = vmatpush1.xpose.msra.mxu0 0.0
    %2823 = vmatprep.subr.mxu0 0.0
    %2824 = vmatpush1.xpose.msra.mxu0 0.0
    %2825 = vmatprep.subr.mxu0 0.0
    %2826 = vmatpush1.xpose.msra.mxu0 0.0
    %2827 = vmatprep.subr.mxu0 0.0
    %2828 = vmatpush1.xpose.msra.mxu0 0.0
    %2829 = vmatprep.subr.mxu0 0.0
    %2830 = vmatpush1.xpose.msra.mxu0 0.0
    %2831 = vmatprep.subr.mxu0 0.0
    %2832 = vmatpush1.xpose.msra.mxu0 0.0
    %2833 = vmatprep.subr.mxu0 0.0
    %2834 = vmatpush1.xpose.msra.mxu0 0.0
    %2835 = vmatprep.subr.mxu0 0.0
    %2836 = vmatpush1.xpose.msra.mxu0 0.0
    %2837 = vmatprep.subr.mxu0 0.0
    %2838 = vmatpush1.xpose.msra.mxu0 0.0
    %2839 = vmatprep.subr.mxu0 0.0
    %2840 = vmatpush1.xpose.msra.mxu0 0.0
    %2841 = vmatprep.subr.mxu0 0.0
    %2842 = vmatpush1.xpose.msra.mxu0 0.0
    %2843 = vmatprep.subr.mxu0 0.0
    %2844 = vmatpush1.xpose.msra.mxu0 0.0
    %2845 = vmatprep.subr.mxu0 0.0
    %2846 = vmatpush1.xpose.msra.mxu0 0.0
    %2847 = vmatprep.subr.mxu0 0.0
    %2848 = vmatpush1.xpose.msra.mxu0 0.0
    %2849 = vmatprep.subr.mxu0 0.0
    %2850 = vmatpush1.xpose.msra.mxu0 0.0
    %2851 = vmatprep.mubr.f32.mxu0 0.0
    %2852 = vmatmul.mubr.f32.gmra.mrb[0].mxu0 %v2783
    %v2853 = vpop.f32.mrb[0].mxu0
    %v2854 = vadd.f32 0.0, %v2853
    %v2855 = vpop.f32.mrb[0].mxu0
    %2856 = vdwg.mxu0
    %v2857 = vsel %vm275, %v2854, -inf
    %2858 = vmax.xlane.f32.xlu0 %v2857
    %v2859 = vpop.xlane.xlu0 %2858
    %v2860 = vsub.f32 %v2854, %v2859
    %v2861 = vmul.f32 %v2860, 1.442695
    %v2862 = vpow.pop %v2861
    %v2863 = vsel %vm275, %v2862, 0.0
    %2864 = vadd.xlane.f32.xlu0 %v2863
    %v2865 = vpop.xlane.xlu0 %2864
    %v2866 = vrcp.pop %v2865
    %v2867 = vmul.f32 %v2862, %v2866
    %2868 = vrot.lane.b32.xlu0 %v1936, 88
    %v2869 = vpop.permute.xlu0 %2868
    %v2872 = vsel %vm275, %v2867, 0
    %2874 = vmatprep.subr.mxu0 0.0
    %2875 = vmatpush1.msra.mxu0 %v2869
    %2876 = vmatprep.subr.mxu0 0.0
    %2877 = vmatpush1.msra.mxu0 0.0
    %2878 = vmatprep.subr.mxu0 0.0
    %2879 = vmatpush1.msra.mxu0 0.0
    %2880 = vmatprep.subr.mxu0 0.0
    %2881 = vmatpush1.msra.mxu0 0.0
    %2882 = vmatprep.subr.mxu0 0.0
    %2883 = vmatpush1.msra.mxu0 0.0
    %2884 = vmatprep.subr.mxu0 0.0
    %2885 = vmatpush1.msra.mxu0 0.0
    %2886 = vmatprep.subr.mxu0 0.0
    %2887 = vmatpush1.msra.mxu0 0.0
    %2888 = vmatprep.subr.mxu0 0.0
    %2889 = vmatpush1.msra.mxu0 0.0
    %2890 = vmatprep.subr.mxu0 0.0
    %2891 = vmatpush1.msra.mxu0 0.0
    %2892 = vmatprep.subr.mxu0 0.0
    %2893 = vmatpush1.msra.mxu0 0.0
    %2894 = vmatprep.subr.mxu0 0.0
    %2895 = vmatpush1.msra.mxu0 0.0
    %2896 = vmatprep.subr.mxu0 0.0
    %2897 = vmatpush1.msra.mxu0 0.0
    %2898 = vmatprep.subr.mxu0 0.0
    %2899 = vmatpush1.msra.mxu0 0.0
    %2900 = vmatprep.subr.mxu0 0.0
    %2901 = vmatpush1.msra.mxu0 0.0
    %2902 = vmatprep.subr.mxu0 0.0
    %2903 = vmatpush1.msra.mxu0 0.0
    %2904 = vmatprep.subr.mxu0 0.0
    %2905 = vmatpush1.msra.mxu0 0.0
    %2906 = vmatprep.subr.mxu0 0.0
    %2907 = vmatpush1.msra.mxu0 0.0
    %2908 = vmatprep.subr.mxu0 0.0
    %2909 = vmatpush1.msra.mxu0 0.0
    %2910 = vmatprep.subr.mxu0 0.0
    %2911 = vmatpush1.msra.mxu0 0.0
    %2912 = vmatprep.subr.mxu0 0.0
    %2913 = vmatpush1.msra.mxu0 0.0
    %2914 = vmatprep.subr.mxu0 0.0
    %2915 = vmatpush1.msra.mxu0 0.0
    %2916 = vmatprep.subr.mxu0 0.0
    %2917 = vmatpush1.msra.mxu0 0.0
    %2918 = vmatprep.subr.mxu0 0.0
    %2919 = vmatpush1.msra.mxu0 0.0
    %2920 = vmatprep.subr.mxu0 0.0
    %2921 = vmatpush1.msra.mxu0 0.0
    %2922 = vmatprep.subr.mxu0 0.0
    %2923 = vmatpush1.msra.mxu0 0.0
    %2924 = vmatprep.subr.mxu0 0.0
    %2925 = vmatpush1.msra.mxu0 0.0
    %2926 = vmatprep.subr.mxu0 0.0
    %2927 = vmatpush1.msra.mxu0 0.0
    %2928 = vmatprep.subr.mxu0 0.0
    %2929 = vmatpush1.msra.mxu0 0.0
    %2930 = vmatprep.subr.mxu0 0.0
    %2931 = vmatpush1.msra.mxu0 0.0
    %2932 = vmatprep.subr.mxu0 0.0
    %2933 = vmatpush1.msra.mxu0 0.0
    %2934 = vmatprep.subr.mxu0 0.0
    %2935 = vmatpush1.msra.mxu0 0.0
    %2936 = vmatprep.subr.mxu0 0.0
    %2937 = vmatpush1.msra.mxu0 0.0
    %2938 = vmatprep.mubr.f32.mxu0 0.0
    %2939 = vmatmul.mubr.f32.gmra.mrb[0].mxu0 %v2872
    %v2940 = vpop.f32.mrb[0].mxu0
    %v2941 = vadd.f32 0.0, %v2940
    %v2942 = vpop.f32.mrb[0].mxu0
    %2943 = vdwg.mxu0
    %2945 = vrot.lane.b32.xlu0 %v2941, 8
    %v2946 = vpop.permute.xlu0 %2945
    %2948 = vst.msk [vmem:[#allocation2 + $0x8] sm:$0xff] %vm608, %v2946
    %2949 = vrot.lane.b32.xlu0 %v1940, 112
    %v2950 = vpop.permute.xlu0 %2949
    %2951 = vrot.lane.b32.xlu0 %v1936, 112
    %v2952 = vpop.permute.xlu0 %2951
    %v2953 = vsel %vm275, %v2950, 0
    %v2955 = vsel %vm275, %v2952, 0
    %2957 = vmatprep.subr.mxu0 0.0
    %2958 = vmatpush1.xpose.msra.mxu0 %v2955
    %2959 = vmatprep.subr.mxu0 0.0
    %2960 = vmatpush1.xpose.msra.mxu0 0.0
    %2961 = vmatprep.subr.mxu0 0.0
    %2962 = vmatpush1.xpose.msra.mxu0 0.0
    %2963 = vmatprep.subr.mxu0 0.0
    %2964 = vmatpush1.xpose.msra.mxu0 0.0
    %2965 = vmatprep.subr.mxu0 0.0
    %2966 = vmatpush1.xpose.msra.mxu0 0.0
    %2967 = vmatprep.subr.mxu0 0.0
    %2968 = vmatpush1.xpose.msra.mxu0 0.0
    %2969 = vmatprep.subr.mxu0 0.0
    %2970 = vmatpush1.xpose.msra.mxu0 0.0
    %2971 = vmatprep.subr.mxu0 0.0
    %2972 = vmatpush1.xpose.msra.mxu0 0.0
    %2973 = vmatprep.subr.mxu0 0.0
    %2974 = vmatpush1.xpose.msra.mxu0 0.0
    %2975 = vmatprep.subr.mxu0 0.0
    %2976 = vmatpush1.xpose.msra.mxu0 0.0
    %2977 = vmatprep.subr.mxu0 0.0
    %2978 = vmatpush1.xpose.msra.mxu0 0.0
    %2979 = vmatprep.subr.mxu0 0.0
    %2980 = vmatpush1.xpose.msra.mxu0 0.0
    %2981 = vmatprep.subr.mxu0 0.0
    %2982 = vmatpush1.xpose.msra.mxu0 0.0
    %2983 = vmatprep.subr.mxu0 0.0
    %2984 = vmatpush1.xpose.msra.mxu0 0.0
    %2985 = vmatprep.subr.mxu0 0.0
    %2986 = vmatpush1.xpose.msra.mxu0 0.0
    %2987 = vmatprep.subr.mxu0 0.0
    %2988 = vmatpush1.xpose.msra.mxu0 0.0
    %2989 = vmatprep.subr.mxu0 0.0
    %2990 = vmatpush1.xpose.msra.mxu0 0.0
    %2991 = vmatprep.subr.mxu0 0.0
    %2992 = vmatpush1.xpose.msra.mxu0 0.0
    %2993 = vmatprep.subr.mxu0 0.0
    %2994 = vmatpush1.xpose.msra.mxu0 0.0
    %2995 = vmatprep.subr.mxu0 0.0
    %2996 = vmatpush1.xpose.msra.mxu0 0.0
    %2997 = vmatprep.subr.mxu0 0.0
    %2998 = vmatpush1.xpose.msra.mxu0 0.0
    %2999 = vmatprep.subr.mxu0 0.0
    %3000 = vmatpush1.xpose.msra.mxu0 0.0
    %3001 = vmatprep.subr.mxu0 0.0
    %3002 = vmatpush1.xpose.msra.mxu0 0.0
    %3003 = vmatprep.subr.mxu0 0.0
    %3004 = vmatpush1.xpose.msra.mxu0 0.0
    %3005 = vmatprep.subr.mxu0 0.0
    %3006 = vmatpush1.xpose.msra.mxu0 0.0
    %3007 = vmatprep.subr.mxu0 0.0
    %3008 = vmatpush1.xpose.msra.mxu0 0.0
    %3009 = vmatprep.subr.mxu0 0.0
    %3010 = vmatpush1.xpose.msra.mxu0 0.0
    %3011 = vmatprep.subr.mxu0 0.0
    %3012 = vmatpush1.xpose.msra.mxu0 0.0
    %3013 = vmatprep.subr.mxu0 0.0
    %3014 = vmatpush1.xpose.msra.mxu0 0.0
    %3015 = vmatprep.subr.mxu0 0.0
    %3016 = vmatpush1.xpose.msra.mxu0 0.0
    %3017 = vmatprep.subr.mxu0 0.0
    %3018 = vmatpush1.xpose.msra.mxu0 0.0
    %3019 = vmatprep.subr.mxu0 0.0
    %3020 = vmatpush1.xpose.msra.mxu0 0.0
    %3021 = vmatprep.mubr.f32.mxu0 0.0
    %3022 = vmatmul.mubr.f32.gmra.mrb[0].mxu0 %v2953
    %v3023 = vpop.f32.mrb[0].mxu0
    %v3024 = vadd.f32 0.0, %v3023
    %v3025 = vpop.f32.mrb[0].mxu0
    %3026 = vdwg.mxu0
    %v3027 = vsel %vm275, %v3024, -inf
    %3028 = vmax.xlane.f32.xlu0 %v3027
    %v3029 = vpop.xlane.xlu0 %3028
    %v3030 = vsub.f32 %v3024, %v3029
    %v3031 = vmul.f32 %v3030, 1.442695
    %v3032 = vpow.pop %v3031
    %v3033 = vsel %vm275, %v3032, 0.0
    %3034 = vadd.xlane.f32.xlu0 %v3033
    %v3035 = vpop.xlane.xlu0 %3034
    %v3036 = vrcp.pop %v3035
    %v3037 = vmul.f32 %v3032, %v3036
    %3038 = vrot.lane.b32.xlu0 %v1936, 80
    %v3039 = vpop.permute.xlu0 %3038
    %v3042 = vsel %vm275, %v3037, 0
    %3044 = vmatprep.subr.mxu0 0.0
    %3045 = vmatpush1.msra.mxu0 %v3039
    %3046 = vmatprep.subr.mxu0 0.0
    %3047 = vmatpush1.msra.mxu0 0.0
    %3048 = vmatprep.subr.mxu0 0.0
    %3049 = vmatpush1.msra.mxu0 0.0
    %3050 = vmatprep.subr.mxu0 0.0
    %3051 = vmatpush1.msra.mxu0 0.0
    %3052 = vmatprep.subr.mxu0 0.0
    %3053 = vmatpush1.msra.mxu0 0.0
    %3054 = vmatprep.subr.mxu0 0.0
    %3055 = vmatpush1.msra.mxu0 0.0
    %3056 = vmatprep.subr.mxu0 0.0
    %3057 = vmatpush1.msra.mxu0 0.0
    %3058 = vmatprep.subr.mxu0 0.0
    %3059 = vmatpush1.msra.mxu0 0.0
    %3060 = vmatprep.subr.mxu0 0.0
    %3061 = vmatpush1.msra.mxu0 0.0
    %3062 = vmatprep.subr.mxu0 0.0
    %3063 = vmatpush1.msra.mxu0 0.0
    %3064 = vmatprep.subr.mxu0 0.0
    %3065 = vmatpush1.msra.mxu0 0.0
    %3066 = vmatprep.subr.mxu0 0.0
    %3067 = vmatpush1.msra.mxu0 0.0
    %3068 = vmatprep.subr.mxu0 0.0
    %3069 = vmatpush1.msra.mxu0 0.0
    %3070 = vmatprep.subr.mxu0 0.0
    %3071 = vmatpush1.msra.mxu0 0.0
    %3072 = vmatprep.subr.mxu0 0.0
    %3073 = vmatpush1.msra.mxu0 0.0
    %3074 = vmatprep.subr.mxu0 0.0
    %3075 = vmatpush1.msra.mxu0 0.0
    %3076 = vmatprep.subr.mxu0 0.0
    %3077 = vmatpush1.msra.mxu0 0.0
    %3078 = vmatprep.subr.mxu0 0.0
    %3079 = vmatpush1.msra.mxu0 0.0
    %3080 = vmatprep.subr.mxu0 0.0
    %3081 = vmatpush1.msra.mxu0 0.0
    %3082 = vmatprep.subr.mxu0 0.0
    %3083 = vmatpush1.msra.mxu0 0.0
    %3084 = vmatprep.subr.mxu0 0.0
    %3085 = vmatpush1.msra.mxu0 0.0
    %3086 = vmatprep.subr.mxu0 0.0
    %3087 = vmatpush1.msra.mxu0 0.0
    %3088 = vmatprep.subr.mxu0 0.0
    %3089 = vmatpush1.msra.mxu0 0.0
    %3090 = vmatprep.subr.mxu0 0.0
    %3091 = vmatpush1.msra.mxu0 0.0
    %3092 = vmatprep.subr.mxu0 0.0
    %3093 = vmatpush1.msra.mxu0 0.0
    %3094 = vmatprep.subr.mxu0 0.0
    %3095 = vmatpush1.msra.mxu0 0.0
    %3096 = vmatprep.subr.mxu0 0.0
    %3097 = vmatpush1.msra.mxu0 0.0
    %3098 = vmatprep.subr.mxu0 0.0
    %3099 = vmatpush1.msra.mxu0 0.0
    %3100 = vmatprep.subr.mxu0 0.0
    %3101 = vmatpush1.msra.mxu0 0.0
    %3102 = vmatprep.subr.mxu0 0.0
    %3103 = vmatpush1.msra.mxu0 0.0
    %3104 = vmatprep.subr.mxu0 0.0
    %3105 = vmatpush1.msra.mxu0 0.0
    %3106 = vmatprep.subr.mxu0 0.0
    %3107 = vmatpush1.msra.mxu0 0.0
    %3108 = vmatprep.mubr.f32.mxu0 0.0
    %3109 = vmatmul.mubr.f32.gmra.mrb[0].mxu0 %v3042
    %v3110 = vpop.f32.mrb[0].mxu0
    %v3111 = vadd.f32 0.0, %v3110
    %v3112 = vpop.f32.mrb[0].mxu0
    %3113 = vdwg.mxu0
    %3115 = vrot.lane.b32.xlu0 %v3111, 16
    %v3116 = vpop.permute.xlu0 %3115
    %3118 = vst.msk [vmem:[#allocation2 + $0x8] sm:$0xff] %vm779, %v3116
    %3119 = vrot.lane.b32.xlu0 %v1940, 104
    %v3120 = vpop.permute.xlu0 %3119
    %3121 = vrot.lane.b32.xlu0 %v1936, 104
    %v3122 = vpop.permute.xlu0 %3121
    %v3123 = vsel %vm275, %v3120, 0
    %v3125 = vsel %vm275, %v3122, 0
    %3127 = vmatprep.subr.mxu0 0.0
    %3128 = vmatpush1.xpose.msra.mxu0 %v3125
    %3129 = vmatprep.subr.mxu0 0.0
    %3130 = vmatpush1.xpose.msra.mxu0 0.0
    %3131 = vmatprep.subr.mxu0 0.0
    %3132 = vmatpush1.xpose.msra.mxu0 0.0
    %3133 = vmatprep.subr.mxu0 0.0
    %3134 = vmatpush1.xpose.msra.mxu0 0.0
    %3135 = vmatprep.subr.mxu0 0.0
    %3136 = vmatpush1.xpose.msra.mxu0 0.0
    %3137 = vmatprep.subr.mxu0 0.0
    %3138 = vmatpush1.xpose.msra.mxu0 0.0
    %3139 = vmatprep.subr.mxu0 0.0
    %3140 = vmatpush1.xpose.msra.mxu0 0.0
    %3141 = vmatprep.subr.mxu0 0.0
    %3142 = vmatpush1.xpose.msra.mxu0 0.0
    %3143 = vmatprep.subr.mxu0 0.0
    %3144 = vmatpush1.xpose.msra.mxu0 0.0
    %3145 = vmatprep.subr.mxu0 0.0
    %3146 = vmatpush1.xpose.msra.mxu0 0.0
    %3147 = vmatprep.subr.mxu0 0.0
    %3148 = vmatpush1.xpose.msra.mxu0 0.0
    %3149 = vmatprep.subr.mxu0 0.0
    %3150 = vmatpush1.xpose.msra.mxu0 0.0
    %3151 = vmatprep.subr.mxu0 0.0
    %3152 = vmatpush1.xpose.msra.mxu0 0.0
    %3153 = vmatprep.subr.mxu0 0.0
    %3154 = vmatpush1.xpose.msra.mxu0 0.0
    %3155 = vmatprep.subr.mxu0 0.0
    %3156 = vmatpush1.xpose.msra.mxu0 0.0
    %3157 = vmatprep.subr.mxu0 0.0
    %3158 = vmatpush1.xpose.msra.mxu0 0.0
    %3159 = vmatprep.subr.mxu0 0.0
    %3160 = vmatpush1.xpose.msra.mxu0 0.0
    %3161 = vmatprep.subr.mxu0 0.0
    %3162 = vmatpush1.xpose.msra.mxu0 0.0
    %3163 = vmatprep.subr.mxu0 0.0
    %3164 = vmatpush1.xpose.msra.mxu0 0.0
    %3165 = vmatprep.subr.mxu0 0.0
    %3166 = vmatpush1.xpose.msra.mxu0 0.0
    %3167 = vmatprep.subr.mxu0 0.0
    %3168 = vmatpush1.xpose.msra.mxu0 0.0
    %3169 = vmatprep.subr.mxu0 0.0
    %3170 = vmatpush1.xpose.msra.mxu0 0.0
    %3171 = vmatprep.subr.mxu0 0.0
    %3172 = vmatpush1.xpose.msra.mxu0 0.0
    %3173 = vmatprep.subr.mxu0 0.0
    %3174 = vmatpush1.xpose.msra.mxu0 0.0
    %3175 = vmatprep.subr.mxu0 0.0
    %3176 = vmatpush1.xpose.msra.mxu0 0.0
    %3177 = vmatprep.subr.mxu0 0.0
    %3178 = vmatpush1.xpose.msra.mxu0 0.0
    %3179 = vmatprep.subr.mxu0 0.0
    %3180 = vmatpush1.xpose.msra.mxu0 0.0
    %3181 = vmatprep.subr.mxu0 0.0
    %3182 = vmatpush1.xpose.msra.mxu0 0.0
    %3183 = vmatprep.subr.mxu0 0.0
    %3184 = vmatpush1.xpose.msra.mxu0 0.0
    %3185 = vmatprep.subr.mxu0 0.0
    %3186 = vmatpush1.xpose.msra.mxu0 0.0
    %3187 = vmatprep.subr.mxu0 0.0
    %3188 = vmatpush1.xpose.msra.mxu0 0.0
    %3189 = vmatprep.subr.mxu0 0.0
    %3190 = vmatpush1.xpose.msra.mxu0 0.0
    %3191 = vmatprep.mubr.f32.mxu0 0.0
    %3192 = vmatmul.mubr.f32.gmra.mrb[0].mxu0 %v3123
    %v3193 = vpop.f32.mrb[0].mxu0
    %v3194 = vadd.f32 0.0, %v3193
    %v3195 = vpop.f32.mrb[0].mxu0
    %3196 = vdwg.mxu0
    %v3197 = vsel %vm275, %v3194, -inf
    %3198 = vmax.xlane.f32.xlu0 %v3197
    %v3199 = vpop.xlane.xlu0 %3198
    %v3200 = vsub.f32 %v3194, %v3199
    %v3201 = vmul.f32 %v3200, 1.442695
    %v3202 = vpow.pop %v3201
    %v3203 = vsel %vm275, %v3202, 0.0
    %3204 = vadd.xlane.f32.xlu0 %v3203
    %v3205 = vpop.xlane.xlu0 %3204
    %v3206 = vrcp.pop %v3205
    %v3207 = vmul.f32 %v3202, %v3206
    %3208 = vrot.lane.b32.xlu0 %v1936, 72
    %v3209 = vpop.permute.xlu0 %3208
    %v3212 = vsel %vm275, %v3207, 0
    %3214 = vmatprep.subr.mxu0 0.0
    %3215 = vmatpush1.msra.mxu0 %v3209
    %3216 = vmatprep.subr.mxu0 0.0
    %3217 = vmatpush1.msra.mxu0 0.0
    %3218 = vmatprep.subr.mxu0 0.0
    %3219 = vmatpush1.msra.mxu0 0.0
    %3220 = vmatprep.subr.mxu0 0.0
    %3221 = vmatpush1.msra.mxu0 0.0
    %3222 = vmatprep.subr.mxu0 0.0
    %3223 = vmatpush1.msra.mxu0 0.0
    %3224 = vmatprep.subr.mxu0 0.0
    %3225 = vmatpush1.msra.mxu0 0.0
    %3226 = vmatprep.subr.mxu0 0.0
    %3227 = vmatpush1.msra.mxu0 0.0
    %3228 = vmatprep.subr.mxu0 0.0
    %3229 = vmatpush1.msra.mxu0 0.0
    %3230 = vmatprep.subr.mxu0 0.0
    %3231 = vmatpush1.msra.mxu0 0.0
    %3232 = vmatprep.subr.mxu0 0.0
    %3233 = vmatpush1.msra.mxu0 0.0
    %3234 = vmatprep.subr.mxu0 0.0
    %3235 = vmatpush1.msra.mxu0 0.0
    %3236 = vmatprep.subr.mxu0 0.0
    %3237 = vmatpush1.msra.mxu0 0.0
    %3238 = vmatprep.subr.mxu0 0.0
    %3239 = vmatpush1.msra.mxu0 0.0
    %3240 = vmatprep.subr.mxu0 0.0
    %3241 = vmatpush1.msra.mxu0 0.0
    %3242 = vmatprep.subr.mxu0 0.0
    %3243 = vmatpush1.msra.mxu0 0.0
    %3244 = vmatprep.subr.mxu0 0.0
    %3245 = vmatpush1.msra.mxu0 0.0
    %3246 = vmatprep.subr.mxu0 0.0
    %3247 = vmatpush1.msra.mxu0 0.0
    %3248 = vmatprep.subr.mxu0 0.0
    %3249 = vmatpush1.msra.mxu0 0.0
    %3250 = vmatprep.subr.mxu0 0.0
    %3251 = vmatpush1.msra.mxu0 0.0
    %3252 = vmatprep.subr.mxu0 0.0
    %3253 = vmatpush1.msra.mxu0 0.0
    %3254 = vmatprep.subr.mxu0 0.0
    %3255 = vmatpush1.msra.mxu0 0.0
    %3256 = vmatprep.subr.mxu0 0.0
    %3257 = vmatpush1.msra.mxu0 0.0
    %3258 = vmatprep.subr.mxu0 0.0
    %3259 = vmatpush1.msra.mxu0 0.0
    %3260 = vmatprep.subr.mxu0 0.0
    %3261 = vmatpush1.msra.mxu0 0.0
    %3262 = vmatprep.subr.mxu0 0.0
    %3263 = vmatpush1.msra.mxu0 0.0
    %3264 = vmatprep.subr.mxu0 0.0
    %3265 = vmatpush1.msra.mxu0 0.0
    %3266 = vmatprep.subr.mxu0 0.0
    %3267 = vmatpush1.msra.mxu0 0.0
    %3268 = vmatprep.subr.mxu0 0.0
    %3269 = vmatpush1.msra.mxu0 0.0
    %3270 = vmatprep.subr.mxu0 0.0
    %3271 = vmatpush1.msra.mxu0 0.0
    %3272 = vmatprep.subr.mxu0 0.0
    %3273 = vmatpush1.msra.mxu0 0.0
    %3274 = vmatprep.subr.mxu0 0.0
    %3275 = vmatpush1.msra.mxu0 0.0
    %3276 = vmatprep.subr.mxu0 0.0
    %3277 = vmatpush1.msra.mxu0 0.0
    %3278 = vmatprep.mubr.f32.mxu0 0.0
    %3279 = vmatmul.mubr.f32.gmra.mrb[0].mxu0 %v3212
    %v3280 = vpop.f32.mrb[0].mxu0
    %v3281 = vadd.f32 0.0, %v3280
    %v3282 = vpop.f32.mrb[0].mxu0
    %3283 = vdwg.mxu0
    %3285 = vrot.lane.b32.xlu0 %v3281, 24
    %v3286 = vpop.permute.xlu0 %3285
    %3288 = vst.msk [vmem:[#allocation2 + $0x8] sm:$0xff] %vm950, %v3286
    %v3289 = vld [vmem:[#allocation2] sm:$0xff]
    %v3290 = vld [vmem:[#allocation2 + $0x8] sm:$0xff]
    %v3291 = vld [vmem:[#allocation9] sm:$0xff]
    %v3292 = vld [vmem:[#allocation9 + $0x8] sm:$0xff]
    %v3293 = vld [vmem:[#allocation9 + $0x10] sm:$0xff]
    %v3294 = vld [vmem:[#allocation9 + $0x18] sm:$0xff]
    %v3296 = vsel %vm131, %v3289, 0
    %v3299 = vsel %vm131, %v3290, 0
    %3301 = vmatprep.subr.mxu0 0.0
    %3302 = vmatpush1.msra.mxu0 %v3291
    %3303 = vmatprep.subr.mxu0 0.0
    %3304 = vmatpush1.msra.mxu0 %v3292
    %3305 = vmatprep.subr.mxu0 0.0
    %3306 = vmatpush1.msra.mxu0 %v3293
    %3307 = vmatprep.subr.mxu0 0.0
    %3308 = vmatpush1.msra.mxu0 %v3294
    %3309 = vmatprep.subr.mxu0 0.0
    %3310 = vmatpush1.msra.mxu0 0.0
    %3311 = vmatprep.subr.mxu0 0.0
    %3312 = vmatpush1.msra.mxu0 0.0
    %3313 = vmatprep.subr.mxu0 0.0
    %3314 = vmatpush1.msra.mxu0 0.0
    %3315 = vmatprep.subr.mxu0 0.0
    %3316 = vmatpush1.msra.mxu0 0.0
    %3317 = vmatprep.subr.mxu0 0.0
    %3318 = vmatpush1.msra.mxu0 0.0
    %3319 = vmatprep.subr.mxu0 0.0
    %3320 = vmatpush1.msra.mxu0 0.0
    %3321 = vmatprep.subr.mxu0 0.0
    %3322 = vmatpush1.msra.mxu0 0.0
    %3323 = vmatprep.subr.mxu0 0.0
    %3324 = vmatpush1.msra.mxu0 0.0
    %3325 = vmatprep.subr.mxu0 0.0
    %3326 = vmatpush1.msra.mxu0 0.0
    %3327 = vmatprep.subr.mxu0 0.0
    %3328 = vmatpush1.msra.mxu0 0.0
    %3329 = vmatprep.subr.mxu0 0.0
    %3330 = vmatpush1.msra.mxu0 0.0
    %3331 = vmatprep.subr.mxu0 0.0
    %3332 = vmatpush1.msra.mxu0 0.0
    %3333 = vmatprep.subr.mxu0 0.0
    %3334 = vmatpush1.msra.mxu0 0.0
    %3335 = vmatprep.subr.mxu0 0.0
    %3336 = vmatpush1.msra.mxu0 0.0
    %3337 = vmatprep.subr.mxu0 0.0
    %3338 = vmatpush1.msra.mxu0 0.0
    %3339 = vmatprep.subr.mxu0 0.0
    %3340 = vmatpush1.msra.mxu0 0.0
    %3341 = vmatprep.subr.mxu0 0.0
    %3342 = vmatpush1.msra.mxu0 0.0
    %3343 = vmatprep.subr.mxu0 0.0
    %3344 = vmatpush1.msra.mxu0 0.0
    %3345 = vmatprep.subr.mxu0 0.0
    %3346 = vmatpush1.msra.mxu0 0.0
    %3347 = vmatprep.subr.mxu0 0.0
    %3348 = vmatpush1.msra.mxu0 0.0
    %3349 = vmatprep.subr.mxu0 0.0
    %3350 = vmatpush1.msra.mxu0 0.0
    %3351 = vmatprep.subr.mxu0 0.0
    %3352 = vmatpush1.msra.mxu0 0.0
    %3353 = vmatprep.subr.mxu0 0.0
    %3354 = vmatpush1.msra.mxu0 0.0
    %3355 = vmatprep.subr.mxu0 0.0
    %3356 = vmatpush1.msra.mxu0 0.0
    %3357 = vmatprep.subr.mxu0 0.0
    %3358 = vmatpush1.msra.mxu0 0.0
    %3359 = vmatprep.subr.mxu0 0.0
    %3360 = vmatpush1.msra.mxu0 0.0
    %3361 = vmatprep.subr.mxu0 0.0
    %3362 = vmatpush1.msra.mxu0 0.0
    %3363 = vmatprep.subr.mxu0 0.0
    %3364 = vmatpush1.msra.mxu0 0.0
    %3365 = vmatprep.mubr.f32.mxu0 0.0
    %3366 = vmatmul.mubr.f32.gmra.mrb[0].mxu0 %v3296
    %v3367 = vpop.f32.mrb[0].mxu0
    %v3368 = vadd.f32 0.0, %v3367
    %v3369 = vpop.f32.mrb[0].mxu0
    %3370 = vmatprep.mubr.f32.mxu0 0.0
    %3371 = vmatmul.mubr.f32.gmra.mrb[0].mxu0 %v3299
    %v3372 = vpop.f32.mrb[0].mxu0
    %v3373 = vadd.f32 0.0, %v3372
    %v3374 = vpop.f32.mrb[0].mxu0
    %3375 = vdwg.mxu0
    %v3376 = vadd.f32 %v1715, %v3368
    %v3377 = vadd.f32 %v1716, %v3373
    %v3378 = vsel %vm131, %v3376, 0.0
    %3379 = vadd.xlane.f32.xlu0 %v3378
    %v3380 = vpop.xlane.xlu0 %3379
    %v3381 = vsel %vm131, %v3377, 0.0
    %3382 = vadd.xlane.f32.xlu0 %v3381
    %v3383 = vpop.xlane.xlu0 %3382
    %v3384 = vmul.f32 %v3380, %v138
    %v3385 = vmul.f32 %v3383, %v138
    %v3386 = vsub.f32 %v3376, %v3384
    %v3387 = vsub.f32 %v3377, %v3385
    %v3388 = vmul.f32 %v3386, %v3386
    %v3389 = vmul.f32 %v3387, %v3387
    %v3390 = vsel %vm131, %v3388, 0.0
    %3391 = vadd.xlane.f32.xlu0 %v3390
    %v3392 = vpop.xlane.xlu0 %3391
    %v3393 = vsel %vm131, %v3389, 0.0
    %3394 = vadd.xlane.f32.xlu0 %v3393
    %v3395 = vpop.xlane.xlu0 %3394
    %v3396 = vmul.f32 %v3392, 0.032258064
    %v3397 = vmul.f32 %v3395, 0.032258064
    %v3398 = vrsqrt.pop %v3396
    %v3399 = vmul.f32 %v3396, %v3398
    %vm3400 = vcmp.eq.f32.partialorder %v3396, inf
    %v3401 = vsel %vm3400, %v3396, %v3399
    %vm3402 = vcmp.eq.f32.partialorder %v3396, 0.0
    %v3403 = vand.u32 %v3396, 2147483648
    %v3404 = vsel %vm3402, %v3403, %v3401
    %v3405 = vrsqrt.pop %v3397
    %v3406 = vmul.f32 %v3397, %v3405
    %vm3407 = vcmp.eq.f32.partialorder %v3397, inf
    %v3408 = vsel %vm3407, %v3397, %v3406
    %vm3409 = vcmp.eq.f32.partialorder %v3397, 0.0
    %v3410 = vand.u32 %v3397, 2147483648
    %v3411 = vsel %vm3409, %v3410, %v3408
    %v3412 = vadd.f32 %v3404, 1e-06
    %v3413 = vadd.f32 %v3411, 1e-06
    %v3414 = vrcp.pop %v3412
    %v3415 = vrcp.pop %v3413
    %v3416 = vmul.f32 %v3386, %v3414
    %v3417 = vmul.f32 %v3387, %v3415
    %v3418 = vlaneseq
    %v3419 = vshrl.u32 %v3418, 7
    %v3420 = vsub.s32 2, %v3419
    %v3421 = vrot.slane %v129, %v3420
    %v3422 = vmul.f32 %v3421, %v3416
    %v3423 = vmul.f32 %v3421, %v3417
    %v3424 = vlaneseq
    %v3425 = vshrl.u32 %v3424, 7
    %v3426 = vsub.s32 2, %v3425
    %v3427 = vrot.slane %v130, %v3426
    %v3428 = vadd.f32 %v3422, %v3427
    %v3429 = vadd.f32 %v3423, %v3427
    %3430 = vst.msk [vmem:[#allocation2] sm:$0xff] %vm131, 0.0
    %3431 = vst.msk [vmem:[#allocation2 + $0x8] sm:$0xff] %vm131, 0.0
    %v3432 = vld [vmem:[#allocation11] sm:$0xff]
    %v3433 = vld [vmem:[#allocation11 + $0x8] sm:$0xff]
    %v3434 = vld [vmem:[#allocation11 + $0x10] sm:$0xff]
    %v3435 = vld [vmem:[#allocation11 + $0x18] sm:$0xff]
    %v3436 = vld [vmem:[%s8] sm:$0x1]
    %v3438 = vlaneseq
    %v3439 = vshrl.u32 %v3438, 7
    %v3440 = vsub.s32 0, %v3439
    %v3441 = vrot.slane %v3436, %v3440
    %v3444 = vsel %vm131, %v3428, 0
    %v3447 = vsel %vm131, %v3429, 0
    %3449 = vmatprep.subr.mxu0 0.0
    %3450 = vmatpush1.msra.mxu0 %v3432
    %3451 = vmatprep.subr.mxu0 0.0
    %3452 = vmatpush1.msra.mxu0 %v3433
    %3453 = vmatprep.subr.mxu0 0.0
    %3454 = vmatpush1.msra.mxu0 %v3434
    %3455 = vmatprep.subr.mxu0 0.0
    %3456 = vmatpush1.msra.mxu0 %v3435
    %3457 = vmatprep.subr.mxu0 0.0
    %3458 = vmatpush1.msra.mxu0 0.0
    %3459 = vmatprep.subr.mxu0 0.0
    %3460 = vmatpush1.msra.mxu0 0.0
    %3461 = vmatprep.subr.mxu0 0.0
    %3462 = vmatpush1.msra.mxu0 0.0
    %3463 = vmatprep.subr.mxu0 0.0
    %3464 = vmatpush1.msra.mxu0 0.0
    %3465 = vmatprep.subr.mxu0 0.0
    %3466 = vmatpush1.msra.mxu0 0.0
    %3467 = vmatprep.subr.mxu0 0.0
    %3468 = vmatpush1.msra.mxu0 0.0
    %3469 = vmatprep.subr.mxu0 0.0
    %3470 = vmatpush1.msra.mxu0 0.0
    %3471 = vmatprep.subr.mxu0 0.0
    %3472 = vmatpush1.msra.mxu0 0.0
    %3473 = vmatprep.subr.mxu0 0.0
    %3474 = vmatpush1.msra.mxu0 0.0
    %3475 = vmatprep.subr.mxu0 0.0
    %3476 = vmatpush1.msra.mxu0 0.0
    %3477 = vmatprep.subr.mxu0 0.0
    %3478 = vmatpush1.msra.mxu0 0.0
    %3479 = vmatprep.subr.mxu0 0.0
    %3480 = vmatpush1.msra.mxu0 0.0
    %3481 = vmatprep.subr.mxu0 0.0
    %3482 = vmatpush1.msra.mxu0 0.0
    %3483 = vmatprep.subr.mxu0 0.0
    %3484 = vmatpush1.msra.mxu0 0.0
    %3485 = vmatprep.subr.mxu0 0.0
    %3486 = vmatpush1.msra.mxu0 0.0
    %3487 = vmatprep.subr.mxu0 0.0
    %3488 = vmatpush1.msra.mxu0 0.0
    %3489 = vmatprep.subr.mxu0 0.0
    %3490 = vmatpush1.msra.mxu0 0.0
    %3491 = vmatprep.subr.mxu0 0.0
    %3492 = vmatpush1.msra.mxu0 0.0
    %3493 = vmatprep.subr.mxu0 0.0
    %3494 = vmatpush1.msra.mxu0 0.0
    %3495 = vmatprep.subr.mxu0 0.0
    %3496 = vmatpush1.msra.mxu0 0.0
    %3497 = vmatprep.subr.mxu0 0.0
    %3498 = vmatpush1.msra.mxu0 0.0
    %3499 = vmatprep.subr.mxu0 0.0
    %3500 = vmatpush1.msra.mxu0 0.0
    %3501 = vmatprep.subr.mxu0 0.0
    %3502 = vmatpush1.msra.mxu0 0.0
    %3503 = vmatprep.subr.mxu0 0.0
    %3504 = vmatpush1.msra.mxu0 0.0
    %3505 = vmatprep.subr.mxu0 0.0
    %3506 = vmatpush1.msra.mxu0 0.0
    %3507 = vmatprep.subr.mxu0 0.0
    %3508 = vmatpush1.msra.mxu0 0.0
    %3509 = vmatprep.subr.mxu0 0.0
    %3510 = vmatpush1.msra.mxu0 0.0
    %3511 = vmatprep.subr.mxu0 0.0
    %3512 = vmatpush1.msra.mxu0 0.0
    %3513 = vmatprep.mubr.f32.mxu0 0.0
    %3514 = vmatmul.mubr.f32.gmra.mrb[0].mxu0 %v3444
    %v3515 = vpop.f32.mrb[0].mxu0
    %v3516 = vadd.f32 %v3441, %v3515
    %v3517 = vpop.f32.mrb[0].mxu0
    %3518 = vmatprep.mubr.f32.mxu0 0.0
    %3519 = vmatmul.mubr.f32.gmra.mrb[0].mxu0 %v3447
    %v3520 = vpop.f32.mrb[0].mxu0
    %v3521 = vadd.f32 %v3441, %v3520
    %v3522 = vpop.f32.mrb[0].mxu0
    %3523 = vdwg.mxu0
    %v3524 = vmax.f32 %v3516, 0.0
    %v3525 = vmax.f32 %v3521, 0.0
    %v3526 = vld [vmem:[#allocation2] sm:$0xff]
    %v3527 = vld [vmem:[#allocation2 + $0x8] sm:$0xff]
    %v3528 = vld [vmem:[%s9] sm:$0xff]
    %v3529 = vld [vmem:[%s9 + $0x8] sm:$0xff]
    %v3530 = vld [vmem:[%s9 + $0x10] sm:$0xff]
    %v3531 = vld [vmem:[%s9 + $0x18] sm:$0xff]
    %v3532 = vld [vmem:[%s9 + $0x20] sm:$0xff]
    %v3533 = vld [vmem:[%s9 + $0x28] sm:$0xff]
    %v3534 = vld [vmem:[%s9 + $0x30] sm:$0xff]
    %v3535 = vld [vmem:[%s9 + $0x38] sm:$0xff]
    %vm3536 = vcmask 523264
    %v3538 = vsel %vm3536, %v3524, 0
    %v3541 = vsel %vm3536, %v3525, 0
    %3543 = vmatprep.subr.mxu0 0.0
    %3544 = vmatpush1.msra.mxu0 %v3528
    %3545 = vmatprep.subr.mxu0 0.0
    %3546 = vmatpush1.msra.mxu0 %v3529
    %3547 = vmatprep.subr.mxu0 0.0
    %3548 = vmatpush1.msra.mxu0 %v3530
    %3549 = vmatprep.subr.mxu0 0.0
    %3550 = vmatpush1.msra.mxu0 %v3531
    %3551 = vmatprep.subr.mxu0 0.0
    %3552 = vmatpush1.msra.mxu0 %v3532
    %3553 = vmatprep.subr.mxu0 0.0
    %3554 = vmatpush1.msra.mxu0 %v3533
    %3555 = vmatprep.subr.mxu0 0.0
    %3556 = vmatpush1.msra.mxu0 %v3534
    %3557 = vmatprep.subr.mxu0 0.0
    %3558 = vmatpush1.msra.mxu0 %v3535
    %3559 = vmatprep.subr.mxu0 0.0
    %3560 = vmatpush1.msra.mxu0 0.0
    %3561 = vmatprep.subr.mxu0 0.0
    %3562 = vmatpush1.msra.mxu0 0.0
    %3563 = vmatprep.subr.mxu0 0.0
    %3564 = vmatpush1.msra.mxu0 0.0
    %3565 = vmatprep.subr.mxu0 0.0
    %3566 = vmatpush1.msra.mxu0 0.0
    %3567 = vmatprep.subr.mxu0 0.0
    %3568 = vmatpush1.msra.mxu0 0.0
    %3569 = vmatprep.subr.mxu0 0.0
    %3570 = vmatpush1.msra.mxu0 0.0
    %3571 = vmatprep.subr.mxu0 0.0
    %3572 = vmatpush1.msra.mxu0 0.0
    %3573 = vmatprep.subr.mxu0 0.0
    %3574 = vmatpush1.msra.mxu0 0.0
    %3575 = vmatprep.subr.mxu0 0.0
    %3576 = vmatpush1.msra.mxu0 0.0
    %3577 = vmatprep.subr.mxu0 0.0
    %3578 = vmatpush1.msra.mxu0 0.0
    %3579 = vmatprep.subr.mxu0 0.0
    %3580 = vmatpush1.msra.mxu0 0.0
    %3581 = vmatprep.subr.mxu0 0.0
    %3582 = vmatpush1.msra.mxu0 0.0
    %3583 = vmatprep.subr.mxu0 0.0
    %3584 = vmatpush1.msra.mxu0 0.0
    %3585 = vmatprep.subr.mxu0 0.0
    %3586 = vmatpush1.msra.mxu0 0.0
    %3587 = vmatprep.subr.mxu0 0.0
    %3588 = vmatpush1.msra.mxu0 0.0
    %3589 = vmatprep.subr.mxu0 0.0
    %3590 = vmatpush1.msra.mxu0 0.0
    %3591 = vmatprep.subr.mxu0 0.0
    %3592 = vmatpush1.msra.mxu0 0.0
    %3593 = vmatprep.subr.mxu0 0.0
    %3594 = vmatpush1.msra.mxu0 0.0
    %3595 = vmatprep.subr.mxu0 0.0
    %3596 = vmatpush1.msra.mxu0 0.0
    %3597 = vmatprep.subr.mxu0 0.0
    %3598 = vmatpush1.msra.mxu0 0.0
    %3599 = vmatprep.subr.mxu0 0.0
    %3600 = vmatpush1.msra.mxu0 0.0
    %3601 = vmatprep.subr.mxu0 0.0
    %3602 = vmatpush1.msra.mxu0 0.0
    %3603 = vmatprep.subr.mxu0 0.0
    %3604 = vmatpush1.msra.mxu0 0.0
    %3605 = vmatprep.subr.mxu0 0.0
    %3606 = vmatpush1.msra.mxu0 0.0
    %3607 = vmatprep.mubr.f32.mxu0 0.0
    %3608 = vmatmul.mubr.f32.gmra.mrb[0].mxu0 %v3538
    %v3609 = vpop.f32.mrb[0].mxu0
    %v3610 = vadd.f32 0.0, %v3609
    %v3611 = vpop.f32.mrb[0].mxu0
    %3612 = vmatprep.mubr.f32.mxu0 0.0
    %3613 = vmatmul.mubr.f32.gmra.mrb[0].mxu0 %v3541
    %v3614 = vpop.f32.mrb[0].mxu0
    %v3615 = vadd.f32 0.0, %v3614
    %v3616 = vpop.f32.mrb[0].mxu0
    %3617 = vdwg.mxu0
    %v3618 = vadd.f32 %v3526, %v3610
    %v3619 = vadd.f32 %v3527, %v3615
    %3620 = vst.msk [vmem:[#allocation2] sm:$0xff] %vm131, %v3618
    %3621 = vst.msk [vmem:[#allocation2 + $0x8] sm:$0xff] %vm131, %v3619
    %v3622 = vld [vmem:[#allocation2] sm:$0xff]
    %v3623 = vld [vmem:[#allocation2 + $0x8] sm:$0xff]
    %v3624 = vadd.f32 %v3376, %v3622
    %v3625 = vadd.f32 %v3377, %v3623
    %v3626 = vld [vmem:[#allocation12] sm:$0x1]
    %v3628 = vlaneseq
    %v3629 = vshrl.u32 %v3628, 7
    %v3630 = vsub.s32 0, %v3629
    %v3631 = vrot.slane %v3626, %v3630
    %v3633 = vadd.f32 %v3624, %v3631
    %v3634 = vadd.f32 %v3625, %v3631
    %3635 = vst.msk [vmem:[#allocation14] sm:$0xff] %vm131, %v3633
    %3636 = vst.msk [vmem:[#allocation14 + $0x8] sm:$0xff] %vm131, %v3634
    // Predicated region
    $region78: #{tpu_custom_call.1} parent=1 // pred_check
      _
    $region79: #{tpu_custom_call.1} parent=1 // pred_check_branch
      %3638 = sbr.rel (0) target = $region81
    $region80: #{tpu_custom_call.1} parent=1 // pred_region
      %s3640 = ssub.s32 256, 256
      %3641 = vsyncadd [#allocation5], %s3640
      %s3642 = sshll.u32 [#allocation14], 4
      %s3643 = int_to_ptr.vmem [resolvable:$true] %s3642
      %3648 = dma.vmem_to_hbm [thread:$0]  %s3643, 256, %s13, [#allocation5], 128, 128, 8
    $region81: #{tpu_custom_call.1} parent=1 // pred_fallthru
      _
    // Predicated region
    $region82: #{tpu_custom_call.1} parent=1 // pred_check
      _
    $region83: #{tpu_custom_call.1} parent=1 // pred_check_branch
      %3650 = sbr.rel (0) target = $region85
    $region84: #{tpu_custom_call.1} parent=1 // pred_region
      %3651 = dma.done [#allocation5], 256
    $region85: #{tpu_custom_call.1} parent=1 // pred_fallthru
      _
    %3652 = vsyncpa [#allocation4], 1
    %3653 = vsyncpa [#allocation7], 1
    %3654 = vsyncpa [#allocation10], 1
    %3655 = vsyncpa [#allocation13], 1
    %3656 = vsyncpa [#allocation5], 1

</llo_original>
